<compile_context>
chip_gen: v7x
topology: tpu7x:2x2x1
jax: 0.10.0
libtpu: 0.0.40
codegen_flags: <defaults>
</compile_context>

<pallas_src>
import jax
import jax.numpy as jnp
from jax.experimental import pallas as pl
from jax.experimental.pallas import tpu as pltpu

# ----- small, DistilBERT-shaped config (synthetic) -----
B, S = 2, 8           # batch, sequence
H, NH, DH = 32, 4, 8  # hidden, heads, head dim
FF = 64               # FFN hidden
L = 2                 # encoder layers
VOCAB = 50
MAXPOS = 16
NC = 3                # n_classes
EPS = 1e-12           # DistilBERT LayerNorm eps
MASK_BIAS = -1e9      # additive mask value (safer than float32 min, numerically equivalent)


def _layernorm(x, g, b):
    mu = jnp.mean(x, axis=-1, keepdims=True)
    var = jnp.mean((x - mu) ** 2, axis=-1, keepdims=True)
    return (x - mu) * jax.lax.rsqrt(var + EPS) * g + b


def _gelu(x):
    # TODO(synk): DistilBERT uses exact erf-based GELU; tanh approximation used here since
    # erf has no guaranteed Mosaic lowering (difference is ~1e-3).
    c = 0.7978845608028654  # sqrt(2/pi)
    return 0.5 * x * (1.0 + jnp.tanh(c * (x + 0.044715 * x * x * x)))


# ---------------- fully fused forward kernel (single launch, no grid) ----------------
def fused_forward_kernel(x_ref, mask_ref, emb_g_ref, emb_b_ref,
                         wqkv_ref, bqkv_ref, wo_ref, bo_ref,
                         g1_ref, be1_ref, w1_ref, b1_ref, w2_ref, b2_ref,
                         g2_ref, be2_ref, cls_w_ref, cls_b_ref, o_ref):
    # Embedding LayerNorm on the whole (B*S, H) slab (leading-dim-only reshape, no relayout).
    x = _layernorm(x_ref[...].reshape(B * S, H), emb_g_ref[...], emb_b_ref[...])
    # Hoisted mask broadcast: one broadcast_in_dim for the whole kernel.
    mask_b = jnp.broadcast_to(mask_ref[...], (B, S, S))   # 0.0 = attend, -1e9 = masked

    for l in range(L):                        # static unroll over encoder layers
        xb = x.astype(jnp.bfloat16)           # bf16 matmul inputs, f32 accumulation
        # Fused QKV projection: one (B*S,H)@(H,3H) dot; 1/sqrt(DH) already folded into wq/bq.
        qkv = jnp.dot(xb, wqkv_ref[l], preferred_element_type=jnp.float32) + bqkv_ref[l]
        qkv = qkv.astype(jnp.bfloat16).reshape(B, S, 3 * H)   # single hoisted bf16 cast

        ctx_heads = []
        for h in range(NH):                   # static unroll; single-batch-dim einsums only
            qh = qkv[:, :, h * DH:(h + 1) * DH]                 # (B, S, DH) bf16
            kh = qkv[:, :, H + h * DH:H + (h + 1) * DH]
            vh = qkv[:, :, 2 * H + h * DH:2 * H + (h + 1) * DH]
            sc = jnp.einsum('bqd,bkd->bqk', qh, kh,
                            preferred_element_type=jnp.float32)  # (B, S, S)
            sc = sc + mask_b                                     # shape-matched add
            sc = sc - jnp.max(sc, axis=-1, keepdims=True)
            p = jnp.exp(sc)
            p = p * pl.reciprocal(jnp.sum(p, axis=-1, keepdims=True), approx=True)
            ctx_heads.append(jnp.einsum('bqk,bkd->bqd', p.astype(jnp.bfloat16), vh,
                                        preferred_element_type=jnp.float32))
        # Single output projection: ctx columns are already head-major (h*DH+d), matching wo rows.
        ctx = jnp.concatenate(ctx_heads, axis=-1).reshape(B * S, H)
        sa = jnp.dot(ctx.astype(jnp.bfloat16), wo_ref[l],
                     preferred_element_type=jnp.float32) + bo_ref[l]
        x1 = _layernorm(x + sa, g1_ref[l], be1_ref[l])           # sa_layer_norm

        h1 = _gelu(jnp.dot(x1.astype(jnp.bfloat16), w1_ref[l],
                           preferred_element_type=jnp.float32) + b1_ref[l])
        h2 = jnp.dot(h1.astype(jnp.bfloat16), w2_ref[l],
                     preferred_element_type=jnp.float32) + b2_ref[l]
        x = _layernorm(x1 + h2, g2_ref[l], be2_ref[l])           # output_layer_norm

    pooled = x.reshape(B, S, H)[:, 0, :]      # hidden_state[:, 0] ([CLS] pooling)
    # nn.Dropout is identity at inference; classifier fused as the epilogue.
    o_ref[...] = jnp.dot(pooled.astype(jnp.bfloat16), cls_w_ref[...],
                         preferred_element_type=jnp.float32) + cls_b_ref[...]


# ---------------- deterministic parameter init ----------------
def init_params(seed=0):
    keys = list(jax.random.split(jax.random.PRNGKey(seed), 8 + L * 8))
    it = iter(keys)

    def nrm(shape, std=0.02):
        return std * jax.random.normal(next(it), shape, dtype=jnp.float32)

    params = dict(
        word_emb=nrm((VOCAB, H)),
        pos_emb=nrm((MAXPOS, H)),
        emb_g=jnp.ones((1, H), jnp.float32),
        emb_b=jnp.zeros((1, H), jnp.float32),
        cls_w=nrm((H, NC)),
        cls_b=jnp.zeros((1, NC), jnp.float32),
        layers=[],
    )
    for _ in range(L):
        lp = dict(
            wq=nrm((H, H)), bq=jnp.zeros((1, H), jnp.float32),
            wk=nrm((H, H)), bk=jnp.zeros((1, H), jnp.float32),
            wv=nrm((H, H)), bv=jnp.zeros((1, H), jnp.float32),
            wo=nrm((H, H)), bo=jnp.zeros((1, H), jnp.float32),
            g1=jnp.ones((1, H), jnp.float32), be1=jnp.zeros((1, H), jnp.float32),
            w1=nrm((H, FF)), b1=jnp.zeros((1, FF), jnp.float32),
            w2=nrm((FF, H)), b2=jnp.zeros((1, H), jnp.float32),
            g2=jnp.ones((1, H), jnp.float32), be2=jnp.zeros((1, H), jnp.float32),
        )
        params["layers"].append(lp)
    return params


# ---------------- forward = SpamClassifierDistilBert.forward (eval mode) ----------------
def spam_classifier_forward(params, input_ids, attention_mask):
    # DistilBERT embeddings: word + position (gather stays in plain JAX)
    pos = jnp.arange(input_ids.shape[1])
    emb = params["word_emb"][input_ids] + params["pos_emb"][pos][None, :, :]

    # additive attention-mask bias, computed once outside the kernel
    mask_bias = jnp.where(attention_mask == 0, MASK_BIAS, 0.0).astype(jnp.float32)
    mask_bias = mask_bias.reshape(B, 1, S)

    scale = 1.0 / (DH ** 0.5)
    bf = jnp.bfloat16

    def stack(fn, dtype=jnp.float32):
        return jnp.stack([fn(lp) for lp in params["layers"]]).astype(dtype)

    # Fused QKV weights/bias with the attention scale folded into the q part (wrapper-side).
    wqkv = stack(lambda lp: jnp.concatenate([lp["wq"] * scale, lp["wk"], lp["wv"]], axis=-1), bf)
    bqkv = stack(lambda lp: jnp.concatenate([lp["bq"] * scale, lp["bk"], lp["bv"]], axis=-1))

    args = (
        emb, mask_bias, params["emb_g"], params["emb_b"],
        wqkv, bqkv,
        stack(lambda lp: lp["wo"], bf), stack(lambda lp: lp["bo"]),
        stack(lambda lp: lp["g1"]), stack(lambda lp: lp["be1"]),
        stack(lambda lp: lp["w1"], bf), stack(lambda lp: lp["b1"]),
        stack(lambda lp: lp["w2"], bf), stack(lambda lp: lp["b2"]),
        stack(lambda lp: lp["g2"]), stack(lambda lp: lp["be2"]),
        params["cls_w"].astype(bf), params["cls_b"],
    )
    # No grid: weights + activations (<1 MiB) are staged once and stay resident in VMEM.
    return pl.pallas_call(
        fused_forward_kernel,
        out_shape=jax.ShapeDtypeStruct((B, NC), jnp.float32),
        compiler_params=pltpu.CompilerParams(vmem_limit_bytes=4 * 1024 * 1024),
    )(*args)


if __name__ == "__main__":
    key = jax.random.PRNGKey(0)
    k_ids, _ = jax.random.split(key)
    input_ids = jax.random.randint(k_ids, (B, S), 0, VOCAB, dtype=jnp.int32)
    attention_mask = jnp.ones((B, S), dtype=jnp.int32).at[1, 6:].set(0)

    params = init_params(seed=0)
    fwd = jax.jit(spam_classifier_forward)
    logits = fwd(params, input_ids, attention_mask)
    logits = jax.block_until_ready(logits)
    assert logits.shape == (B, NC) and logits.dtype == jnp.float32
    print("KERNEL_OK")
</pallas_src>

<mosaic_0001>
module attributes {stable_mosaic.version = 11 : i64} {
  func.func @fused_forward_kernel(%arg0: memref<2x8x32xf32, #tpu.memory_space<vmem>>, %arg1: memref<2x1x8xf32, #tpu.memory_space<vmem>>, %arg2: memref<1x32xf32, #tpu.memory_space<vmem>>, %arg3: memref<1x32xf32, #tpu.memory_space<vmem>>, %arg4: memref<2x32x96xbf16, #tpu.memory_space<vmem>>, %arg5: memref<2x1x96xf32, #tpu.memory_space<vmem>>, %arg6: memref<2x32x32xbf16, #tpu.memory_space<vmem>>, %arg7: memref<2x1x32xf32, #tpu.memory_space<vmem>>, %arg8: memref<2x1x32xf32, #tpu.memory_space<vmem>>, %arg9: memref<2x1x32xf32, #tpu.memory_space<vmem>>, %arg10: memref<2x32x64xbf16, #tpu.memory_space<vmem>>, %arg11: memref<2x1x64xf32, #tpu.memory_space<vmem>>, %arg12: memref<2x64x32xbf16, #tpu.memory_space<vmem>>, %arg13: memref<2x1x32xf32, #tpu.memory_space<vmem>>, %arg14: memref<2x1x32xf32, #tpu.memory_space<vmem>>, %arg15: memref<2x1x32xf32, #tpu.memory_space<vmem>>, %arg16: memref<32x3xbf16, #tpu.memory_space<vmem>>, %arg17: memref<1x3xf32, #tpu.memory_space<vmem>>, %arg18: memref<2x3xf32, #tpu.memory_space<vmem>>) attributes {dimension_semantics = [], scalar_prefetch = 0 : i64, scratch_operands = 0 : i64, tpu.core_type = #tpu.core_type<tc>} {
    %c0 = arith.constant 0 : index
    %c0_0 = arith.constant 0 : index
    %c0_1 = arith.constant 0 : index
    %0 = vector.load %arg0[%c0, %c0_0, %c0_1] : memref<2x8x32xf32, #tpu.memory_space<vmem>>, vector<2x8x32xf32>
    %1 = vector.shape_cast %0 : vector<2x8x32xf32> to vector<16x32xf32>
    %c0_2 = arith.constant 0 : index
    %c0_3 = arith.constant 0 : index
    %2 = vector.load %arg2[%c0_2, %c0_3] : memref<1x32xf32, #tpu.memory_space<vmem>>, vector<1x32xf32>
    %c0_4 = arith.constant 0 : index
    %c0_5 = arith.constant 0 : index
    %3 = vector.load %arg3[%c0_4, %c0_5] : memref<1x32xf32, #tpu.memory_space<vmem>>, vector<1x32xf32>
    %cst = arith.constant dense<0.000000e+00> : vector<16xf32>
    %4 = vector.multi_reduction <add>, %1, %cst [1] : vector<16x32xf32> to vector<16xf32>
    %5 = vector.shape_cast %4 : vector<16xf32> to vector<16x1xf32>
    %cst_6 = arith.constant 3.200000e+01 : f32
    %6 = vector.broadcast %cst_6 : f32 to vector<16x1xf32>
    %7 = arith.divf %5, %6 : vector<16x1xf32>
    %8 = vector.broadcast %7 : vector<16x1xf32> to vector<16x32xf32>
    %9 = arith.subf %1, %8 : vector<16x32xf32>
    %10 = arith.mulf %9, %9 : vector<16x32xf32>
    %cst_7 = arith.constant dense<0.000000e+00> : vector<16xf32>
    %11 = vector.multi_reduction <add>, %10, %cst_7 [1] : vector<16x32xf32> to vector<16xf32>
    %12 = vector.shape_cast %11 : vector<16xf32> to vector<16x1xf32>
    %cst_8 = arith.constant 3.200000e+01 : f32
    %13 = vector.broadcast %cst_8 : f32 to vector<16x1xf32>
    %14 = arith.divf %12, %13 : vector<16x1xf32>
    %15 = vector.broadcast %7 : vector<16x1xf32> to vector<16x32xf32>
    %16 = arith.subf %1, %15 : vector<16x32xf32>
    %cst_9 = arith.constant 9.99999996E-13 : f32
    %17 = vector.broadcast %cst_9 : f32 to vector<16x1xf32>
    %18 = arith.addf %14, %17 : vector<16x1xf32>
    %19 = math.rsqrt %18 : vector<16x1xf32>
    %20 = vector.broadcast %19 : vector<16x1xf32> to vector<16x32xf32>
    %21 = arith.mulf %16, %20 : vector<16x32xf32>
    %22 = vector.broadcast %2 : vector<1x32xf32> to vector<16x32xf32>
    %23 = arith.mulf %21, %22 : vector<16x32xf32>
    %24 = vector.broadcast %3 : vector<1x32xf32> to vector<16x32xf32>
    %25 = arith.addf %23, %24 : vector<16x32xf32>
    %c0_10 = arith.constant 0 : index
    %c0_11 = arith.constant 0 : index
    %c0_12 = arith.constant 0 : index
    %26 = vector.load %arg1[%c0_10, %c0_11, %c0_12] : memref<2x1x8xf32, #tpu.memory_space<vmem>>, vector<2x1x8xf32>
    %27 = vector.shape_cast %26 : vector<2x1x8xf32> to vector<2x1x8xf32>
    %28 = vector.broadcast %27 : vector<2x1x8xf32> to vector<2x8x8xf32>
    %29 = arith.truncf %25 : vector<16x32xf32> to vector<16x32xbf16>
    %c0_13 = arith.constant 0 : index
    %c0_14 = arith.constant 0 : index
    %c0_15 = arith.constant 0 : index
    %30 = vector.load %arg4[%c0_13, %c0_14, %c0_15] : memref<2x32x96xbf16, #tpu.memory_space<vmem>>, vector<1x32x96xbf16>
    %31 = vector.shape_cast %30 : vector<1x32x96xbf16> to vector<32x96xbf16>
    %cst_16 = arith.constant dense<0.000000e+00> : vector<16x96xf32>
    %32 = tpu.matmul %29, %31, %cst_16 {dimension_numbers = #tpu.dot_dimension_numbers<[1], [0], [0], [1], [0, 0, 1, 1], [], []>} : vector<16x32xbf16>, vector<32x96xbf16>, vector<16x96xf32> -> vector<16x96xf32>
    %c0_17 = arith.constant 0 : index
    %c0_18 = arith.constant 0 : index
    %c0_19 = arith.constant 0 : index
    %33 = vector.load %arg5[%c0_17, %c0_18, %c0_19] : memref<2x1x96xf32, #tpu.memory_space<vmem>>, vector<1x1x96xf32>
    %34 = vector.shape_cast %33 : vector<1x1x96xf32> to vector<1x96xf32>
    %35 = vector.broadcast %34 : vector<1x96xf32> to vector<16x96xf32>
    %36 = arith.addf %32, %35 : vector<16x96xf32>
    %37 = arith.truncf %36 : vector<16x96xf32> to vector<16x96xbf16>
    %38 = vector.shape_cast %37 : vector<16x96xbf16> to vector<2x8x96xbf16>
    %39 = vector.extract_strided_slice %38 {offsets = [0, 0, 0], sizes = [2, 8, 8], strides = [1, 1, 1]} : vector<2x8x96xbf16> to vector<2x8x8xbf16>
    %40 = vector.extract_strided_slice %38 {offsets = [0, 0, 32], sizes = [2, 8, 8], strides = [1, 1, 1]} : vector<2x8x96xbf16> to vector<2x8x8xbf16>
    %41 = vector.extract_strided_slice %38 {offsets = [0, 0, 64], sizes = [2, 8, 8], strides = [1, 1, 1]} : vector<2x8x96xbf16> to vector<2x8x8xbf16>
    "tpu.trace_start"() <{level = 10 : i32, message = "bqd,bkd->bqk"}> : () -> ()
    %cst_20 = arith.constant dense<0.000000e+00> : vector<2x8x8xf32>
    %42 = tpu.matmul %39, %40, %cst_20 {dimension_numbers = #tpu.dot_dimension_numbers<[2], [2], [1], [1], [0, 0, 0, 1, 1, 1], [0], [0]>} : vector<2x8x8xbf16>, vector<2x8x8xbf16>, vector<2x8x8xf32> -> vector<2x8x8xf32>
    "tpu.trace_stop"() : () -> ()
    %43 = arith.addf %42, %28 : vector<2x8x8xf32>
    %cst_21 = arith.constant dense<0xFF800000> : vector<2x8xf32>
    %44 = vector.multi_reduction <maximumf>, %43, %cst_21 [2] : vector<2x8x8xf32> to vector<2x8xf32>
    %45 = vector.shape_cast %44 : vector<2x8xf32> to vector<2x8x1xf32>
    %46 = vector.broadcast %45 : vector<2x8x1xf32> to vector<2x8x8xf32>
    %47 = arith.subf %43, %46 : vector<2x8x8xf32>
    %48 = math.exp %47 : vector<2x8x8xf32>
    %cst_22 = arith.constant dense<0.000000e+00> : vector<2x8xf32>
    %49 = vector.multi_reduction <add>, %48, %cst_22 [2] : vector<2x8x8xf32> to vector<2x8xf32>
    %50 = vector.shape_cast %49 : vector<2x8xf32> to vector<2x8x1xf32>
    %51 = tpu.reciprocal %50 {approx = true} : vector<2x8x1xf32> -> vector<2x8x1xf32>
    %52 = vector.broadcast %51 : vector<2x8x1xf32> to vector<2x8x8xf32>
    %53 = arith.mulf %48, %52 : vector<2x8x8xf32>
    %54 = arith.truncf %53 : vector<2x8x8xf32> to vector<2x8x8xbf16>
    "tpu.trace_start"() <{level = 10 : i32, message = "bqk,bkd->bqd"}> : () -> ()
    %cst_23 = arith.constant dense<0.000000e+00> : vector<2x8x8xf32>
    %55 = tpu.matmul %54, %41, %cst_23 {dimension_numbers = #tpu.dot_dimension_numbers<[2], [1], [1], [2], [0, 0, 0, 1, 1, 2], [0], [0]>} : vector<2x8x8xbf16>, vector<2x8x8xbf16>, vector<2x8x8xf32> -> vector<2x8x8xf32>
    "tpu.trace_stop"() : () -> ()
    %56 = vector.extract_strided_slice %38 {offsets = [0, 0, 8], sizes = [2, 8, 8], strides = [1, 1, 1]} : vector<2x8x96xbf16> to vector<2x8x8xbf16>
    %57 = vector.extract_strided_slice %38 {offsets = [0, 0, 40], sizes = [2, 8, 8], strides = [1, 1, 1]} : vector<2x8x96xbf16> to vector<2x8x8xbf16>
    %58 = vector.extract_strided_slice %38 {offsets = [0, 0, 72], sizes = [2, 8, 8], strides = [1, 1, 1]} : vector<2x8x96xbf16> to vector<2x8x8xbf16>
    "tpu.trace_start"() <{level = 10 : i32, message = "bqd,bkd->bqk"}> : () -> ()
    %cst_24 = arith.constant dense<0.000000e+00> : vector<2x8x8xf32>
    %59 = tpu.matmul %56, %57, %cst_24 {dimension_numbers = #tpu.dot_dimension_numbers<[2], [2], [1], [1], [0, 0, 0, 1, 1, 1], [0], [0]>} : vector<2x8x8xbf16>, vector<2x8x8xbf16>, vector<2x8x8xf32> -> vector<2x8x8xf32>
    "tpu.trace_stop"() : () -> ()
    %60 = arith.addf %59, %28 : vector<2x8x8xf32>
    %cst_25 = arith.constant dense<0xFF800000> : vector<2x8xf32>
    %61 = vector.multi_reduction <maximumf>, %60, %cst_25 [2] : vector<2x8x8xf32> to vector<2x8xf32>
    %62 = vector.shape_cast %61 : vector<2x8xf32> to vector<2x8x1xf32>
    %63 = vector.broadcast %62 : vector<2x8x1xf32> to vector<2x8x8xf32>
    %64 = arith.subf %60, %63 : vector<2x8x8xf32>
    %65 = math.exp %64 : vector<2x8x8xf32>
    %cst_26 = arith.constant dense<0.000000e+00> : vector<2x8xf32>
    %66 = vector.multi_reduction <add>, %65, %cst_26 [2] : vector<2x8x8xf32> to vector<2x8xf32>
    %67 = vector.shape_cast %66 : vector<2x8xf32> to vector<2x8x1xf32>
    %68 = tpu.reciprocal %67 {approx = true} : vector<2x8x1xf32> -> vector<2x8x1xf32>
    %69 = vector.broadcast %68 : vector<2x8x1xf32> to vector<2x8x8xf32>
    %70 = arith.mulf %65, %69 : vector<2x8x8xf32>
    %71 = arith.truncf %70 : vector<2x8x8xf32> to vector<2x8x8xbf16>
    "tpu.trace_start"() <{level = 10 : i32, message = "bqk,bkd->bqd"}> : () -> ()
    %cst_27 = arith.constant dense<0.000000e+00> : vector<2x8x8xf32>
    %72 = tpu.matmul %71, %58, %cst_27 {dimension_numbers = #tpu.dot_dimension_numbers<[2], [1], [1], [2], [0, 0, 0, 1, 1, 2], [0], [0]>} : vector<2x8x8xbf16>, vector<2x8x8xbf16>, vector<2x8x8xf32> -> vector<2x8x8xf32>
    "tpu.trace_stop"() : () -> ()
    %73 = vector.extract_strided_slice %38 {offsets = [0, 0, 16], sizes = [2, 8, 8], strides = [1, 1, 1]} : vector<2x8x96xbf16> to vector<2x8x8xbf16>
    %74 = vector.extract_strided_slice %38 {offsets = [0, 0, 48], sizes = [2, 8, 8], strides = [1, 1, 1]} : vector<2x8x96xbf16> to vector<2x8x8xbf16>
    %75 = vector.extract_strided_slice %38 {offsets = [0, 0, 80], sizes = [2, 8, 8], strides = [1, 1, 1]} : vector<2x8x96xbf16> to vector<2x8x8xbf16>
    "tpu.trace_start"() <{level = 10 : i32, message = "bqd,bkd->bqk"}> : () -> ()
    %cst_28 = arith.constant dense<0.000000e+00> : vector<2x8x8xf32>
    %76 = tpu.matmul %73, %74, %cst_28 {dimension_numbers = #tpu.dot_dimension_numbers<[2], [2], [1], [1], [0, 0, 0, 1, 1, 1], [0], [0]>} : vector<2x8x8xbf16>, vector<2x8x8xbf16>, vector<2x8x8xf32> -> vector<2x8x8xf32>
    "tpu.trace_stop"() : () -> ()
    %77 = arith.addf %76, %28 : vector<2x8x8xf32>
    %cst_29 = arith.constant dense<0xFF800000> : vector<2x8xf32>
    %78 = vector.multi_reduction <maximumf>, %77, %cst_29 [2] : vector<2x8x8xf32> to vector<2x8xf32>
    %79 = vector.shape_cast %78 : vector<2x8xf32> to vector<2x8x1xf32>
    %80 = vector.broadcast %79 : vector<2x8x1xf32> to vector<2x8x8xf32>
    %81 = arith.subf %77, %80 : vector<2x8x8xf32>
    %82 = math.exp %81 : vector<2x8x8xf32>
    %cst_30 = arith.constant dense<0.000000e+00> : vector<2x8xf32>
    %83 = vector.multi_reduction <add>, %82, %cst_30 [2] : vector<2x8x8xf32> to vector<2x8xf32>
    %84 = vector.shape_cast %83 : vector<2x8xf32> to vector<2x8x1xf32>
    %85 = tpu.reciprocal %84 {approx = true} : vector<2x8x1xf32> -> vector<2x8x1xf32>
    %86 = vector.broadcast %85 : vector<2x8x1xf32> to vector<2x8x8xf32>
    %87 = arith.mulf %82, %86 : vector<2x8x8xf32>
    %88 = arith.truncf %87 : vector<2x8x8xf32> to vector<2x8x8xbf16>
    "tpu.trace_start"() <{level = 10 : i32, message = "bqk,bkd->bqd"}> : () -> ()
    %cst_31 = arith.constant dense<0.000000e+00> : vector<2x8x8xf32>
    %89 = tpu.matmul %88, %75, %cst_31 {dimension_numbers = #tpu.dot_dimension_numbers<[2], [1], [1], [2], [0, 0, 0, 1, 1, 2], [0], [0]>} : vector<2x8x8xbf16>, vector<2x8x8xbf16>, vector<2x8x8xf32> -> vector<2x8x8xf32>
    "tpu.trace_stop"() : () -> ()
    %90 = vector.extract_strided_slice %38 {offsets = [0, 0, 24], sizes = [2, 8, 8], strides = [1, 1, 1]} : vector<2x8x96xbf16> to vector<2x8x8xbf16>
    %91 = vector.extract_strided_slice %38 {offsets = [0, 0, 56], sizes = [2, 8, 8], strides = [1, 1, 1]} : vector<2x8x96xbf16> to vector<2x8x8xbf16>
    %92 = vector.extract_strided_slice %38 {offsets = [0, 0, 88], sizes = [2, 8, 8], strides = [1, 1, 1]} : vector<2x8x96xbf16> to vector<2x8x8xbf16>
    "tpu.trace_start"() <{level = 10 : i32, message = "bqd,bkd->bqk"}> : () -> ()
    %cst_32 = arith.constant dense<0.000000e+00> : vector<2x8x8xf32>
    %93 = tpu.matmul %90, %91, %cst_32 {dimension_numbers = #tpu.dot_dimension_numbers<[2], [2], [1], [1], [0, 0, 0, 1, 1, 1], [0], [0]>} : vector<2x8x8xbf16>, vector<2x8x8xbf16>, vector<2x8x8xf32> -> vector<2x8x8xf32>
    "tpu.trace_stop"() : () -> ()
    %94 = arith.addf %93, %28 : vector<2x8x8xf32>
    %cst_33 = arith.constant dense<0xFF800000> : vector<2x8xf32>
    %95 = vector.multi_reduction <maximumf>, %94, %cst_33 [2] : vector<2x8x8xf32> to vector<2x8xf32>
    %96 = vector.shape_cast %95 : vector<2x8xf32> to vector<2x8x1xf32>
    %97 = vector.broadcast %96 : vector<2x8x1xf32> to vector<2x8x8xf32>
    %98 = arith.subf %94, %97 : vector<2x8x8xf32>
    %99 = math.exp %98 : vector<2x8x8xf32>
    %cst_34 = arith.constant dense<0.000000e+00> : vector<2x8xf32>
    %100 = vector.multi_reduction <add>, %99, %cst_34 [2] : vector<2x8x8xf32> to vector<2x8xf32>
    %101 = vector.shape_cast %100 : vector<2x8xf32> to vector<2x8x1xf32>
    %102 = tpu.reciprocal %101 {approx = true} : vector<2x8x1xf32> -> vector<2x8x1xf32>
    %103 = vector.broadcast %102 : vector<2x8x1xf32> to vector<2x8x8xf32>
    %104 = arith.mulf %99, %103 : vector<2x8x8xf32>
    %105 = arith.truncf %104 : vector<2x8x8xf32> to vector<2x8x8xbf16>
    "tpu.trace_start"() <{level = 10 : i32, message = "bqk,bkd->bqd"}> : () -> ()
    %cst_35 = arith.constant dense<0.000000e+00> : vector<2x8x8xf32>
    %106 = tpu.matmul %105, %92, %cst_35 {dimension_numbers = #tpu.dot_dimension_numbers<[2], [1], [1], [2], [0, 0, 0, 1, 1, 2], [0], [0]>} : vector<2x8x8xbf16>, vector<2x8x8xbf16>, vector<2x8x8xf32> -> vector<2x8x8xf32>
    "tpu.trace_stop"() : () -> ()
    %107 = tpu.concatenate %55, %72, %89, %106 in 2 : vector<2x8x8xf32>, vector<2x8x8xf32>, vector<2x8x8xf32>, vector<2x8x8xf32> -> vector<2x8x32xf32>
    %108 = vector.shape_cast %107 : vector<2x8x32xf32> to vector<16x32xf32>
    %109 = arith.truncf %108 : vector<16x32xf32> to vector<16x32xbf16>
    %c0_36 = arith.constant 0 : index
    %c0_37 = arith.constant 0 : index
    %c0_38 = arith.constant 0 : index
    %110 = vector.load %arg6[%c0_36, %c0_37, %c0_38] : memref<2x32x32xbf16, #tpu.memory_space<vmem>>, vector<1x32x32xbf16>
    %111 = vector.shape_cast %110 : vector<1x32x32xbf16> to vector<32x32xbf16>
    %cst_39 = arith.constant dense<0.000000e+00> : vector<16x32xf32>
    %112 = tpu.matmul %109, %111, %cst_39 {dimension_numbers = #tpu.dot_dimension_numbers<[1], [0], [0], [1], [0, 0, 1, 1], [], []>} : vector<16x32xbf16>, vector<32x32xbf16>, vector<16x32xf32> -> vector<16x32xf32>
    %c0_40 = arith.constant 0 : index
    %c0_41 = arith.constant 0 : index
    %c0_42 = arith.constant 0 : index
    %113 = vector.load %arg7[%c0_40, %c0_41, %c0_42] : memref<2x1x32xf32, #tpu.memory_space<vmem>>, vector<1x1x32xf32>
    %114 = vector.shape_cast %113 : vector<1x1x32xf32> to vector<1x32xf32>
    %115 = vector.broadcast %114 : vector<1x32xf32> to vector<16x32xf32>
    %116 = arith.addf %112, %115 : vector<16x32xf32>
    %117 = arith.addf %25, %116 : vector<16x32xf32>
    %c0_43 = arith.constant 0 : index
    %c0_44 = arith.constant 0 : index
    %c0_45 = arith.constant 0 : index
    %118 = vector.load %arg8[%c0_43, %c0_44, %c0_45] : memref<2x1x32xf32, #tpu.memory_space<vmem>>, vector<1x1x32xf32>
    %119 = vector.shape_cast %118 : vector<1x1x32xf32> to vector<1x32xf32>
    %c0_46 = arith.constant 0 : index
    %c0_47 = arith.constant 0 : index
    %c0_48 = arith.constant 0 : index
    %120 = vector.load %arg9[%c0_46, %c0_47, %c0_48] : memref<2x1x32xf32, #tpu.memory_space<vmem>>, vector<1x1x32xf32>
    %121 = vector.shape_cast %120 : vector<1x1x32xf32> to vector<1x32xf32>
    %cst_49 = arith.constant dense<0.000000e+00> : vector<16xf32>
    %122 = vector.multi_reduction <add>, %117, %cst_49 [1] : vector<16x32xf32> to vector<16xf32>
    %123 = vector.shape_cast %122 : vector<16xf32> to vector<16x1xf32>
    %cst_50 = arith.constant 3.200000e+01 : f32
    %124 = vector.broadcast %cst_50 : f32 to vector<16x1xf32>
    %125 = arith.divf %123, %124 : vector<16x1xf32>
    %126 = vector.broadcast %125 : vector<16x1xf32> to vector<16x32xf32>
    %127 = arith.subf %117, %126 : vector<16x32xf32>
    %128 = arith.mulf %127, %127 : vector<16x32xf32>
    %cst_51 = arith.constant dense<0.000000e+00> : vector<16xf32>
    %129 = vector.multi_reduction <add>, %128, %cst_51 [1] : vector<16x32xf32> to vector<16xf32>
    %130 = vector.shape_cast %129 : vector<16xf32> to vector<16x1xf32>
    %cst_52 = arith.constant 3.200000e+01 : f32
    %131 = vector.broadcast %cst_52 : f32 to vector<16x1xf32>
    %132 = arith.divf %130, %131 : vector<16x1xf32>
    %133 = vector.broadcast %125 : vector<16x1xf32> to vector<16x32xf32>
    %134 = arith.subf %117, %133 : vector<16x32xf32>
    %cst_53 = arith.constant 9.99999996E-13 : f32
    %135 = vector.broadcast %cst_53 : f32 to vector<16x1xf32>
    %136 = arith.addf %132, %135 : vector<16x1xf32>
    %137 = math.rsqrt %136 : vector<16x1xf32>
    %138 = vector.broadcast %137 : vector<16x1xf32> to vector<16x32xf32>
    %139 = arith.mulf %134, %138 : vector<16x32xf32>
    %140 = vector.broadcast %119 : vector<1x32xf32> to vector<16x32xf32>
    %141 = arith.mulf %139, %140 : vector<16x32xf32>
    %142 = vector.broadcast %121 : vector<1x32xf32> to vector<16x32xf32>
    %143 = arith.addf %141, %142 : vector<16x32xf32>
    %144 = arith.truncf %143 : vector<16x32xf32> to vector<16x32xbf16>
    %c0_54 = arith.constant 0 : index
    %c0_55 = arith.constant 0 : index
    %c0_56 = arith.constant 0 : index
    %145 = vector.load %arg10[%c0_54, %c0_55, %c0_56] : memref<2x32x64xbf16, #tpu.memory_space<vmem>>, vector<1x32x64xbf16>
    %146 = vector.shape_cast %145 : vector<1x32x64xbf16> to vector<32x64xbf16>
    %cst_57 = arith.constant dense<0.000000e+00> : vector<16x64xf32>
    %147 = tpu.matmul %144, %146, %cst_57 {dimension_numbers = #tpu.dot_dimension_numbers<[1], [0], [0], [1], [0, 0, 1, 1], [], []>} : vector<16x32xbf16>, vector<32x64xbf16>, vector<16x64xf32> -> vector<16x64xf32>
    %c0_58 = arith.constant 0 : index
    %c0_59 = arith.constant 0 : index
    %c0_60 = arith.constant 0 : index
    %148 = vector.load %arg11[%c0_58, %c0_59, %c0_60] : memref<2x1x64xf32, #tpu.memory_space<vmem>>, vector<1x1x64xf32>
    %149 = vector.shape_cast %148 : vector<1x1x64xf32> to vector<1x64xf32>
    %150 = vector.broadcast %149 : vector<1x64xf32> to vector<16x64xf32>
    %151 = arith.addf %147, %150 : vector<16x64xf32>
    %cst_61 = arith.constant 5.000000e-01 : f32
    %152 = vector.broadcast %cst_61 : f32 to vector<16x64xf32>
    %153 = arith.mulf %152, %151 : vector<16x64xf32>
    %cst_62 = arith.constant 4.471500e-02 : f32
    %154 = vector.broadcast %cst_62 : f32 to vector<16x64xf32>
    %155 = arith.mulf %154, %151 : vector<16x64xf32>
    %156 = arith.mulf %155, %151 : vector<16x64xf32>
    %157 = arith.mulf %156, %151 : vector<16x64xf32>
    %158 = arith.addf %151, %157 : vector<16x64xf32>
    %cst_63 = arith.constant 0.797884583 : f32
    %159 = vector.broadcast %cst_63 : f32 to vector<16x64xf32>
    %160 = arith.mulf %159, %158 : vector<16x64xf32>
    %161 = math.tanh %160 : vector<16x64xf32>
    %cst_64 = arith.constant 1.000000e+00 : f32
    %162 = vector.broadcast %cst_64 : f32 to vector<16x64xf32>
    %163 = arith.addf %162, %161 : vector<16x64xf32>
    %164 = arith.mulf %153, %163 : vector<16x64xf32>
    %165 = arith.truncf %164 : vector<16x64xf32> to vector<16x64xbf16>
    %c0_65 = arith.constant 0 : index
    %c0_66 = arith.constant 0 : index
    %c0_67 = arith.constant 0 : index
    %166 = vector.load %arg12[%c0_65, %c0_66, %c0_67] : memref<2x64x32xbf16, #tpu.memory_space<vmem>>, vector<1x64x32xbf16>
    %167 = vector.shape_cast %166 : vector<1x64x32xbf16> to vector<64x32xbf16>
    %cst_68 = arith.constant dense<0.000000e+00> : vector<16x32xf32>
    %168 = tpu.matmul %165, %167, %cst_68 {dimension_numbers = #tpu.dot_dimension_numbers<[1], [0], [0], [1], [0, 0, 1, 1], [], []>} : vector<16x64xbf16>, vector<64x32xbf16>, vector<16x32xf32> -> vector<16x32xf32>
    %c0_69 = arith.constant 0 : index
    %c0_70 = arith.constant 0 : index
    %c0_71 = arith.constant 0 : index
    %169 = vector.load %arg13[%c0_69, %c0_70, %c0_71] : memref<2x1x32xf32, #tpu.memory_space<vmem>>, vector<1x1x32xf32>
    %170 = vector.shape_cast %169 : vector<1x1x32xf32> to vector<1x32xf32>
    %171 = vector.broadcast %170 : vector<1x32xf32> to vector<16x32xf32>
    %172 = arith.addf %168, %171 : vector<16x32xf32>
    %173 = arith.addf %143, %172 : vector<16x32xf32>
    %c0_72 = arith.constant 0 : index
    %c0_73 = arith.constant 0 : index
    %c0_74 = arith.constant 0 : index
    %174 = vector.load %arg14[%c0_72, %c0_73, %c0_74] : memref<2x1x32xf32, #tpu.memory_space<vmem>>, vector<1x1x32xf32>
    %175 = vector.shape_cast %174 : vector<1x1x32xf32> to vector<1x32xf32>
    %c0_75 = arith.constant 0 : index
    %c0_76 = arith.constant 0 : index
    %c0_77 = arith.constant 0 : index
    %176 = vector.load %arg15[%c0_75, %c0_76, %c0_77] : memref<2x1x32xf32, #tpu.memory_space<vmem>>, vector<1x1x32xf32>
    %177 = vector.shape_cast %176 : vector<1x1x32xf32> to vector<1x32xf32>
    %cst_78 = arith.constant dense<0.000000e+00> : vector<16xf32>
    %178 = vector.multi_reduction <add>, %173, %cst_78 [1] : vector<16x32xf32> to vector<16xf32>
    %179 = vector.shape_cast %178 : vector<16xf32> to vector<16x1xf32>
    %cst_79 = arith.constant 3.200000e+01 : f32
    %180 = vector.broadcast %cst_79 : f32 to vector<16x1xf32>
    %181 = arith.divf %179, %180 : vector<16x1xf32>
    %182 = vector.broadcast %181 : vector<16x1xf32> to vector<16x32xf32>
    %183 = arith.subf %173, %182 : vector<16x32xf32>
    %184 = arith.mulf %183, %183 : vector<16x32xf32>
    %cst_80 = arith.constant dense<0.000000e+00> : vector<16xf32>
    %185 = vector.multi_reduction <add>, %184, %cst_80 [1] : vector<16x32xf32> to vector<16xf32>
    %186 = vector.shape_cast %185 : vector<16xf32> to vector<16x1xf32>
    %cst_81 = arith.constant 3.200000e+01 : f32
    %187 = vector.broadcast %cst_81 : f32 to vector<16x1xf32>
    %188 = arith.divf %186, %187 : vector<16x1xf32>
    %189 = vector.broadcast %181 : vector<16x1xf32> to vector<16x32xf32>
    %190 = arith.subf %173, %189 : vector<16x32xf32>
    %cst_82 = arith.constant 9.99999996E-13 : f32
    %191 = vector.broadcast %cst_82 : f32 to vector<16x1xf32>
    %192 = arith.addf %188, %191 : vector<16x1xf32>
    %193 = math.rsqrt %192 : vector<16x1xf32>
    %194 = vector.broadcast %193 : vector<16x1xf32> to vector<16x32xf32>
    %195 = arith.mulf %190, %194 : vector<16x32xf32>
    %196 = vector.broadcast %175 : vector<1x32xf32> to vector<16x32xf32>
    %197 = arith.mulf %195, %196 : vector<16x32xf32>
    %198 = vector.broadcast %177 : vector<1x32xf32> to vector<16x32xf32>
    %199 = arith.addf %197, %198 : vector<16x32xf32>
    %200 = arith.truncf %199 : vector<16x32xf32> to vector<16x32xbf16>
    %c1 = arith.constant 1 : index
    %c0_83 = arith.constant 0 : index
    %c0_84 = arith.constant 0 : index
    %201 = vector.load %arg4[%c1, %c0_83, %c0_84] : memref<2x32x96xbf16, #tpu.memory_space<vmem>>, vector<1x32x96xbf16>
    %202 = vector.shape_cast %201 : vector<1x32x96xbf16> to vector<32x96xbf16>
    %cst_85 = arith.constant dense<0.000000e+00> : vector<16x96xf32>
    %203 = tpu.matmul %200, %202, %cst_85 {dimension_numbers = #tpu.dot_dimension_numbers<[1], [0], [0], [1], [0, 0, 1, 1], [], []>} : vector<16x32xbf16>, vector<32x96xbf16>, vector<16x96xf32> -> vector<16x96xf32>
    %c1_86 = arith.constant 1 : index
    %c0_87 = arith.constant 0 : index
    %c0_88 = arith.constant 0 : index
    %204 = vector.load %arg5[%c1_86, %c0_87, %c0_88] : memref<2x1x96xf32, #tpu.memory_space<vmem>>, vector<1x1x96xf32>
    %205 = vector.shape_cast %204 : vector<1x1x96xf32> to vector<1x96xf32>
    %206 = vector.broadcast %205 : vector<1x96xf32> to vector<16x96xf32>
    %207 = arith.addf %203, %206 : vector<16x96xf32>
    %208 = arith.truncf %207 : vector<16x96xf32> to vector<16x96xbf16>
    %209 = vector.shape_cast %208 : vector<16x96xbf16> to vector<2x8x96xbf16>
    %210 = vector.extract_strided_slice %209 {offsets = [0, 0, 0], sizes = [2, 8, 8], strides = [1, 1, 1]} : vector<2x8x96xbf16> to vector<2x8x8xbf16>
    %211 = vector.extract_strided_slice %209 {offsets = [0, 0, 32], sizes = [2, 8, 8], strides = [1, 1, 1]} : vector<2x8x96xbf16> to vector<2x8x8xbf16>
    %212 = vector.extract_strided_slice %209 {offsets = [0, 0, 64], sizes = [2, 8, 8], strides = [1, 1, 1]} : vector<2x8x96xbf16> to vector<2x8x8xbf16>
    "tpu.trace_start"() <{level = 10 : i32, message = "bqd,bkd->bqk"}> : () -> ()
    %cst_89 = arith.constant dense<0.000000e+00> : vector<2x8x8xf32>
    %213 = tpu.matmul %210, %211, %cst_89 {dimension_numbers = #tpu.dot_dimension_numbers<[2], [2], [1], [1], [0, 0, 0, 1, 1, 1], [0], [0]>} : vector<2x8x8xbf16>, vector<2x8x8xbf16>, vector<2x8x8xf32> -> vector<2x8x8xf32>
    "tpu.trace_stop"() : () -> ()
    %214 = arith.addf %213, %28 : vector<2x8x8xf32>
    %cst_90 = arith.constant dense<0xFF800000> : vector<2x8xf32>
    %215 = vector.multi_reduction <maximumf>, %214, %cst_90 [2] : vector<2x8x8xf32> to vector<2x8xf32>
    %216 = vector.shape_cast %215 : vector<2x8xf32> to vector<2x8x1xf32>
    %217 = vector.broadcast %216 : vector<2x8x1xf32> to vector<2x8x8xf32>
    %218 = arith.subf %214, %217 : vector<2x8x8xf32>
    %219 = math.exp %218 : vector<2x8x8xf32>
    %cst_91 = arith.constant dense<0.000000e+00> : vector<2x8xf32>
    %220 = vector.multi_reduction <add>, %219, %cst_91 [2] : vector<2x8x8xf32> to vector<2x8xf32>
    %221 = vector.shape_cast %220 : vector<2x8xf32> to vector<2x8x1xf32>
    %222 = tpu.reciprocal %221 {approx = true} : vector<2x8x1xf32> -> vector<2x8x1xf32>
    %223 = vector.broadcast %222 : vector<2x8x1xf32> to vector<2x8x8xf32>
    %224 = arith.mulf %219, %223 : vector<2x8x8xf32>
    %225 = arith.truncf %224 : vector<2x8x8xf32> to vector<2x8x8xbf16>
    "tpu.trace_start"() <{level = 10 : i32, message = "bqk,bkd->bqd"}> : () -> ()
    %cst_92 = arith.constant dense<0.000000e+00> : vector<2x8x8xf32>
    %226 = tpu.matmul %225, %212, %cst_92 {dimension_numbers = #tpu.dot_dimension_numbers<[2], [1], [1], [2], [0, 0, 0, 1, 1, 2], [0], [0]>} : vector<2x8x8xbf16>, vector<2x8x8xbf16>, vector<2x8x8xf32> -> vector<2x8x8xf32>
    "tpu.trace_stop"() : () -> ()
    %227 = vector.extract_strided_slice %209 {offsets = [0, 0, 8], sizes = [2, 8, 8], strides = [1, 1, 1]} : vector<2x8x96xbf16> to vector<2x8x8xbf16>
    %228 = vector.extract_strided_slice %209 {offsets = [0, 0, 40], sizes = [2, 8, 8], strides = [1, 1, 1]} : vector<2x8x96xbf16> to vector<2x8x8xbf16>
    %229 = vector.extract_strided_slice %209 {offsets = [0, 0, 72], sizes = [2, 8, 8], strides = [1, 1, 1]} : vector<2x8x96xbf16> to vector<2x8x8xbf16>
    "tpu.trace_start"() <{level = 10 : i32, message = "bqd,bkd->bqk"}> : () -> ()
    %cst_93 = arith.constant dense<0.000000e+00> : vector<2x8x8xf32>
    %230 = tpu.matmul %227, %228, %cst_93 {dimension_numbers = #tpu.dot_dimension_numbers<[2], [2], [1], [1], [0, 0, 0, 1, 1, 1], [0], [0]>} : vector<2x8x8xbf16>, vector<2x8x8xbf16>, vector<2x8x8xf32> -> vector<2x8x8xf32>
    "tpu.trace_stop"() : () -> ()
    %231 = arith.addf %230, %28 : vector<2x8x8xf32>
    %cst_94 = arith.constant dense<0xFF800000> : vector<2x8xf32>
    %232 = vector.multi_reduction <maximumf>, %231, %cst_94 [2] : vector<2x8x8xf32> to vector<2x8xf32>
    %233 = vector.shape_cast %232 : vector<2x8xf32> to vector<2x8x1xf32>
    %234 = vector.broadcast %233 : vector<2x8x1xf32> to vector<2x8x8xf32>
    %235 = arith.subf %231, %234 : vector<2x8x8xf32>
    %236 = math.exp %235 : vector<2x8x8xf32>
    %cst_95 = arith.constant dense<0.000000e+00> : vector<2x8xf32>
    %237 = vector.multi_reduction <add>, %236, %cst_95 [2] : vector<2x8x8xf32> to vector<2x8xf32>
    %238 = vector.shape_cast %237 : vector<2x8xf32> to vector<2x8x1xf32>
    %239 = tpu.reciprocal %238 {approx = true} : vector<2x8x1xf32> -> vector<2x8x1xf32>
    %240 = vector.broadcast %239 : vector<2x8x1xf32> to vector<2x8x8xf32>
    %241 = arith.mulf %236, %240 : vector<2x8x8xf32>
    %242 = arith.truncf %241 : vector<2x8x8xf32> to vector<2x8x8xbf16>
    "tpu.trace_start"() <{level = 10 : i32, message = "bqk,bkd->bqd"}> : () -> ()
    %cst_96 = arith.constant dense<0.000000e+00> : vector<2x8x8xf32>
    %243 = tpu.matmul %242, %229, %cst_96 {dimension_numbers = #tpu.dot_dimension_numbers<[2], [1], [1], [2], [0, 0, 0, 1, 1, 2], [0], [0]>} : vector<2x8x8xbf16>, vector<2x8x8xbf16>, vector<2x8x8xf32> -> vector<2x8x8xf32>
    "tpu.trace_stop"() : () -> ()
    %244 = vector.extract_strided_slice %209 {offsets = [0, 0, 16], sizes = [2, 8, 8], strides = [1, 1, 1]} : vector<2x8x96xbf16> to vector<2x8x8xbf16>
    %245 = vector.extract_strided_slice %209 {offsets = [0, 0, 48], sizes = [2, 8, 8], strides = [1, 1, 1]} : vector<2x8x96xbf16> to vector<2x8x8xbf16>
    %246 = vector.extract_strided_slice %209 {offsets = [0, 0, 80], sizes = [2, 8, 8], strides = [1, 1, 1]} : vector<2x8x96xbf16> to vector<2x8x8xbf16>
    "tpu.trace_start"() <{level = 10 : i32, message = "bqd,bkd->bqk"}> : () -> ()
    %cst_97 = arith.constant dense<0.000000e+00> : vector<2x8x8xf32>
    %247 = tpu.matmul %244, %245, %cst_97 {dimension_numbers = #tpu.dot_dimension_numbers<[2], [2], [1], [1], [0, 0, 0, 1, 1, 1], [0], [0]>} : vector<2x8x8xbf16>, vector<2x8x8xbf16>, vector<2x8x8xf32> -> vector<2x8x8xf32>
    "tpu.trace_stop"() : () -> ()
    %248 = arith.addf %247, %28 : vector<2x8x8xf32>
    %cst_98 = arith.constant dense<0xFF800000> : vector<2x8xf32>
    %249 = vector.multi_reduction <maximumf>, %248, %cst_98 [2] : vector<2x8x8xf32> to vector<2x8xf32>
    %250 = vector.shape_cast %249 : vector<2x8xf32> to vector<2x8x1xf32>
    %251 = vector.broadcast %250 : vector<2x8x1xf32> to vector<2x8x8xf32>
    %252 = arith.subf %248, %251 : vector<2x8x8xf32>
    %253 = math.exp %252 : vector<2x8x8xf32>
    %cst_99 = arith.constant dense<0.000000e+00> : vector<2x8xf32>
    %254 = vector.multi_reduction <add>, %253, %cst_99 [2] : vector<2x8x8xf32> to vector<2x8xf32>
    %255 = vector.shape_cast %254 : vector<2x8xf32> to vector<2x8x1xf32>
    %256 = tpu.reciprocal %255 {approx = true} : vector<2x8x1xf32> -> vector<2x8x1xf32>
    %257 = vector.broadcast %256 : vector<2x8x1xf32> to vector<2x8x8xf32>
    %258 = arith.mulf %253, %257 : vector<2x8x8xf32>
    %259 = arith.truncf %258 : vector<2x8x8xf32> to vector<2x8x8xbf16>
    "tpu.trace_start"() <{level = 10 : i32, message = "bqk,bkd->bqd"}> : () -> ()
    %cst_100 = arith.constant dense<0.000000e+00> : vector<2x8x8xf32>
    %260 = tpu.matmul %259, %246, %cst_100 {dimension_numbers = #tpu.dot_dimension_numbers<[2], [1], [1], [2], [0, 0, 0, 1, 1, 2], [0], [0]>} : vector<2x8x8xbf16>, vector<2x8x8xbf16>, vector<2x8x8xf32> -> vector<2x8x8xf32>
    "tpu.trace_stop"() : () -> ()
    %261 = vector.extract_strided_slice %209 {offsets = [0, 0, 24], sizes = [2, 8, 8], strides = [1, 1, 1]} : vector<2x8x96xbf16> to vector<2x8x8xbf16>
    %262 = vector.extract_strided_slice %209 {offsets = [0, 0, 56], sizes = [2, 8, 8], strides = [1, 1, 1]} : vector<2x8x96xbf16> to vector<2x8x8xbf16>
    %263 = vector.extract_strided_slice %209 {offsets = [0, 0, 88], sizes = [2, 8, 8], strides = [1, 1, 1]} : vector<2x8x96xbf16> to vector<2x8x8xbf16>
    "tpu.trace_start"() <{level = 10 : i32, message = "bqd,bkd->bqk"}> : () -> ()
    %cst_101 = arith.constant dense<0.000000e+00> : vector<2x8x8xf32>
    %264 = tpu.matmul %261, %262, %cst_101 {dimension_numbers = #tpu.dot_dimension_numbers<[2], [2], [1], [1], [0, 0, 0, 1, 1, 1], [0], [0]>} : vector<2x8x8xbf16>, vector<2x8x8xbf16>, vector<2x8x8xf32> -> vector<2x8x8xf32>
    "tpu.trace_stop"() : () -> ()
    %265 = arith.addf %264, %28 : vector<2x8x8xf32>
    %cst_102 = arith.constant dense<0xFF800000> : vector<2x8xf32>
    %266 = vector.multi_reduction <maximumf>, %265, %cst_102 [2] : vector<2x8x8xf32> to vector<2x8xf32>
    %267 = vector.shape_cast %266 : vector<2x8xf32> to vector<2x8x1xf32>
    %268 = vector.broadcast %267 : vector<2x8x1xf32> to vector<2x8x8xf32>
    %269 = arith.subf %265, %268 : vector<2x8x8xf32>
    %270 = math.exp %269 : vector<2x8x8xf32>
    %cst_103 = arith.constant dense<0.000000e+00> : vector<2x8xf32>
    %271 = vector.multi_reduction <add>, %270, %cst_103 [2] : vector<2x8x8xf32> to vector<2x8xf32>
    %272 = vector.shape_cast %271 : vector<2x8xf32> to vector<2x8x1xf32>
    %273 = tpu.reciprocal %272 {approx = true} : vector<2x8x1xf32> -> vector<2x8x1xf32>
    %274 = vector.broadcast %273 : vector<2x8x1xf32> to vector<2x8x8xf32>
    %275 = arith.mulf %270, %274 : vector<2x8x8xf32>
    %276 = arith.truncf %275 : vector<2x8x8xf32> to vector<2x8x8xbf16>
    "tpu.trace_start"() <{level = 10 : i32, message = "bqk,bkd->bqd"}> : () -> ()
    %cst_104 = arith.constant dense<0.000000e+00> : vector<2x8x8xf32>
    %277 = tpu.matmul %276, %263, %cst_104 {dimension_numbers = #tpu.dot_dimension_numbers<[2], [1], [1], [2], [0, 0, 0, 1, 1, 2], [0], [0]>} : vector<2x8x8xbf16>, vector<2x8x8xbf16>, vector<2x8x8xf32> -> vector<2x8x8xf32>
    "tpu.trace_stop"() : () -> ()
    %278 = tpu.concatenate %226, %243, %260, %277 in 2 : vector<2x8x8xf32>, vector<2x8x8xf32>, vector<2x8x8xf32>, vector<2x8x8xf32> -> vector<2x8x32xf32>
    %279 = vector.shape_cast %278 : vector<2x8x32xf32> to vector<16x32xf32>
    %280 = arith.truncf %279 : vector<16x32xf32> to vector<16x32xbf16>
    %c1_105 = arith.constant 1 : index
    %c0_106 = arith.constant 0 : index
    %c0_107 = arith.constant 0 : index
    %281 = vector.load %arg6[%c1_105, %c0_106, %c0_107] : memref<2x32x32xbf16, #tpu.memory_space<vmem>>, vector<1x32x32xbf16>
    %282 = vector.shape_cast %281 : vector<1x32x32xbf16> to vector<32x32xbf16>
    %cst_108 = arith.constant dense<0.000000e+00> : vector<16x32xf32>
    %283 = tpu.matmul %280, %282, %cst_108 {dimension_numbers = #tpu.dot_dimension_numbers<[1], [0], [0], [1], [0, 0, 1, 1], [], []>} : vector<16x32xbf16>, vector<32x32xbf16>, vector<16x32xf32> -> vector<16x32xf32>
    %c1_109 = arith.constant 1 : index
    %c0_110 = arith.constant 0 : index
    %c0_111 = arith.constant 0 : index
    %284 = vector.load %arg7[%c1_109, %c0_110, %c0_111] : memref<2x1x32xf32, #tpu.memory_space<vmem>>, vector<1x1x32xf32>
    %285 = vector.shape_cast %284 : vector<1x1x32xf32> to vector<1x32xf32>
    %286 = vector.broadcast %285 : vector<1x32xf32> to vector<16x32xf32>
    %287 = arith.addf %283, %286 : vector<16x32xf32>
    %288 = arith.addf %199, %287 : vector<16x32xf32>
    %c1_112 = arith.constant 1 : index
    %c0_113 = arith.constant 0 : index
    %c0_114 = arith.constant 0 : index
    %289 = vector.load %arg8[%c1_112, %c0_113, %c0_114] : memref<2x1x32xf32, #tpu.memory_space<vmem>>, vector<1x1x32xf32>
    %290 = vector.shape_cast %289 : vector<1x1x32xf32> to vector<1x32xf32>
    %c1_115 = arith.constant 1 : index
    %c0_116 = arith.constant 0 : index
    %c0_117 = arith.constant 0 : index
    %291 = vector.load %arg9[%c1_115, %c0_116, %c0_117] : memref<2x1x32xf32, #tpu.memory_space<vmem>>, vector<1x1x32xf32>
    %292 = vector.shape_cast %291 : vector<1x1x32xf32> to vector<1x32xf32>
    %cst_118 = arith.constant dense<0.000000e+00> : vector<16xf32>
    %293 = vector.multi_reduction <add>, %288, %cst_118 [1] : vector<16x32xf32> to vector<16xf32>
    %294 = vector.shape_cast %293 : vector<16xf32> to vector<16x1xf32>
    %cst_119 = arith.constant 3.200000e+01 : f32
    %295 = vector.broadcast %cst_119 : f32 to vector<16x1xf32>
    %296 = arith.divf %294, %295 : vector<16x1xf32>
    %297 = vector.broadcast %296 : vector<16x1xf32> to vector<16x32xf32>
    %298 = arith.subf %288, %297 : vector<16x32xf32>
    %299 = arith.mulf %298, %298 : vector<16x32xf32>
    %cst_120 = arith.constant dense<0.000000e+00> : vector<16xf32>
    %300 = vector.multi_reduction <add>, %299, %cst_120 [1] : vector<16x32xf32> to vector<16xf32>
    %301 = vector.shape_cast %300 : vector<16xf32> to vector<16x1xf32>
    %cst_121 = arith.constant 3.200000e+01 : f32
    %302 = vector.broadcast %cst_121 : f32 to vector<16x1xf32>
    %303 = arith.divf %301, %302 : vector<16x1xf32>
    %304 = vector.broadcast %296 : vector<16x1xf32> to vector<16x32xf32>
    %305 = arith.subf %288, %304 : vector<16x32xf32>
    %cst_122 = arith.constant 9.99999996E-13 : f32
    %306 = vector.broadcast %cst_122 : f32 to vector<16x1xf32>
    %307 = arith.addf %303, %306 : vector<16x1xf32>
    %308 = math.rsqrt %307 : vector<16x1xf32>
    %309 = vector.broadcast %308 : vector<16x1xf32> to vector<16x32xf32>
    %310 = arith.mulf %305, %309 : vector<16x32xf32>
    %311 = vector.broadcast %290 : vector<1x32xf32> to vector<16x32xf32>
    %312 = arith.mulf %310, %311 : vector<16x32xf32>
    %313 = vector.broadcast %292 : vector<1x32xf32> to vector<16x32xf32>
    %314 = arith.addf %312, %313 : vector<16x32xf32>
    %315 = arith.truncf %314 : vector<16x32xf32> to vector<16x32xbf16>
    %c1_123 = arith.constant 1 : index
    %c0_124 = arith.constant 0 : index
    %c0_125 = arith.constant 0 : index
    %316 = vector.load %arg10[%c1_123, %c0_124, %c0_125] : memref<2x32x64xbf16, #tpu.memory_space<vmem>>, vector<1x32x64xbf16>
    %317 = vector.shape_cast %316 : vector<1x32x64xbf16> to vector<32x64xbf16>
    %cst_126 = arith.constant dense<0.000000e+00> : vector<16x64xf32>
    %318 = tpu.matmul %315, %317, %cst_126 {dimension_numbers = #tpu.dot_dimension_numbers<[1], [0], [0], [1], [0, 0, 1, 1], [], []>} : vector<16x32xbf16>, vector<32x64xbf16>, vector<16x64xf32> -> vector<16x64xf32>
    %c1_127 = arith.constant 1 : index
    %c0_128 = arith.constant 0 : index
    %c0_129 = arith.constant 0 : index
    %319 = vector.load %arg11[%c1_127, %c0_128, %c0_129] : memref<2x1x64xf32, #tpu.memory_space<vmem>>, vector<1x1x64xf32>
    %320 = vector.shape_cast %319 : vector<1x1x64xf32> to vector<1x64xf32>
    %321 = vector.broadcast %320 : vector<1x64xf32> to vector<16x64xf32>
    %322 = arith.addf %318, %321 : vector<16x64xf32>
    %cst_130 = arith.constant 5.000000e-01 : f32
    %323 = vector.broadcast %cst_130 : f32 to vector<16x64xf32>
    %324 = arith.mulf %323, %322 : vector<16x64xf32>
    %cst_131 = arith.constant 4.471500e-02 : f32
    %325 = vector.broadcast %cst_131 : f32 to vector<16x64xf32>
    %326 = arith.mulf %325, %322 : vector<16x64xf32>
    %327 = arith.mulf %326, %322 : vector<16x64xf32>
    %328 = arith.mulf %327, %322 : vector<16x64xf32>
    %329 = arith.addf %322, %328 : vector<16x64xf32>
    %cst_132 = arith.constant 0.797884583 : f32
    %330 = vector.broadcast %cst_132 : f32 to vector<16x64xf32>
    %331 = arith.mulf %330, %329 : vector<16x64xf32>
    %332 = math.tanh %331 : vector<16x64xf32>
    %cst_133 = arith.constant 1.000000e+00 : f32
    %333 = vector.broadcast %cst_133 : f32 to vector<16x64xf32>
    %334 = arith.addf %333, %332 : vector<16x64xf32>
    %335 = arith.mulf %324, %334 : vector<16x64xf32>
    %336 = arith.truncf %335 : vector<16x64xf32> to vector<16x64xbf16>
    %c1_134 = arith.constant 1 : index
    %c0_135 = arith.constant 0 : index
    %c0_136 = arith.constant 0 : index
    %337 = vector.load %arg12[%c1_134, %c0_135, %c0_136] : memref<2x64x32xbf16, #tpu.memory_space<vmem>>, vector<1x64x32xbf16>
    %338 = vector.shape_cast %337 : vector<1x64x32xbf16> to vector<64x32xbf16>
    %cst_137 = arith.constant dense<0.000000e+00> : vector<16x32xf32>
    %339 = tpu.matmul %336, %338, %cst_137 {dimension_numbers = #tpu.dot_dimension_numbers<[1], [0], [0], [1], [0, 0, 1, 1], [], []>} : vector<16x64xbf16>, vector<64x32xbf16>, vector<16x32xf32> -> vector<16x32xf32>
    %c1_138 = arith.constant 1 : index
    %c0_139 = arith.constant 0 : index
    %c0_140 = arith.constant 0 : index
    %340 = vector.load %arg13[%c1_138, %c0_139, %c0_140] : memref<2x1x32xf32, #tpu.memory_space<vmem>>, vector<1x1x32xf32>
    %341 = vector.shape_cast %340 : vector<1x1x32xf32> to vector<1x32xf32>
    %342 = vector.broadcast %341 : vector<1x32xf32> to vector<16x32xf32>
    %343 = arith.addf %339, %342 : vector<16x32xf32>
    %344 = arith.addf %314, %343 : vector<16x32xf32>
    %c1_141 = arith.constant 1 : index
    %c0_142 = arith.constant 0 : index
    %c0_143 = arith.constant 0 : index
    %345 = vector.load %arg14[%c1_141, %c0_142, %c0_143] : memref<2x1x32xf32, #tpu.memory_space<vmem>>, vector<1x1x32xf32>
    %346 = vector.shape_cast %345 : vector<1x1x32xf32> to vector<1x32xf32>
    %c1_144 = arith.constant 1 : index
    %c0_145 = arith.constant 0 : index
    %c0_146 = arith.constant 0 : index
    %347 = vector.load %arg15[%c1_144, %c0_145, %c0_146] : memref<2x1x32xf32, #tpu.memory_space<vmem>>, vector<1x1x32xf32>
    %348 = vector.shape_cast %347 : vector<1x1x32xf32> to vector<1x32xf32>
    %cst_147 = arith.constant dense<0.000000e+00> : vector<16xf32>
    %349 = vector.multi_reduction <add>, %344, %cst_147 [1] : vector<16x32xf32> to vector<16xf32>
    %350 = vector.shape_cast %349 : vector<16xf32> to vector<16x1xf32>
    %cst_148 = arith.constant 3.200000e+01 : f32
    %351 = vector.broadcast %cst_148 : f32 to vector<16x1xf32>
    %352 = arith.divf %350, %351 : vector<16x1xf32>
    %353 = vector.broadcast %352 : vector<16x1xf32> to vector<16x32xf32>
    %354 = arith.subf %344, %353 : vector<16x32xf32>
    %355 = arith.mulf %354, %354 : vector<16x32xf32>
    %cst_149 = arith.constant dense<0.000000e+00> : vector<16xf32>
    %356 = vector.multi_reduction <add>, %355, %cst_149 [1] : vector<16x32xf32> to vector<16xf32>
    %357 = vector.shape_cast %356 : vector<16xf32> to vector<16x1xf32>
    %cst_150 = arith.constant 3.200000e+01 : f32
    %358 = vector.broadcast %cst_150 : f32 to vector<16x1xf32>
    %359 = arith.divf %357, %358 : vector<16x1xf32>
    %360 = vector.broadcast %352 : vector<16x1xf32> to vector<16x32xf32>
    %361 = arith.subf %344, %360 : vector<16x32xf32>
    %cst_151 = arith.constant 9.99999996E-13 : f32
    %362 = vector.broadcast %cst_151 : f32 to vector<16x1xf32>
    %363 = arith.addf %359, %362 : vector<16x1xf32>
    %364 = math.rsqrt %363 : vector<16x1xf32>
    %365 = vector.broadcast %364 : vector<16x1xf32> to vector<16x32xf32>
    %366 = arith.mulf %361, %365 : vector<16x32xf32>
    %367 = vector.broadcast %346 : vector<1x32xf32> to vector<16x32xf32>
    %368 = arith.mulf %366, %367 : vector<16x32xf32>
    %369 = vector.broadcast %348 : vector<1x32xf32> to vector<16x32xf32>
    %370 = arith.addf %368, %369 : vector<16x32xf32>
    %371 = vector.shape_cast %370 : vector<16x32xf32> to vector<2x8x32xf32>
    %372 = vector.extract_strided_slice %371 {offsets = [0, 0, 0], sizes = [2, 1, 32], strides = [1, 1, 1]} : vector<2x8x32xf32> to vector<2x1x32xf32>
    %373 = vector.shape_cast %372 : vector<2x1x32xf32> to vector<2x32xf32>
    %374 = arith.truncf %373 : vector<2x32xf32> to vector<2x32xbf16>
    %c0_152 = arith.constant 0 : index
    %c0_153 = arith.constant 0 : index
    %375 = vector.load %arg16[%c0_152, %c0_153] : memref<32x3xbf16, #tpu.memory_space<vmem>>, vector<32x3xbf16>
    %cst_154 = arith.constant dense<0.000000e+00> : vector<2x3xf32>
    %376 = tpu.matmul %374, %375, %cst_154 {dimension_numbers = #tpu.dot_dimension_numbers<[1], [0], [0], [1], [0, 0, 1, 1], [], []>} : vector<2x32xbf16>, vector<32x3xbf16>, vector<2x3xf32> -> vector<2x3xf32>
    %c0_155 = arith.constant 0 : index
    %c0_156 = arith.constant 0 : index
    %377 = vector.load %arg17[%c0_155, %c0_156] : memref<1x3xf32, #tpu.memory_space<vmem>>, vector<1x3xf32>
    %378 = vector.broadcast %377 : vector<1x3xf32> to vector<2x3xf32>
    %379 = arith.addf %376, %378 : vector<2x3xf32>
    %c0_157 = arith.constant 0 : index
    %c0_158 = arith.constant 0 : index
    %380 = vector.load %arg18[%c0_157, %c0_158] : memref<2x3xf32, #tpu.memory_space<vmem>>, vector<2x3xf32>
    tpu.vector_store %arg18[%c0_157, %c0_158], %379 {strides = array<i32>} : memref<2x3xf32, #tpu.memory_space<vmem>>, vector<2x3xf32>,
    return
  }
}

</mosaic_0001>

<llo_original>
// kernel: spam_classifier_forward.1
$region0: #{spam_classifier_forward.1}
  #allocation0 [shape = 'u32[]', space=smem, size = 0x4, offset = 0x4, fixed_abs, tag = 'smem constant byte address 0x4 - core index']
  #allocation1 [shape = 'u32[144,128]{1,0:T(1,128)}', space=vmem, size = 0x12000, scoped, tag = 'internal scratch']
  %s0 = inlined_call_operand.vmem [shape: f32[2,8,32], index: 0, kind: input, shape index: {}]
  %s1 = inlined_call_operand.vmem [shape: f32[2,1,8], index: 1, kind: input, shape index: {}]
  %s2 = inlined_call_operand.vmem [shape: f32[1,32], index: 2, kind: input, shape index: {}]
  %s3 = inlined_call_operand.vmem [shape: f32[1,32], index: 3, kind: input, shape index: {}]
  %s4 = inlined_call_operand.vmem [shape: bf16[2,32,96], index: 4, kind: input, shape index: {}]
  %s5 = inlined_call_operand.vmem [shape: f32[2,1,96], index: 5, kind: input, shape index: {}]
  %s6 = inlined_call_operand.vmem [shape: bf16[2,32,32], index: 6, kind: input, shape index: {}]
  %s7 = inlined_call_operand.vmem [shape: f32[2,1,32], index: 7, kind: input, shape index: {}]
  %s8 = inlined_call_operand.vmem [shape: f32[2,1,32], index: 8, kind: input, shape index: {}]
  %s9 = inlined_call_operand.vmem [shape: f32[2,1,32], index: 9, kind: input, shape index: {}]
  %s10 = inlined_call_operand.vmem [shape: bf16[2,32,64], index: 10, kind: input, shape index: {}]
  %s11 = inlined_call_operand.vmem [shape: f32[2,1,64], index: 11, kind: input, shape index: {}]
  %s12 = inlined_call_operand.vmem [shape: bf16[2,64,32], index: 12, kind: input, shape index: {}]
  %s13 = inlined_call_operand.vmem [shape: f32[2,1,32], index: 13, kind: input, shape index: {}]
  %s14 = inlined_call_operand.vmem [shape: f32[2,1,32], index: 14, kind: input, shape index: {}]
  %s15 = inlined_call_operand.vmem [shape: f32[2,1,32], index: 15, kind: input, shape index: {}]
  %s16 = inlined_call_operand.vmem [shape: bf16[32,3], index: 16, kind: input, shape index: {}]
  %s17 = inlined_call_operand.vmem [shape: f32[1,3], index: 17, kind: input, shape index: {}]
  %s18 = inlined_call_operand.hbm [shape: f32[2,3], index: 18, kind: output, shape index: {}]
  %s19 = sld [smem:[#allocation0]]
  $region82: #{spam_classifier_forward.1} parent=0
    _
  %s21 = ssub.s32 1, %s19
  %s22 = scalar_select 0, %s21, %s19
  $region1: #{spam_classifier_forward.1} parent=0
    #allocation2 [shape = 'u8[1024]{0}', space=vmem, size = 0x400, scoped, tag = 'output window, operand 0, single buffered']
    #allocation3 [shape = 's32[1]{0}', space=sflag, size = 0x4, scoped, tag = 'scoped memory for spam_classifier_forward.1']
    %23 = vsyncpa [#allocation3], 0
    // Predicated region
    $region2: #{spam_classifier_forward.1} parent=1 // pred_check
      _
    $region3: #{spam_classifier_forward.1} parent=1 // pred_check_branch
      %25 = sbr.rel (0) target = $region5
    $region4: #{spam_classifier_forward.1} parent=1 // pred_region
      _
    $region5: #{spam_classifier_forward.1} parent=1 // pred_fallthru
      _
    // Predicated region
    $region6: #{spam_classifier_forward.1} parent=1 // pred_check
      _
    $region7: #{spam_classifier_forward.1} parent=1 // pred_check_branch
      %27 = sbr.rel (0) target = $region9
    $region8: #{spam_classifier_forward.1} parent=1 // pred_region
      _
    $region9: #{spam_classifier_forward.1} parent=1 // pred_fallthru
      _
    // Predicated region
    $region10: #{spam_classifier_forward.1} parent=1 // pred_check
      _
    $region11: #{spam_classifier_forward.1} parent=1 // pred_check_branch
      %29 = sbr.rel (0) target = $region13
    $region12: #{spam_classifier_forward.1} parent=1 // pred_region
      _
    $region13: #{spam_classifier_forward.1} parent=1 // pred_fallthru
      _
    // Predicated region
    $region14: #{spam_classifier_forward.1} parent=1 // pred_check
      _
    $region15: #{spam_classifier_forward.1} parent=1 // pred_check_branch
      %31 = sbr.rel (0) target = $region17
    $region16: #{spam_classifier_forward.1} parent=1 // pred_region
      _
    $region17: #{spam_classifier_forward.1} parent=1 // pred_fallthru
      _
    // Predicated region
    $region18: #{spam_classifier_forward.1} parent=1 // pred_check
      _
    $region19: #{spam_classifier_forward.1} parent=1 // pred_check_branch
      %33 = sbr.rel (0) target = $region21
    $region20: #{spam_classifier_forward.1} parent=1 // pred_region
      _
    $region21: #{spam_classifier_forward.1} parent=1 // pred_fallthru
      _
    // Predicated region
    $region22: #{spam_classifier_forward.1} parent=1 // pred_check
      _
    $region23: #{spam_classifier_forward.1} parent=1 // pred_check_branch
      %35 = sbr.rel (0) target = $region25
    $region24: #{spam_classifier_forward.1} parent=1 // pred_region
      _
    $region25: #{spam_classifier_forward.1} parent=1 // pred_fallthru
      _
    // Predicated region
    $region26: #{spam_classifier_forward.1} parent=1 // pred_check
      _
    $region27: #{spam_classifier_forward.1} parent=1 // pred_check_branch
      %37 = sbr.rel (0) target = $region29
    $region28: #{spam_classifier_forward.1} parent=1 // pred_region
      _
    $region29: #{spam_classifier_forward.1} parent=1 // pred_fallthru
      _
    // Predicated region
    $region30: #{spam_classifier_forward.1} parent=1 // pred_check
      _
    $region31: #{spam_classifier_forward.1} parent=1 // pred_check_branch
      %39 = sbr.rel (0) target = $region33
    $region32: #{spam_classifier_forward.1} parent=1 // pred_region
      _
    $region33: #{spam_classifier_forward.1} parent=1 // pred_fallthru
      _
    // Predicated region
    $region34: #{spam_classifier_forward.1} parent=1 // pred_check
      _
    $region35: #{spam_classifier_forward.1} parent=1 // pred_check_branch
      %41 = sbr.rel (0) target = $region37
    $region36: #{spam_classifier_forward.1} parent=1 // pred_region
      _
    $region37: #{spam_classifier_forward.1} parent=1 // pred_fallthru
      _
    // Predicated region
    $region38: #{spam_classifier_forward.1} parent=1 // pred_check
      _
    $region39: #{spam_classifier_forward.1} parent=1 // pred_check_branch
      %43 = sbr.rel (0) target = $region41
    $region40: #{spam_classifier_forward.1} parent=1 // pred_region
      _
    $region41: #{spam_classifier_forward.1} parent=1 // pred_fallthru
      _
    // Predicated region
    $region42: #{spam_classifier_forward.1} parent=1 // pred_check
      _
    $region43: #{spam_classifier_forward.1} parent=1 // pred_check_branch
      %45 = sbr.rel (0) target = $region45
    $region44: #{spam_classifier_forward.1} parent=1 // pred_region
      _
    $region45: #{spam_classifier_forward.1} parent=1 // pred_fallthru
      _
    // Predicated region
    $region46: #{spam_classifier_forward.1} parent=1 // pred_check
      _
    $region47: #{spam_classifier_forward.1} parent=1 // pred_check_branch
      %47 = sbr.rel (0) target = $region49
    $region48: #{spam_classifier_forward.1} parent=1 // pred_region
      _
    $region49: #{spam_classifier_forward.1} parent=1 // pred_fallthru
      _
    // Predicated region
    $region50: #{spam_classifier_forward.1} parent=1 // pred_check
      _
    $region51: #{spam_classifier_forward.1} parent=1 // pred_check_branch
      %49 = sbr.rel (0) target = $region53
    $region52: #{spam_classifier_forward.1} parent=1 // pred_region
      _
    $region53: #{spam_classifier_forward.1} parent=1 // pred_fallthru
      _
    // Predicated region
    $region54: #{spam_classifier_forward.1} parent=1 // pred_check
      _
    $region55: #{spam_classifier_forward.1} parent=1 // pred_check_branch
      %51 = sbr.rel (0) target = $region57
    $region56: #{spam_classifier_forward.1} parent=1 // pred_region
      _
    $region57: #{spam_classifier_forward.1} parent=1 // pred_fallthru
      _
    // Predicated region
    $region58: #{spam_classifier_forward.1} parent=1 // pred_check
      _
    $region59: #{spam_classifier_forward.1} parent=1 // pred_check_branch
      %53 = sbr.rel (0) target = $region61
    $region60: #{spam_classifier_forward.1} parent=1 // pred_region
      _
    $region61: #{spam_classifier_forward.1} parent=1 // pred_fallthru
      _
    // Predicated region
    $region62: #{spam_classifier_forward.1} parent=1 // pred_check
      _
    $region63: #{spam_classifier_forward.1} parent=1 // pred_check_branch
      %55 = sbr.rel (0) target = $region65
    $region64: #{spam_classifier_forward.1} parent=1 // pred_region
      _
    $region65: #{spam_classifier_forward.1} parent=1 // pred_fallthru
      _
    // Predicated region
    $region66: #{spam_classifier_forward.1} parent=1 // pred_check
      _
    $region67: #{spam_classifier_forward.1} parent=1 // pred_check_branch
      %57 = sbr.rel (0) target = $region69
    $region68: #{spam_classifier_forward.1} parent=1 // pred_region
      _
    $region69: #{spam_classifier_forward.1} parent=1 // pred_fallthru
      _
    // Predicated region
    $region70: #{spam_classifier_forward.1} parent=1 // pred_check
      _
    $region71: #{spam_classifier_forward.1} parent=1 // pred_check_branch
      %59 = sbr.rel (0) target = $region73
    $region72: #{spam_classifier_forward.1} parent=1 // pred_region
      _
    $region73: #{spam_classifier_forward.1} parent=1 // pred_fallthru
      _
    %v61 = vld [vmem:[%s0] sm:$0xff]
    %v62 = vld [vmem:[%s0 + $0x8] sm:$0xff]
    %v63 = vld [vmem:[%s2] sm:$0x1]
    %v64 = vld [vmem:[%s3] sm:$0x1]
    %vm65 = vcmask 261120
    %v66 = vsel %vm65, %v61, 0.0
    %67 = vadd.xlane.f32.xlu0 %v66
    %v68 = vpop.xlane.xlu0 %67
    %v69 = vsel %vm65, %v62, 0.0
    %70 = vadd.xlane.f32.xlu0 %v69
    %v71 = vpop.xlane.xlu0 %70
    %v72 = vrcp.pop 32.0
    %v73 = vmul.f32 %v68, %v72
    %v74 = vmul.f32 %v71, %v72
    %v75 = vsub.f32 %v61, %v73
    %v76 = vsub.f32 %v62, %v74
    %v77 = vmul.f32 %v75, %v75
    %v78 = vmul.f32 %v76, %v76
    %v79 = vsel %vm65, %v77, 0.0
    %80 = vadd.xlane.f32.xlu0 %v79
    %v81 = vpop.xlane.xlu0 %80
    %v82 = vsel %vm65, %v78, 0.0
    %83 = vadd.xlane.f32.xlu0 %v82
    %v84 = vpop.xlane.xlu0 %83
    %v85 = vmul.f32 %v81, %v72
    %v86 = vmul.f32 %v84, %v72
    %v87 = vadd.f32 %v85, 1e-12
    %v88 = vadd.f32 %v86, 1e-12
    %v89 = vrsqrt.pop %v87
    %v90 = vrsqrt.pop %v88
    %v91 = vmul.f32 %v75, %v89
    %v92 = vmul.f32 %v76, %v90
    %v94 = vlaneseq
    %v95 = vshrl.u32 %v94, 7
    %v96 = vsub.s32 0, %v95
    %v97 = vrot.slane %v63, %v96
    %v99 = vmul.f32 %v91, %v97
    %v100 = vmul.f32 %v92, %v97
    %v102 = vlaneseq
    %v103 = vshrl.u32 %v102, 7
    %v104 = vsub.s32 0, %v103
    %v105 = vrot.slane %v64, %v104
    %v107 = vadd.f32 %v99, %v105
    %v108 = vadd.f32 %v100, %v105
    %v109 = vld [vmem:[%s1] sm:$0x1]
    %v110 = vld [vmem:[%s1 + $0x1] sm:$0x1]
    %v113 = vlaneseq
    %v114 = vshrl.u32 %v113, 7
    %v115 = vsub.s32 0, %v114
    %v116 = vrot.slane %v109, %v115
    %v117 = vlaneseq
    %v118 = vshrl.u32 %v117, 7
    %v119 = vsub.s32 0, %v118
    %v120 = vrot.slane %v110, %v119
    %v123 = vpack.c.bf16 %v108, %v107
    %v124 = vld [vmem:[%s4] sm:$0xf]
    %v125 = vld [vmem:[%s4 + $0x4] sm:$0xf]
    %v126 = vld [vmem:[%s4 + $0x8] sm:$0xf]
    %v127 = vld [vmem:[%s4 + $0xc] sm:$0xf]
    %v128 = vld [vmem:[%s5] sm:$0x1]
    %v130 = vlaneseq
    %v131 = vshrl.u32 %v130, 7
    %v132 = vsub.s32 0, %v131
    %v133 = vrot.slane %v128, %v132
    %v139 = vunpack.c.l.b16 %v124
    %v140 = vunpack.c.l.b16 %v125
    %v141 = vunpack.c.l.b16 %v126
    %v142 = vunpack.c.l.b16 %v127
    %v143 = vpack.c.b16 %v140, %v139
    %v144 = vpack.c.b16 %v142, %v141
    %v148 = vsel %vm65, %v123, 0
    %150 = vmatprep.subr.bf16.mxu0 0
    %151 = vmatpush1.bf16.msra.mxu0 %v143
    %152 = vmatprep.subr.bf16.mxu0 0
    %153 = vmatpush1.bf16.msra.mxu0 %v144
    %154 = vmatprep.subr.bf16.mxu0 0
    %155 = vmatpush1.bf16.msra.mxu0 0
    %156 = vmatprep.subr.bf16.mxu0 0
    %157 = vmatpush1.bf16.msra.mxu0 0
    %158 = vmatprep.subr.bf16.mxu0 0
    %159 = vmatpush1.bf16.msra.mxu0 0
    %160 = vmatprep.subr.bf16.mxu0 0
    %161 = vmatpush1.bf16.msra.mxu0 0
    %162 = vmatprep.subr.bf16.mxu0 0
    %163 = vmatpush1.bf16.msra.mxu0 0
    %164 = vmatprep.subr.bf16.mxu0 0
    %165 = vmatpush1.bf16.msra.mxu0 0
    %166 = vmatprep.subr.bf16.mxu0 0
    %167 = vmatpush1.bf16.msra.mxu0 0
    %168 = vmatprep.subr.bf16.mxu0 0
    %169 = vmatpush1.bf16.msra.mxu0 0
    %170 = vmatprep.subr.bf16.mxu0 0
    %171 = vmatpush1.bf16.msra.mxu0 0
    %172 = vmatprep.subr.bf16.mxu0 0
    %173 = vmatpush1.bf16.msra.mxu0 0
    %174 = vmatprep.subr.bf16.mxu0 0
    %175 = vmatpush1.bf16.msra.mxu0 0
    %176 = vmatprep.subr.bf16.mxu0 0
    %177 = vmatpush1.bf16.msra.mxu0 0
    %178 = vmatprep.subr.bf16.mxu0 0
    %179 = vmatpush1.bf16.msra.mxu0 0
    %180 = vmatprep.subr.bf16.mxu0 0
    %181 = vmatpush1.bf16.msra.mxu0 0
    %182 = vmatprep.mubr.bf16.mxu0 0
    %183 = vmatmul.mubr.bf16.gmra.mrb[0].mxu0 %v148
    %v184 = vpop.f32.mrb[0].mxu0
    %v185 = vadd.f32 %v133, %v184
    %v186 = vpop.f32.mrb[0].mxu0
    %v187 = vpop.f32.mrb[0].mxu0
    %v188 = vadd.f32 %v133, %v187
    %v189 = vpop.f32.mrb[0].mxu0
    %190 = vdwg.mxu0
    %v191 = vpack.c.bf16 %v188, %v185
    %v193 = vunpack.c.l.b16 %v191
    %v194 = vunpack.c.h.b16 %v191
    %v195 = vpack.c.b16 %v193, %v193
    %v196 = vpack.c.b16 %v194, %v194
    %197 = vrot.lane.b32.xlu0 %v195, 96
    %v198 = vpop.permute.xlu0 %197
    %vm199 = vcmask 64512
    %v201 = vsel %vm199, %v195, 0
    %v204 = vsel %vm199, %v198, 0
    %206 = vmatprep.subr.bf16.mxu0 0
    %207 = vmatpush1.bf16.xpose.msra.mxu0 %v204
    %208 = vmatprep.subr.bf16.mxu0 0
    %209 = vmatpush1.bf16.xpose.msra.mxu0 0
    %210 = vmatprep.subr.bf16.mxu0 0
    %211 = vmatpush1.bf16.xpose.msra.mxu0 0
    %212 = vmatprep.subr.bf16.mxu0 0
    %213 = vmatpush1.bf16.xpose.msra.mxu0 0
    %214 = vmatprep.subr.bf16.mxu0 0
    %215 = vmatpush1.bf16.xpose.msra.mxu0 0
    %216 = vmatprep.subr.bf16.mxu0 0
    %217 = vmatpush1.bf16.xpose.msra.mxu0 0
    %218 = vmatprep.subr.bf16.mxu0 0
    %219 = vmatpush1.bf16.xpose.msra.mxu0 0
    %220 = vmatprep.subr.bf16.mxu0 0
    %221 = vmatpush1.bf16.xpose.msra.mxu0 0
    %222 = vmatprep.subr.bf16.mxu0 0
    %223 = vmatpush1.bf16.xpose.msra.mxu0 0
    %224 = vmatprep.subr.bf16.mxu0 0
    %225 = vmatpush1.bf16.xpose.msra.mxu0 0
    %226 = vmatprep.subr.bf16.mxu0 0
    %227 = vmatpush1.bf16.xpose.msra.mxu0 0
    %228 = vmatprep.subr.bf16.mxu0 0
    %229 = vmatpush1.bf16.xpose.msra.mxu0 0
    %230 = vmatprep.subr.bf16.mxu0 0
    %231 = vmatpush1.bf16.xpose.msra.mxu0 0
    %232 = vmatprep.subr.bf16.mxu0 0
    %233 = vmatpush1.bf16.xpose.msra.mxu0 0
    %234 = vmatprep.subr.bf16.mxu0 0
    %235 = vmatpush1.bf16.xpose.msra.mxu0 0
    %236 = vmatprep.subr.bf16.mxu0 0
    %237 = vmatpush1.bf16.xpose.msra.mxu0 0
    %238 = vmatprep.mubr.bf16.mxu0 0
    %239 = vmatmul.mubr.bf16.gmra.mrb[0].mxu0 %v201
    %v240 = vpop.f32.mrb[0].mxu0
    %v241 = vadd.f32 %v116, %v240
    %v242 = vpop.f32.mrb[0].mxu0
    %v243 = vpop.f32.mrb[0].mxu0
    %v244 = vpop.f32.mrb[0].mxu0
    %245 = vdwg.mxu0
    %246 = vrot.lane.b32.xlu0 %v196, 96
    %v247 = vpop.permute.xlu0 %246
    %v249 = vsel %vm199, %v196, 0
    %v252 = vsel %vm199, %v247, 0
    %254 = vmatprep.subr.bf16.mxu0 0
    %255 = vmatpush1.bf16.xpose.msra.mxu0 %v252
    %256 = vmatprep.subr.bf16.mxu0 0
    %257 = vmatpush1.bf16.xpose.msra.mxu0 0
    %258 = vmatprep.subr.bf16.mxu0 0
    %259 = vmatpush1.bf16.xpose.msra.mxu0 0
    %260 = vmatprep.subr.bf16.mxu0 0
    %261 = vmatpush1.bf16.xpose.msra.mxu0 0
    %262 = vmatprep.subr.bf16.mxu0 0
    %263 = vmatpush1.bf16.xpose.msra.mxu0 0
    %264 = vmatprep.subr.bf16.mxu0 0
    %265 = vmatpush1.bf16.xpose.msra.mxu0 0
    %266 = vmatprep.subr.bf16.mxu0 0
    %267 = vmatpush1.bf16.xpose.msra.mxu0 0
    %268 = vmatprep.subr.bf16.mxu0 0
    %269 = vmatpush1.bf16.xpose.msra.mxu0 0
    %270 = vmatprep.subr.bf16.mxu0 0
    %271 = vmatpush1.bf16.xpose.msra.mxu0 0
    %272 = vmatprep.subr.bf16.mxu0 0
    %273 = vmatpush1.bf16.xpose.msra.mxu0 0
    %274 = vmatprep.subr.bf16.mxu0 0
    %275 = vmatpush1.bf16.xpose.msra.mxu0 0
    %276 = vmatprep.subr.bf16.mxu0 0
    %277 = vmatpush1.bf16.xpose.msra.mxu0 0
    %278 = vmatprep.subr.bf16.mxu0 0
    %279 = vmatpush1.bf16.xpose.msra.mxu0 0
    %280 = vmatprep.subr.bf16.mxu0 0
    %281 = vmatpush1.bf16.xpose.msra.mxu0 0
    %282 = vmatprep.subr.bf16.mxu0 0
    %283 = vmatpush1.bf16.xpose.msra.mxu0 0
    %284 = vmatprep.subr.bf16.mxu0 0
    %285 = vmatpush1.bf16.xpose.msra.mxu0 0
    %286 = vmatprep.mubr.bf16.mxu0 0
    %287 = vmatmul.mubr.bf16.gmra.mrb[0].mxu0 %v249
    %v288 = vpop.f32.mrb[0].mxu0
    %v289 = vadd.f32 %v120, %v288
    %v290 = vpop.f32.mrb[0].mxu0
    %v291 = vpop.f32.mrb[0].mxu0
    %v292 = vpop.f32.mrb[0].mxu0
    %293 = vdwg.mxu0
    %v294 = vsel %vm199, %v241, -inf
    %295 = vmax.xlane.f32.xlu0 %v294
    %v296 = vpop.xlane.xlu0 %295
    %v297 = vsel %vm199, %v289, -inf
    %298 = vmax.xlane.f32.xlu0 %v297
    %v299 = vpop.xlane.xlu0 %298
    %v300 = vsub.f32 %v241, %v296
    %v301 = vsub.f32 %v289, %v299
    %v302 = vmul.f32 %v300, 1.442695
    %v303 = vpow.pop %v302
    %v304 = vmul.f32 %v301, 1.442695
    %v305 = vpow.pop %v304
    %v306 = vsel %vm199, %v303, 0.0
    %307 = vadd.xlane.f32.xlu0 %v306
    %v308 = vpop.xlane.xlu0 %307
    %v309 = vsel %vm199, %v305, 0.0
    %310 = vadd.xlane.f32.xlu0 %v309
    %v311 = vpop.xlane.xlu0 %310
    %v312 = vrcp.pop %v308
    %v313 = vrcp.pop %v311
    %v314 = vmul.f32 %v303, %v312
    %v315 = vmul.f32 %v305, %v313
    %v316 = vpack.c.bf16 %v314, %v314
    %v317 = vpack.c.bf16 %v315, %v315
    %318 = vrot.lane.b32.xlu0 %v195, 64
    %v319 = vpop.permute.xlu0 %318
    %v321 = vsel %vm199, %v316, 0
    %vm323 = vcmask 1043456
    %v325 = vsel %vm323, %v319, 0
    %327 = vmatprep.subr.bf16.mxu0 0
    %328 = vmatpush1.bf16.msra.mxu0 %v325
    %329 = vmatprep.subr.bf16.mxu0 0
    %330 = vmatpush1.bf16.msra.mxu0 0
    %331 = vmatprep.subr.bf16.mxu0 0
    %332 = vmatpush1.bf16.msra.mxu0 0
    %333 = vmatprep.subr.bf16.mxu0 0
    %334 = vmatpush1.bf16.msra.mxu0 0
    %335 = vmatprep.subr.bf16.mxu0 0
    %336 = vmatpush1.bf16.msra.mxu0 0
    %337 = vmatprep.subr.bf16.mxu0 0
    %338 = vmatpush1.bf16.msra.mxu0 0
    %339 = vmatprep.subr.bf16.mxu0 0
    %340 = vmatpush1.bf16.msra.mxu0 0
    %341 = vmatprep.subr.bf16.mxu0 0
    %342 = vmatpush1.bf16.msra.mxu0 0
    %343 = vmatprep.subr.bf16.mxu0 0
    %344 = vmatpush1.bf16.msra.mxu0 0
    %345 = vmatprep.subr.bf16.mxu0 0
    %346 = vmatpush1.bf16.msra.mxu0 0
    %347 = vmatprep.subr.bf16.mxu0 0
    %348 = vmatpush1.bf16.msra.mxu0 0
    %349 = vmatprep.subr.bf16.mxu0 0
    %350 = vmatpush1.bf16.msra.mxu0 0
    %351 = vmatprep.subr.bf16.mxu0 0
    %352 = vmatpush1.bf16.msra.mxu0 0
    %353 = vmatprep.subr.bf16.mxu0 0
    %354 = vmatpush1.bf16.msra.mxu0 0
    %355 = vmatprep.subr.bf16.mxu0 0
    %356 = vmatpush1.bf16.msra.mxu0 0
    %357 = vmatprep.subr.bf16.mxu0 0
    %358 = vmatpush1.bf16.msra.mxu0 0
    %359 = vmatprep.mubr.bf16.mxu0 0
    %360 = vmatmul.mubr.bf16.gmra.mrb[0].mxu0 %v321
    %v361 = vpop.f32.mrb[0].mxu0
    %v362 = vadd.f32 0.0, %v361
    %v363 = vpop.f32.mrb[0].mxu0
    %v364 = vpop.f32.mrb[0].mxu0
    %v365 = vpop.f32.mrb[0].mxu0
    %366 = vdwg.mxu0
    %367 = vrot.lane.b32.xlu0 %v196, 64
    %v368 = vpop.permute.xlu0 %367
    %v370 = vsel %vm199, %v317, 0
    %v373 = vsel %vm323, %v368, 0
    %375 = vmatprep.subr.bf16.mxu0 0
    %376 = vmatpush1.bf16.msra.mxu0 %v373
    %377 = vmatprep.subr.bf16.mxu0 0
    %378 = vmatpush1.bf16.msra.mxu0 0
    %379 = vmatprep.subr.bf16.mxu0 0
    %380 = vmatpush1.bf16.msra.mxu0 0
    %381 = vmatprep.subr.bf16.mxu0 0
    %382 = vmatpush1.bf16.msra.mxu0 0
    %383 = vmatprep.subr.bf16.mxu0 0
    %384 = vmatpush1.bf16.msra.mxu0 0
    %385 = vmatprep.subr.bf16.mxu0 0
    %386 = vmatpush1.bf16.msra.mxu0 0
    %387 = vmatprep.subr.bf16.mxu0 0
    %388 = vmatpush1.bf16.msra.mxu0 0
    %389 = vmatprep.subr.bf16.mxu0 0
    %390 = vmatpush1.bf16.msra.mxu0 0
    %391 = vmatprep.subr.bf16.mxu0 0
    %392 = vmatpush1.bf16.msra.mxu0 0
    %393 = vmatprep.subr.bf16.mxu0 0
    %394 = vmatpush1.bf16.msra.mxu0 0
    %395 = vmatprep.subr.bf16.mxu0 0
    %396 = vmatpush1.bf16.msra.mxu0 0
    %397 = vmatprep.subr.bf16.mxu0 0
    %398 = vmatpush1.bf16.msra.mxu0 0
    %399 = vmatprep.subr.bf16.mxu0 0
    %400 = vmatpush1.bf16.msra.mxu0 0
    %401 = vmatprep.subr.bf16.mxu0 0
    %402 = vmatpush1.bf16.msra.mxu0 0
    %403 = vmatprep.subr.bf16.mxu0 0
    %404 = vmatpush1.bf16.msra.mxu0 0
    %405 = vmatprep.subr.bf16.mxu0 0
    %406 = vmatpush1.bf16.msra.mxu0 0
    %407 = vmatprep.mubr.bf16.mxu0 0
    %408 = vmatmul.mubr.bf16.gmra.mrb[0].mxu0 %v370
    %v409 = vpop.f32.mrb[0].mxu0
    %v410 = vadd.f32 0.0, %v409
    %v411 = vpop.f32.mrb[0].mxu0
    %v412 = vpop.f32.mrb[0].mxu0
    %v413 = vpop.f32.mrb[0].mxu0
    %414 = vdwg.mxu0
    %415 = vrot.lane.b32.xlu0 %v195, 120
    %v416 = vpop.permute.xlu0 %415
    %417 = vrot.lane.b32.xlu0 %v195, 88
    %v418 = vpop.permute.xlu0 %417
    %v420 = vsel %vm199, %v416, 0
    %v423 = vsel %vm199, %v418, 0
    %425 = vmatprep.subr.bf16.mxu0 0
    %426 = vmatpush1.bf16.xpose.msra.mxu0 %v423
    %427 = vmatprep.subr.bf16.mxu0 0
    %428 = vmatpush1.bf16.xpose.msra.mxu0 0
    %429 = vmatprep.subr.bf16.mxu0 0
    %430 = vmatpush1.bf16.xpose.msra.mxu0 0
    %431 = vmatprep.subr.bf16.mxu0 0
    %432 = vmatpush1.bf16.xpose.msra.mxu0 0
    %433 = vmatprep.subr.bf16.mxu0 0
    %434 = vmatpush1.bf16.xpose.msra.mxu0 0
    %435 = vmatprep.subr.bf16.mxu0 0
    %436 = vmatpush1.bf16.xpose.msra.mxu0 0
    %437 = vmatprep.subr.bf16.mxu0 0
    %438 = vmatpush1.bf16.xpose.msra.mxu0 0
    %439 = vmatprep.subr.bf16.mxu0 0
    %440 = vmatpush1.bf16.xpose.msra.mxu0 0
    %441 = vmatprep.subr.bf16.mxu0 0
    %442 = vmatpush1.bf16.xpose.msra.mxu0 0
    %443 = vmatprep.subr.bf16.mxu0 0
    %444 = vmatpush1.bf16.xpose.msra.mxu0 0
    %445 = vmatprep.subr.bf16.mxu0 0
    %446 = vmatpush1.bf16.xpose.msra.mxu0 0
    %447 = vmatprep.subr.bf16.mxu0 0
    %448 = vmatpush1.bf16.xpose.msra.mxu0 0
    %449 = vmatprep.subr.bf16.mxu0 0
    %450 = vmatpush1.bf16.xpose.msra.mxu0 0
    %451 = vmatprep.subr.bf16.mxu0 0
    %452 = vmatpush1.bf16.xpose.msra.mxu0 0
    %453 = vmatprep.subr.bf16.mxu0 0
    %454 = vmatpush1.bf16.xpose.msra.mxu0 0
    %455 = vmatprep.subr.bf16.mxu0 0
    %456 = vmatpush1.bf16.xpose.msra.mxu0 0
    %457 = vmatprep.mubr.bf16.mxu0 0
    %458 = vmatmul.mubr.bf16.gmra.mrb[0].mxu0 %v420
    %v459 = vpop.f32.mrb[0].mxu0
    %v460 = vadd.f32 %v116, %v459
    %v461 = vpop.f32.mrb[0].mxu0
    %v462 = vpop.f32.mrb[0].mxu0
    %v463 = vpop.f32.mrb[0].mxu0
    %464 = vdwg.mxu0
    %465 = vrot.lane.b32.xlu0 %v196, 120
    %v466 = vpop.permute.xlu0 %465
    %467 = vrot.lane.b32.xlu0 %v196, 88
    %v468 = vpop.permute.xlu0 %467
    %v470 = vsel %vm199, %v466, 0
    %v473 = vsel %vm199, %v468, 0
    %475 = vmatprep.subr.bf16.mxu0 0
    %476 = vmatpush1.bf16.xpose.msra.mxu0 %v473
    %477 = vmatprep.subr.bf16.mxu0 0
    %478 = vmatpush1.bf16.xpose.msra.mxu0 0
    %479 = vmatprep.subr.bf16.mxu0 0
    %480 = vmatpush1.bf16.xpose.msra.mxu0 0
    %481 = vmatprep.subr.bf16.mxu0 0
    %482 = vmatpush1.bf16.xpose.msra.mxu0 0
    %483 = vmatprep.subr.bf16.mxu0 0
    %484 = vmatpush1.bf16.xpose.msra.mxu0 0
    %485 = vmatprep.subr.bf16.mxu0 0
    %486 = vmatpush1.bf16.xpose.msra.mxu0 0
    %487 = vmatprep.subr.bf16.mxu0 0
    %488 = vmatpush1.bf16.xpose.msra.mxu0 0
    %489 = vmatprep.subr.bf16.mxu0 0
    %490 = vmatpush1.bf16.xpose.msra.mxu0 0
    %491 = vmatprep.subr.bf16.mxu0 0
    %492 = vmatpush1.bf16.xpose.msra.mxu0 0
    %493 = vmatprep.subr.bf16.mxu0 0
    %494 = vmatpush1.bf16.xpose.msra.mxu0 0
    %495 = vmatprep.subr.bf16.mxu0 0
    %496 = vmatpush1.bf16.xpose.msra.mxu0 0
    %497 = vmatprep.subr.bf16.mxu0 0
    %498 = vmatpush1.bf16.xpose.msra.mxu0 0
    %499 = vmatprep.subr.bf16.mxu0 0
    %500 = vmatpush1.bf16.xpose.msra.mxu0 0
    %501 = vmatprep.subr.bf16.mxu0 0
    %502 = vmatpush1.bf16.xpose.msra.mxu0 0
    %503 = vmatprep.subr.bf16.mxu0 0
    %504 = vmatpush1.bf16.xpose.msra.mxu0 0
    %505 = vmatprep.subr.bf16.mxu0 0
    %506 = vmatpush1.bf16.xpose.msra.mxu0 0
    %507 = vmatprep.mubr.bf16.mxu0 0
    %508 = vmatmul.mubr.bf16.gmra.mrb[0].mxu0 %v470
    %v509 = vpop.f32.mrb[0].mxu0
    %v510 = vadd.f32 %v120, %v509
    %v511 = vpop.f32.mrb[0].mxu0
    %v512 = vpop.f32.mrb[0].mxu0
    %v513 = vpop.f32.mrb[0].mxu0
    %514 = vdwg.mxu0
    %v515 = vsel %vm199, %v460, -inf
    %516 = vmax.xlane.f32.xlu0 %v515
    %v517 = vpop.xlane.xlu0 %516
    %v518 = vsel %vm199, %v510, -inf
    %519 = vmax.xlane.f32.xlu0 %v518
    %v520 = vpop.xlane.xlu0 %519
    %v521 = vsub.f32 %v460, %v517
    %v522 = vsub.f32 %v510, %v520
    %v523 = vmul.f32 %v521, 1.442695
    %v524 = vpow.pop %v523
    %v525 = vmul.f32 %v522, 1.442695
    %v526 = vpow.pop %v525
    %v527 = vsel %vm199, %v524, 0.0
    %528 = vadd.xlane.f32.xlu0 %v527
    %v529 = vpop.xlane.xlu0 %528
    %v530 = vsel %vm199, %v526, 0.0
    %531 = vadd.xlane.f32.xlu0 %v530
    %v532 = vpop.xlane.xlu0 %531
    %v533 = vrcp.pop %v529
    %v534 = vrcp.pop %v532
    %v535 = vmul.f32 %v524, %v533
    %v536 = vmul.f32 %v526, %v534
    %v537 = vpack.c.bf16 %v535, %v535
    %v538 = vpack.c.bf16 %v536, %v536
    %539 = vrot.lane.b32.xlu0 %v195, 56
    %v540 = vpop.permute.xlu0 %539
    %v542 = vsel %vm199, %v537, 0
    %v545 = vsel %vm323, %v540, 0
    %547 = vmatprep.subr.bf16.mxu0 0
    %548 = vmatpush1.bf16.msra.mxu0 %v545
    %549 = vmatprep.subr.bf16.mxu0 0
    %550 = vmatpush1.bf16.msra.mxu0 0
    %551 = vmatprep.subr.bf16.mxu0 0
    %552 = vmatpush1.bf16.msra.mxu0 0
    %553 = vmatprep.subr.bf16.mxu0 0
    %554 = vmatpush1.bf16.msra.mxu0 0
    %555 = vmatprep.subr.bf16.mxu0 0
    %556 = vmatpush1.bf16.msra.mxu0 0
    %557 = vmatprep.subr.bf16.mxu0 0
    %558 = vmatpush1.bf16.msra.mxu0 0
    %559 = vmatprep.subr.bf16.mxu0 0
    %560 = vmatpush1.bf16.msra.mxu0 0
    %561 = vmatprep.subr.bf16.mxu0 0
    %562 = vmatpush1.bf16.msra.mxu0 0
    %563 = vmatprep.subr.bf16.mxu0 0
    %564 = vmatpush1.bf16.msra.mxu0 0
    %565 = vmatprep.subr.bf16.mxu0 0
    %566 = vmatpush1.bf16.msra.mxu0 0
    %567 = vmatprep.subr.bf16.mxu0 0
    %568 = vmatpush1.bf16.msra.mxu0 0
    %569 = vmatprep.subr.bf16.mxu0 0
    %570 = vmatpush1.bf16.msra.mxu0 0
    %571 = vmatprep.subr.bf16.mxu0 0
    %572 = vmatpush1.bf16.msra.mxu0 0
    %573 = vmatprep.subr.bf16.mxu0 0
    %574 = vmatpush1.bf16.msra.mxu0 0
    %575 = vmatprep.subr.bf16.mxu0 0
    %576 = vmatpush1.bf16.msra.mxu0 0
    %577 = vmatprep.subr.bf16.mxu0 0
    %578 = vmatpush1.bf16.msra.mxu0 0
    %579 = vmatprep.mubr.bf16.mxu0 0
    %580 = vmatmul.mubr.bf16.gmra.mrb[0].mxu0 %v542
    %v581 = vpop.f32.mrb[0].mxu0
    %v582 = vadd.f32 0.0, %v581
    %v583 = vpop.f32.mrb[0].mxu0
    %v584 = vpop.f32.mrb[0].mxu0
    %v585 = vpop.f32.mrb[0].mxu0
    %586 = vdwg.mxu0
    %587 = vrot.lane.b32.xlu0 %v196, 56
    %v588 = vpop.permute.xlu0 %587
    %v590 = vsel %vm199, %v538, 0
    %v593 = vsel %vm323, %v588, 0
    %595 = vmatprep.subr.bf16.mxu0 0
    %596 = vmatpush1.bf16.msra.mxu0 %v593
    %597 = vmatprep.subr.bf16.mxu0 0
    %598 = vmatpush1.bf16.msra.mxu0 0
    %599 = vmatprep.subr.bf16.mxu0 0
    %600 = vmatpush1.bf16.msra.mxu0 0
    %601 = vmatprep.subr.bf16.mxu0 0
    %602 = vmatpush1.bf16.msra.mxu0 0
    %603 = vmatprep.subr.bf16.mxu0 0
    %604 = vmatpush1.bf16.msra.mxu0 0
    %605 = vmatprep.subr.bf16.mxu0 0
    %606 = vmatpush1.bf16.msra.mxu0 0
    %607 = vmatprep.subr.bf16.mxu0 0
    %608 = vmatpush1.bf16.msra.mxu0 0
    %609 = vmatprep.subr.bf16.mxu0 0
    %610 = vmatpush1.bf16.msra.mxu0 0
    %611 = vmatprep.subr.bf16.mxu0 0
    %612 = vmatpush1.bf16.msra.mxu0 0
    %613 = vmatprep.subr.bf16.mxu0 0
    %614 = vmatpush1.bf16.msra.mxu0 0
    %615 = vmatprep.subr.bf16.mxu0 0
    %616 = vmatpush1.bf16.msra.mxu0 0
    %617 = vmatprep.subr.bf16.mxu0 0
    %618 = vmatpush1.bf16.msra.mxu0 0
    %619 = vmatprep.subr.bf16.mxu0 0
    %620 = vmatpush1.bf16.msra.mxu0 0
    %621 = vmatprep.subr.bf16.mxu0 0
    %622 = vmatpush1.bf16.msra.mxu0 0
    %623 = vmatprep.subr.bf16.mxu0 0
    %624 = vmatpush1.bf16.msra.mxu0 0
    %625 = vmatprep.subr.bf16.mxu0 0
    %626 = vmatpush1.bf16.msra.mxu0 0
    %627 = vmatprep.mubr.bf16.mxu0 0
    %628 = vmatmul.mubr.bf16.gmra.mrb[0].mxu0 %v590
    %v629 = vpop.f32.mrb[0].mxu0
    %v630 = vadd.f32 0.0, %v629
    %v631 = vpop.f32.mrb[0].mxu0
    %v632 = vpop.f32.mrb[0].mxu0
    %v633 = vpop.f32.mrb[0].mxu0
    %634 = vdwg.mxu0
    %635 = vrot.lane.b32.xlu0 %v195, 112
    %v636 = vpop.permute.xlu0 %635
    %637 = vrot.lane.b32.xlu0 %v195, 80
    %v638 = vpop.permute.xlu0 %637
    %v640 = vsel %vm199, %v636, 0
    %v643 = vsel %vm199, %v638, 0
    %645 = vmatprep.subr.bf16.mxu0 0
    %646 = vmatpush1.bf16.xpose.msra.mxu0 %v643
    %647 = vmatprep.subr.bf16.mxu0 0
    %648 = vmatpush1.bf16.xpose.msra.mxu0 0
    %649 = vmatprep.subr.bf16.mxu0 0
    %650 = vmatpush1.bf16.xpose.msra.mxu0 0
    %651 = vmatprep.subr.bf16.mxu0 0
    %652 = vmatpush1.bf16.xpose.msra.mxu0 0
    %653 = vmatprep.subr.bf16.mxu0 0
    %654 = vmatpush1.bf16.xpose.msra.mxu0 0
    %655 = vmatprep.subr.bf16.mxu0 0
    %656 = vmatpush1.bf16.xpose.msra.mxu0 0
    %657 = vmatprep.subr.bf16.mxu0 0
    %658 = vmatpush1.bf16.xpose.msra.mxu0 0
    %659 = vmatprep.subr.bf16.mxu0 0
    %660 = vmatpush1.bf16.xpose.msra.mxu0 0
    %661 = vmatprep.subr.bf16.mxu0 0
    %662 = vmatpush1.bf16.xpose.msra.mxu0 0
    %663 = vmatprep.subr.bf16.mxu0 0
    %664 = vmatpush1.bf16.xpose.msra.mxu0 0
    %665 = vmatprep.subr.bf16.mxu0 0
    %666 = vmatpush1.bf16.xpose.msra.mxu0 0
    %667 = vmatprep.subr.bf16.mxu0 0
    %668 = vmatpush1.bf16.xpose.msra.mxu0 0
    %669 = vmatprep.subr.bf16.mxu0 0
    %670 = vmatpush1.bf16.xpose.msra.mxu0 0
    %671 = vmatprep.subr.bf16.mxu0 0
    %672 = vmatpush1.bf16.xpose.msra.mxu0 0
    %673 = vmatprep.subr.bf16.mxu0 0
    %674 = vmatpush1.bf16.xpose.msra.mxu0 0
    %675 = vmatprep.subr.bf16.mxu0 0
    %676 = vmatpush1.bf16.xpose.msra.mxu0 0
    %677 = vmatprep.mubr.bf16.mxu0 0
    %678 = vmatmul.mubr.bf16.gmra.mrb[0].mxu0 %v640
    %v679 = vpop.f32.mrb[0].mxu0
    %v680 = vadd.f32 %v116, %v679
    %v681 = vpop.f32.mrb[0].mxu0
    %v682 = vpop.f32.mrb[0].mxu0
    %v683 = vpop.f32.mrb[0].mxu0
    %684 = vdwg.mxu0
    %685 = vrot.lane.b32.xlu0 %v196, 112
    %v686 = vpop.permute.xlu0 %685
    %687 = vrot.lane.b32.xlu0 %v196, 80
    %v688 = vpop.permute.xlu0 %687
    %v690 = vsel %vm199, %v686, 0
    %v693 = vsel %vm199, %v688, 0
    %695 = vmatprep.subr.bf16.mxu0 0
    %696 = vmatpush1.bf16.xpose.msra.mxu0 %v693
    %697 = vmatprep.subr.bf16.mxu0 0
    %698 = vmatpush1.bf16.xpose.msra.mxu0 0
    %699 = vmatprep.subr.bf16.mxu0 0
    %700 = vmatpush1.bf16.xpose.msra.mxu0 0
    %701 = vmatprep.subr.bf16.mxu0 0
    %702 = vmatpush1.bf16.xpose.msra.mxu0 0
    %703 = vmatprep.subr.bf16.mxu0 0
    %704 = vmatpush1.bf16.xpose.msra.mxu0 0
    %705 = vmatprep.subr.bf16.mxu0 0
    %706 = vmatpush1.bf16.xpose.msra.mxu0 0
    %707 = vmatprep.subr.bf16.mxu0 0
    %708 = vmatpush1.bf16.xpose.msra.mxu0 0
    %709 = vmatprep.subr.bf16.mxu0 0
    %710 = vmatpush1.bf16.xpose.msra.mxu0 0
    %711 = vmatprep.subr.bf16.mxu0 0
    %712 = vmatpush1.bf16.xpose.msra.mxu0 0
    %713 = vmatprep.subr.bf16.mxu0 0
    %714 = vmatpush1.bf16.xpose.msra.mxu0 0
    %715 = vmatprep.subr.bf16.mxu0 0
    %716 = vmatpush1.bf16.xpose.msra.mxu0 0
    %717 = vmatprep.subr.bf16.mxu0 0
    %718 = vmatpush1.bf16.xpose.msra.mxu0 0
    %719 = vmatprep.subr.bf16.mxu0 0
    %720 = vmatpush1.bf16.xpose.msra.mxu0 0
    %721 = vmatprep.subr.bf16.mxu0 0
    %722 = vmatpush1.bf16.xpose.msra.mxu0 0
    %723 = vmatprep.subr.bf16.mxu0 0
    %724 = vmatpush1.bf16.xpose.msra.mxu0 0
    %725 = vmatprep.subr.bf16.mxu0 0
    %726 = vmatpush1.bf16.xpose.msra.mxu0 0
    %727 = vmatprep.mubr.bf16.mxu0 0
    %728 = vmatmul.mubr.bf16.gmra.mrb[0].mxu0 %v690
    %v729 = vpop.f32.mrb[0].mxu0
    %v730 = vadd.f32 %v120, %v729
    %v731 = vpop.f32.mrb[0].mxu0
    %v732 = vpop.f32.mrb[0].mxu0
    %v733 = vpop.f32.mrb[0].mxu0
    %734 = vdwg.mxu0
    %v735 = vsel %vm199, %v680, -inf
    %736 = vmax.xlane.f32.xlu0 %v735
    %v737 = vpop.xlane.xlu0 %736
    %v738 = vsel %vm199, %v730, -inf
    %739 = vmax.xlane.f32.xlu0 %v738
    %v740 = vpop.xlane.xlu0 %739
    %v741 = vsub.f32 %v680, %v737
    %v742 = vsub.f32 %v730, %v740
    %v743 = vmul.f32 %v741, 1.442695
    %v744 = vpow.pop %v743
    %v745 = vmul.f32 %v742, 1.442695
    %v746 = vpow.pop %v745
    %v747 = vsel %vm199, %v744, 0.0
    %748 = vadd.xlane.f32.xlu0 %v747
    %v749 = vpop.xlane.xlu0 %748
    %v750 = vsel %vm199, %v746, 0.0
    %751 = vadd.xlane.f32.xlu0 %v750
    %v752 = vpop.xlane.xlu0 %751
    %v753 = vrcp.pop %v749
    %v754 = vrcp.pop %v752
    %v755 = vmul.f32 %v744, %v753
    %v756 = vmul.f32 %v746, %v754
    %v757 = vpack.c.bf16 %v755, %v755
    %v758 = vpack.c.bf16 %v756, %v756
    %759 = vrot.lane.b32.xlu0 %v195, 48
    %v760 = vpop.permute.xlu0 %759
    %v762 = vsel %vm199, %v757, 0
    %v765 = vsel %vm323, %v760, 0
    %767 = vmatprep.subr.bf16.mxu0 0
    %768 = vmatpush1.bf16.msra.mxu0 %v765
    %769 = vmatprep.subr.bf16.mxu0 0
    %770 = vmatpush1.bf16.msra.mxu0 0
    %771 = vmatprep.subr.bf16.mxu0 0
    %772 = vmatpush1.bf16.msra.mxu0 0
    %773 = vmatprep.subr.bf16.mxu0 0
    %774 = vmatpush1.bf16.msra.mxu0 0
    %775 = vmatprep.subr.bf16.mxu0 0
    %776 = vmatpush1.bf16.msra.mxu0 0
    %777 = vmatprep.subr.bf16.mxu0 0
    %778 = vmatpush1.bf16.msra.mxu0 0
    %779 = vmatprep.subr.bf16.mxu0 0
    %780 = vmatpush1.bf16.msra.mxu0 0
    %781 = vmatprep.subr.bf16.mxu0 0
    %782 = vmatpush1.bf16.msra.mxu0 0
    %783 = vmatprep.subr.bf16.mxu0 0
    %784 = vmatpush1.bf16.msra.mxu0 0
    %785 = vmatprep.subr.bf16.mxu0 0
    %786 = vmatpush1.bf16.msra.mxu0 0
    %787 = vmatprep.subr.bf16.mxu0 0
    %788 = vmatpush1.bf16.msra.mxu0 0
    %789 = vmatprep.subr.bf16.mxu0 0
    %790 = vmatpush1.bf16.msra.mxu0 0
    %791 = vmatprep.subr.bf16.mxu0 0
    %792 = vmatpush1.bf16.msra.mxu0 0
    %793 = vmatprep.subr.bf16.mxu0 0
    %794 = vmatpush1.bf16.msra.mxu0 0
    %795 = vmatprep.subr.bf16.mxu0 0
    %796 = vmatpush1.bf16.msra.mxu0 0
    %797 = vmatprep.subr.bf16.mxu0 0
    %798 = vmatpush1.bf16.msra.mxu0 0
    %799 = vmatprep.mubr.bf16.mxu0 0
    %800 = vmatmul.mubr.bf16.gmra.mrb[0].mxu0 %v762
    %v801 = vpop.f32.mrb[0].mxu0
    %v802 = vadd.f32 0.0, %v801
    %v803 = vpop.f32.mrb[0].mxu0
    %v804 = vpop.f32.mrb[0].mxu0
    %v805 = vpop.f32.mrb[0].mxu0
    %806 = vdwg.mxu0
    %807 = vrot.lane.b32.xlu0 %v196, 48
    %v808 = vpop.permute.xlu0 %807
    %v810 = vsel %vm199, %v758, 0
    %v813 = vsel %vm323, %v808, 0
    %815 = vmatprep.subr.bf16.mxu0 0
    %816 = vmatpush1.bf16.msra.mxu0 %v813
    %817 = vmatprep.subr.bf16.mxu0 0
    %818 = vmatpush1.bf16.msra.mxu0 0
    %819 = vmatprep.subr.bf16.mxu0 0
    %820 = vmatpush1.bf16.msra.mxu0 0
    %821 = vmatprep.subr.bf16.mxu0 0
    %822 = vmatpush1.bf16.msra.mxu0 0
    %823 = vmatprep.subr.bf16.mxu0 0
    %824 = vmatpush1.bf16.msra.mxu0 0
    %825 = vmatprep.subr.bf16.mxu0 0
    %826 = vmatpush1.bf16.msra.mxu0 0
    %827 = vmatprep.subr.bf16.mxu0 0
    %828 = vmatpush1.bf16.msra.mxu0 0
    %829 = vmatprep.subr.bf16.mxu0 0
    %830 = vmatpush1.bf16.msra.mxu0 0
    %831 = vmatprep.subr.bf16.mxu0 0
    %832 = vmatpush1.bf16.msra.mxu0 0
    %833 = vmatprep.subr.bf16.mxu0 0
    %834 = vmatpush1.bf16.msra.mxu0 0
    %835 = vmatprep.subr.bf16.mxu0 0
    %836 = vmatpush1.bf16.msra.mxu0 0
    %837 = vmatprep.subr.bf16.mxu0 0
    %838 = vmatpush1.bf16.msra.mxu0 0
    %839 = vmatprep.subr.bf16.mxu0 0
    %840 = vmatpush1.bf16.msra.mxu0 0
    %841 = vmatprep.subr.bf16.mxu0 0
    %842 = vmatpush1.bf16.msra.mxu0 0
    %843 = vmatprep.subr.bf16.mxu0 0
    %844 = vmatpush1.bf16.msra.mxu0 0
    %845 = vmatprep.subr.bf16.mxu0 0
    %846 = vmatpush1.bf16.msra.mxu0 0
    %847 = vmatprep.mubr.bf16.mxu0 0
    %848 = vmatmul.mubr.bf16.gmra.mrb[0].mxu0 %v810
    %v849 = vpop.f32.mrb[0].mxu0
    %v850 = vadd.f32 0.0, %v849
    %v851 = vpop.f32.mrb[0].mxu0
    %v852 = vpop.f32.mrb[0].mxu0
    %v853 = vpop.f32.mrb[0].mxu0
    %854 = vdwg.mxu0
    %855 = vrot.lane.b32.xlu0 %v195, 104
    %v856 = vpop.permute.xlu0 %855
    %857 = vrot.lane.b32.xlu0 %v195, 72
    %v858 = vpop.permute.xlu0 %857
    %v860 = vsel %vm199, %v856, 0
    %v863 = vsel %vm199, %v858, 0
    %865 = vmatprep.subr.bf16.mxu0 0
    %866 = vmatpush1.bf16.xpose.msra.mxu0 %v863
    %867 = vmatprep.subr.bf16.mxu0 0
    %868 = vmatpush1.bf16.xpose.msra.mxu0 0
    %869 = vmatprep.subr.bf16.mxu0 0
    %870 = vmatpush1.bf16.xpose.msra.mxu0 0
    %871 = vmatprep.subr.bf16.mxu0 0
    %872 = vmatpush1.bf16.xpose.msra.mxu0 0
    %873 = vmatprep.subr.bf16.mxu0 0
    %874 = vmatpush1.bf16.xpose.msra.mxu0 0
    %875 = vmatprep.subr.bf16.mxu0 0
    %876 = vmatpush1.bf16.xpose.msra.mxu0 0
    %877 = vmatprep.subr.bf16.mxu0 0
    %878 = vmatpush1.bf16.xpose.msra.mxu0 0
    %879 = vmatprep.subr.bf16.mxu0 0
    %880 = vmatpush1.bf16.xpose.msra.mxu0 0
    %881 = vmatprep.subr.bf16.mxu0 0
    %882 = vmatpush1.bf16.xpose.msra.mxu0 0
    %883 = vmatprep.subr.bf16.mxu0 0
    %884 = vmatpush1.bf16.xpose.msra.mxu0 0
    %885 = vmatprep.subr.bf16.mxu0 0
    %886 = vmatpush1.bf16.xpose.msra.mxu0 0
    %887 = vmatprep.subr.bf16.mxu0 0
    %888 = vmatpush1.bf16.xpose.msra.mxu0 0
    %889 = vmatprep.subr.bf16.mxu0 0
    %890 = vmatpush1.bf16.xpose.msra.mxu0 0
    %891 = vmatprep.subr.bf16.mxu0 0
    %892 = vmatpush1.bf16.xpose.msra.mxu0 0
    %893 = vmatprep.subr.bf16.mxu0 0
    %894 = vmatpush1.bf16.xpose.msra.mxu0 0
    %895 = vmatprep.subr.bf16.mxu0 0
    %896 = vmatpush1.bf16.xpose.msra.mxu0 0
    %897 = vmatprep.mubr.bf16.mxu0 0
    %898 = vmatmul.mubr.bf16.gmra.mrb[0].mxu0 %v860
    %v899 = vpop.f32.mrb[0].mxu0
    %v900 = vadd.f32 %v116, %v899
    %v901 = vpop.f32.mrb[0].mxu0
    %v902 = vpop.f32.mrb[0].mxu0
    %v903 = vpop.f32.mrb[0].mxu0
    %904 = vdwg.mxu0
    %905 = vrot.lane.b32.xlu0 %v196, 104
    %v906 = vpop.permute.xlu0 %905
    %907 = vrot.lane.b32.xlu0 %v196, 72
    %v908 = vpop.permute.xlu0 %907
    %v910 = vsel %vm199, %v906, 0
    %v913 = vsel %vm199, %v908, 0
    %915 = vmatprep.subr.bf16.mxu0 0
    %916 = vmatpush1.bf16.xpose.msra.mxu0 %v913
    %917 = vmatprep.subr.bf16.mxu0 0
    %918 = vmatpush1.bf16.xpose.msra.mxu0 0
    %919 = vmatprep.subr.bf16.mxu0 0
    %920 = vmatpush1.bf16.xpose.msra.mxu0 0
    %921 = vmatprep.subr.bf16.mxu0 0
    %922 = vmatpush1.bf16.xpose.msra.mxu0 0
    %923 = vmatprep.subr.bf16.mxu0 0
    %924 = vmatpush1.bf16.xpose.msra.mxu0 0
    %925 = vmatprep.subr.bf16.mxu0 0
    %926 = vmatpush1.bf16.xpose.msra.mxu0 0
    %927 = vmatprep.subr.bf16.mxu0 0
    %928 = vmatpush1.bf16.xpose.msra.mxu0 0
    %929 = vmatprep.subr.bf16.mxu0 0
    %930 = vmatpush1.bf16.xpose.msra.mxu0 0
    %931 = vmatprep.subr.bf16.mxu0 0
    %932 = vmatpush1.bf16.xpose.msra.mxu0 0
    %933 = vmatprep.subr.bf16.mxu0 0
    %934 = vmatpush1.bf16.xpose.msra.mxu0 0
    %935 = vmatprep.subr.bf16.mxu0 0
    %936 = vmatpush1.bf16.xpose.msra.mxu0 0
    %937 = vmatprep.subr.bf16.mxu0 0
    %938 = vmatpush1.bf16.xpose.msra.mxu0 0
    %939 = vmatprep.subr.bf16.mxu0 0
    %940 = vmatpush1.bf16.xpose.msra.mxu0 0
    %941 = vmatprep.subr.bf16.mxu0 0
    %942 = vmatpush1.bf16.xpose.msra.mxu0 0
    %943 = vmatprep.subr.bf16.mxu0 0
    %944 = vmatpush1.bf16.xpose.msra.mxu0 0
    %945 = vmatprep.subr.bf16.mxu0 0
    %946 = vmatpush1.bf16.xpose.msra.mxu0 0
    %947 = vmatprep.mubr.bf16.mxu0 0
    %948 = vmatmul.mubr.bf16.gmra.mrb[0].mxu0 %v910
    %v949 = vpop.f32.mrb[0].mxu0
    %v950 = vadd.f32 %v120, %v949
    %v951 = vpop.f32.mrb[0].mxu0
    %v952 = vpop.f32.mrb[0].mxu0
    %v953 = vpop.f32.mrb[0].mxu0
    %954 = vdwg.mxu0
    %v955 = vsel %vm199, %v900, -inf
    %956 = vmax.xlane.f32.xlu0 %v955
    %v957 = vpop.xlane.xlu0 %956
    %v958 = vsel %vm199, %v950, -inf
    %959 = vmax.xlane.f32.xlu0 %v958
    %v960 = vpop.xlane.xlu0 %959
    %v961 = vsub.f32 %v900, %v957
    %v962 = vsub.f32 %v950, %v960
    %v963 = vmul.f32 %v961, 1.442695
    %v964 = vpow.pop %v963
    %v965 = vmul.f32 %v962, 1.442695
    %v966 = vpow.pop %v965
    %v967 = vsel %vm199, %v964, 0.0
    %968 = vadd.xlane.f32.xlu0 %v967
    %v969 = vpop.xlane.xlu0 %968
    %v970 = vsel %vm199, %v966, 0.0
    %971 = vadd.xlane.f32.xlu0 %v970
    %v972 = vpop.xlane.xlu0 %971
    %v973 = vrcp.pop %v969
    %v974 = vrcp.pop %v972
    %v975 = vmul.f32 %v964, %v973
    %v976 = vmul.f32 %v966, %v974
    %v977 = vpack.c.bf16 %v975, %v975
    %v978 = vpack.c.bf16 %v976, %v976
    %979 = vrot.lane.b32.xlu0 %v195, 40
    %v980 = vpop.permute.xlu0 %979
    %v982 = vsel %vm199, %v977, 0
    %v985 = vsel %vm323, %v980, 0
    %987 = vmatprep.subr.bf16.mxu0 0
    %988 = vmatpush1.bf16.msra.mxu0 %v985
    %989 = vmatprep.subr.bf16.mxu0 0
    %990 = vmatpush1.bf16.msra.mxu0 0
    %991 = vmatprep.subr.bf16.mxu0 0
    %992 = vmatpush1.bf16.msra.mxu0 0
    %993 = vmatprep.subr.bf16.mxu0 0
    %994 = vmatpush1.bf16.msra.mxu0 0
    %995 = vmatprep.subr.bf16.mxu0 0
    %996 = vmatpush1.bf16.msra.mxu0 0
    %997 = vmatprep.subr.bf16.mxu0 0
    %998 = vmatpush1.bf16.msra.mxu0 0
    %999 = vmatprep.subr.bf16.mxu0 0
    %1000 = vmatpush1.bf16.msra.mxu0 0
    %1001 = vmatprep.subr.bf16.mxu0 0
    %1002 = vmatpush1.bf16.msra.mxu0 0
    %1003 = vmatprep.subr.bf16.mxu0 0
    %1004 = vmatpush1.bf16.msra.mxu0 0
    %1005 = vmatprep.subr.bf16.mxu0 0
    %1006 = vmatpush1.bf16.msra.mxu0 0
    %1007 = vmatprep.subr.bf16.mxu0 0
    %1008 = vmatpush1.bf16.msra.mxu0 0
    %1009 = vmatprep.subr.bf16.mxu0 0
    %1010 = vmatpush1.bf16.msra.mxu0 0
    %1011 = vmatprep.subr.bf16.mxu0 0
    %1012 = vmatpush1.bf16.msra.mxu0 0
    %1013 = vmatprep.subr.bf16.mxu0 0
    %1014 = vmatpush1.bf16.msra.mxu0 0
    %1015 = vmatprep.subr.bf16.mxu0 0
    %1016 = vmatpush1.bf16.msra.mxu0 0
    %1017 = vmatprep.subr.bf16.mxu0 0
    %1018 = vmatpush1.bf16.msra.mxu0 0
    %1019 = vmatprep.mubr.bf16.mxu0 0
    %1020 = vmatmul.mubr.bf16.gmra.mrb[0].mxu0 %v982
    %v1021 = vpop.f32.mrb[0].mxu0
    %v1022 = vadd.f32 0.0, %v1021
    %v1023 = vpop.f32.mrb[0].mxu0
    %v1024 = vpop.f32.mrb[0].mxu0
    %v1025 = vpop.f32.mrb[0].mxu0
    %1026 = vdwg.mxu0
    %1027 = vrot.lane.b32.xlu0 %v196, 40
    %v1028 = vpop.permute.xlu0 %1027
    %v1030 = vsel %vm199, %v978, 0
    %v1033 = vsel %vm323, %v1028, 0
    %1035 = vmatprep.subr.bf16.mxu0 0
    %1036 = vmatpush1.bf16.msra.mxu0 %v1033
    %1037 = vmatprep.subr.bf16.mxu0 0
    %1038 = vmatpush1.bf16.msra.mxu0 0
    %1039 = vmatprep.subr.bf16.mxu0 0
    %1040 = vmatpush1.bf16.msra.mxu0 0
    %1041 = vmatprep.subr.bf16.mxu0 0
    %1042 = vmatpush1.bf16.msra.mxu0 0
    %1043 = vmatprep.subr.bf16.mxu0 0
    %1044 = vmatpush1.bf16.msra.mxu0 0
    %1045 = vmatprep.subr.bf16.mxu0 0
    %1046 = vmatpush1.bf16.msra.mxu0 0
    %1047 = vmatprep.subr.bf16.mxu0 0
    %1048 = vmatpush1.bf16.msra.mxu0 0
    %1049 = vmatprep.subr.bf16.mxu0 0
    %1050 = vmatpush1.bf16.msra.mxu0 0
    %1051 = vmatprep.subr.bf16.mxu0 0
    %1052 = vmatpush1.bf16.msra.mxu0 0
    %1053 = vmatprep.subr.bf16.mxu0 0
    %1054 = vmatpush1.bf16.msra.mxu0 0
    %1055 = vmatprep.subr.bf16.mxu0 0
    %1056 = vmatpush1.bf16.msra.mxu0 0
    %1057 = vmatprep.subr.bf16.mxu0 0
    %1058 = vmatpush1.bf16.msra.mxu0 0
    %1059 = vmatprep.subr.bf16.mxu0 0
    %1060 = vmatpush1.bf16.msra.mxu0 0
    %1061 = vmatprep.subr.bf16.mxu0 0
    %1062 = vmatpush1.bf16.msra.mxu0 0
    %1063 = vmatprep.subr.bf16.mxu0 0
    %1064 = vmatpush1.bf16.msra.mxu0 0
    %1065 = vmatprep.subr.bf16.mxu0 0
    %1066 = vmatpush1.bf16.msra.mxu0 0
    %1067 = vmatprep.mubr.bf16.mxu0 0
    %1068 = vmatmul.mubr.bf16.gmra.mrb[0].mxu0 %v1030
    %v1069 = vpop.f32.mrb[0].mxu0
    %v1070 = vadd.f32 0.0, %v1069
    %v1071 = vpop.f32.mrb[0].mxu0
    %v1072 = vpop.f32.mrb[0].mxu0
    %v1073 = vpop.f32.mrb[0].mxu0
    %1074 = vdwg.mxu0
    %1077 = vrot.lane.b32.xlu0 %v582, 8
    %v1078 = vpop.permute.xlu0 %1077
    %1079 = vrot.lane.b32.xlu0 %v630, 8
    %v1080 = vpop.permute.xlu0 %1079
    %1085 = vrot.lane.b32.xlu0 %v802, 16
    %v1086 = vpop.permute.xlu0 %1085
    %1087 = vrot.lane.b32.xlu0 %v850, 16
    %v1088 = vpop.permute.xlu0 %1087
    %1093 = vrot.lane.b32.xlu0 %v1022, 24
    %v1094 = vpop.permute.xlu0 %1093
    %1095 = vrot.lane.b32.xlu0 %v1070, 24
    %v1096 = vpop.permute.xlu0 %1095
    %v1099 = vsel %vm199, %v362, %v1078
    %v1100 = vsel %vm199, %v410, %v1080
    %vm1101 = vcmask 130048
    %v1102 = vsel %vm1101, %v1099, %v1086
    %v1103 = vsel %vm1101, %v1100, %v1088
    %vm1104 = vcmask 195584
    %v1105 = vsel %vm1104, %v1102, %v1094
    %v1106 = vsel %vm1104, %v1103, %v1096
    %v1107 = vpack.c.bf16 %v1106, %v1105
    %v1108 = vld [vmem:[%s6] sm:$0xf]
    %v1109 = vld [vmem:[%s6 + $0x4] sm:$0xf]
    %v1110 = vld [vmem:[%s6 + $0x8] sm:$0xf]
    %v1111 = vld [vmem:[%s6 + $0xc] sm:$0xf]
    %v1112 = vld [vmem:[%s7] sm:$0x1]
    %v1114 = vlaneseq
    %v1115 = vshrl.u32 %v1114, 7
    %v1116 = vsub.s32 0, %v1115
    %v1117 = vrot.slane %v1112, %v1116
    %v1123 = vunpack.c.l.b16 %v1108
    %v1124 = vunpack.c.l.b16 %v1109
    %v1125 = vunpack.c.l.b16 %v1110
    %v1126 = vunpack.c.l.b16 %v1111
    %v1127 = vpack.c.b16 %v1124, %v1123
    %v1128 = vpack.c.b16 %v1126, %v1125
    %v1132 = vsel %vm65, %v1107, 0
    %1134 = vmatprep.subr.bf16.mxu0 0
    %1135 = vmatpush1.bf16.msra.mxu0 %v1127
    %1136 = vmatprep.subr.bf16.mxu0 0
    %1137 = vmatpush1.bf16.msra.mxu0 %v1128
    %1138 = vmatprep.subr.bf16.mxu0 0
    %1139 = vmatpush1.bf16.msra.mxu0 0
    %1140 = vmatprep.subr.bf16.mxu0 0
    %1141 = vmatpush1.bf16.msra.mxu0 0
    %1142 = vmatprep.subr.bf16.mxu0 0
    %1143 = vmatpush1.bf16.msra.mxu0 0
    %1144 = vmatprep.subr.bf16.mxu0 0
    %1145 = vmatpush1.bf16.msra.mxu0 0
    %1146 = vmatprep.subr.bf16.mxu0 0
    %1147 = vmatpush1.bf16.msra.mxu0 0
    %1148 = vmatprep.subr.bf16.mxu0 0
    %1149 = vmatpush1.bf16.msra.mxu0 0
    %1150 = vmatprep.subr.bf16.mxu0 0
    %1151 = vmatpush1.bf16.msra.mxu0 0
    %1152 = vmatprep.subr.bf16.mxu0 0
    %1153 = vmatpush1.bf16.msra.mxu0 0
    %1154 = vmatprep.subr.bf16.mxu0 0
    %1155 = vmatpush1.bf16.msra.mxu0 0
    %1156 = vmatprep.subr.bf16.mxu0 0
    %1157 = vmatpush1.bf16.msra.mxu0 0
    %1158 = vmatprep.subr.bf16.mxu0 0
    %1159 = vmatpush1.bf16.msra.mxu0 0
    %1160 = vmatprep.subr.bf16.mxu0 0
    %1161 = vmatpush1.bf16.msra.mxu0 0
    %1162 = vmatprep.subr.bf16.mxu0 0
    %1163 = vmatpush1.bf16.msra.mxu0 0
    %1164 = vmatprep.subr.bf16.mxu0 0
    %1165 = vmatpush1.bf16.msra.mxu0 0
    %1166 = vmatprep.mubr.bf16.mxu0 0
    %1167 = vmatmul.mubr.bf16.gmra.mrb[0].mxu0 %v1132
    %v1168 = vpop.f32.mrb[0].mxu0
    %v1169 = vadd.f32 %v1117, %v1168
    %v1170 = vpop.f32.mrb[0].mxu0
    %v1171 = vpop.f32.mrb[0].mxu0
    %v1172 = vadd.f32 %v1117, %v1171
    %v1173 = vpop.f32.mrb[0].mxu0
    %1174 = vdwg.mxu0
    %v1175 = vadd.f32 %v107, %v1169
    %v1176 = vadd.f32 %v108, %v1172
    %v1177 = vld [vmem:[%s8] sm:$0x1]
    %v1178 = vld [vmem:[%s9] sm:$0x1]
    %v1179 = vsel %vm65, %v1175, 0.0
    %1180 = vadd.xlane.f32.xlu0 %v1179
    %v1181 = vpop.xlane.xlu0 %1180
    %v1182 = vsel %vm65, %v1176, 0.0
    %1183 = vadd.xlane.f32.xlu0 %v1182
    %v1184 = vpop.xlane.xlu0 %1183
    %v1185 = vmul.f32 %v1181, %v72
    %v1186 = vmul.f32 %v1184, %v72
    %v1187 = vsub.f32 %v1175, %v1185
    %v1188 = vsub.f32 %v1176, %v1186
    %v1189 = vmul.f32 %v1187, %v1187
    %v1190 = vmul.f32 %v1188, %v1188
    %v1191 = vsel %vm65, %v1189, 0.0
    %1192 = vadd.xlane.f32.xlu0 %v1191
    %v1193 = vpop.xlane.xlu0 %1192
    %v1194 = vsel %vm65, %v1190, 0.0
    %1195 = vadd.xlane.f32.xlu0 %v1194
    %v1196 = vpop.xlane.xlu0 %1195
    %v1197 = vmul.f32 %v1193, %v72
    %v1198 = vmul.f32 %v1196, %v72
    %v1199 = vadd.f32 %v1197, 1e-12
    %v1200 = vadd.f32 %v1198, 1e-12
    %v1201 = vrsqrt.pop %v1199
    %v1202 = vrsqrt.pop %v1200
    %v1203 = vmul.f32 %v1187, %v1201
    %v1204 = vmul.f32 %v1188, %v1202
    %v1206 = vlaneseq
    %v1207 = vshrl.u32 %v1206, 7
    %v1208 = vsub.s32 0, %v1207
    %v1209 = vrot.slane %v1177, %v1208
    %v1211 = vmul.f32 %v1203, %v1209
    %v1212 = vmul.f32 %v1204, %v1209
    %v1214 = vlaneseq
    %v1215 = vshrl.u32 %v1214, 7
    %v1216 = vsub.s32 0, %v1215
    %v1217 = vrot.slane %v1178, %v1216
    %v1219 = vadd.f32 %v1211, %v1217
    %v1220 = vadd.f32 %v1212, %v1217
    %v1221 = vpack.c.bf16 %v1220, %v1219
    %v1222 = vld [vmem:[%s10] sm:$0xf]
    %v1223 = vld [vmem:[%s10 + $0x4] sm:$0xf]
    %v1224 = vld [vmem:[%s10 + $0x8] sm:$0xf]
    %v1225 = vld [vmem:[%s10 + $0xc] sm:$0xf]
    %v1226 = vld [vmem:[%s11] sm:$0x1]
    %v1228 = vlaneseq
    %v1229 = vshrl.u32 %v1228, 7
    %v1230 = vsub.s32 0, %v1229
    %v1231 = vrot.slane %v1226, %v1230
    %v1237 = vunpack.c.l.b16 %v1222
    %v1238 = vunpack.c.l.b16 %v1223
    %v1239 = vunpack.c.l.b16 %v1224
    %v1240 = vunpack.c.l.b16 %v1225
    %v1241 = vpack.c.b16 %v1238, %v1237
    %v1242 = vpack.c.b16 %v1240, %v1239
    %v1246 = vsel %vm65, %v1221, 0
    %1248 = vmatprep.subr.bf16.mxu0 0
    %1249 = vmatpush1.bf16.msra.mxu0 %v1241
    %1250 = vmatprep.subr.bf16.mxu0 0
    %1251 = vmatpush1.bf16.msra.mxu0 %v1242
    %1252 = vmatprep.subr.bf16.mxu0 0
    %1253 = vmatpush1.bf16.msra.mxu0 0
    %1254 = vmatprep.subr.bf16.mxu0 0
    %1255 = vmatpush1.bf16.msra.mxu0 0
    %1256 = vmatprep.subr.bf16.mxu0 0
    %1257 = vmatpush1.bf16.msra.mxu0 0
    %1258 = vmatprep.subr.bf16.mxu0 0
    %1259 = vmatpush1.bf16.msra.mxu0 0
    %1260 = vmatprep.subr.bf16.mxu0 0
    %1261 = vmatpush1.bf16.msra.mxu0 0
    %1262 = vmatprep.subr.bf16.mxu0 0
    %1263 = vmatpush1.bf16.msra.mxu0 0
    %1264 = vmatprep.subr.bf16.mxu0 0
    %1265 = vmatpush1.bf16.msra.mxu0 0
    %1266 = vmatprep.subr.bf16.mxu0 0
    %1267 = vmatpush1.bf16.msra.mxu0 0
    %1268 = vmatprep.subr.bf16.mxu0 0
    %1269 = vmatpush1.bf16.msra.mxu0 0
    %1270 = vmatprep.subr.bf16.mxu0 0
    %1271 = vmatpush1.bf16.msra.mxu0 0
    %1272 = vmatprep.subr.bf16.mxu0 0
    %1273 = vmatpush1.bf16.msra.mxu0 0
    %1274 = vmatprep.subr.bf16.mxu0 0
    %1275 = vmatpush1.bf16.msra.mxu0 0
    %1276 = vmatprep.subr.bf16.mxu0 0
    %1277 = vmatpush1.bf16.msra.mxu0 0
    %1278 = vmatprep.subr.bf16.mxu0 0
    %1279 = vmatpush1.bf16.msra.mxu0 0
    %1280 = vmatprep.mubr.bf16.mxu0 0
    %1281 = vmatmul.mubr.bf16.gmra.mrb[0].mxu0 %v1246
    %v1282 = vpop.f32.mrb[0].mxu0
    %v1283 = vadd.f32 %v1231, %v1282
    %v1284 = vpop.f32.mrb[0].mxu0
    %v1285 = vpop.f32.mrb[0].mxu0
    %v1286 = vadd.f32 %v1231, %v1285
    %v1287 = vpop.f32.mrb[0].mxu0
    %1288 = vdwg.mxu0
    %v1289 = vmul.f32 %v1283, 0.5
    %v1290 = vmul.f32 %v1286, 0.5
    %v1291 = vmul.f32 %v1283, 0.044715
    %v1292 = vmul.f32 %v1286, 0.044715
    %v1293 = vmul.f32 %v1291, %v1283
    %v1294 = vmul.f32 %v1292, %v1286
    %v1295 = vmul.f32 %v1293, %v1283
    %v1296 = vmul.f32 %v1294, %v1286
    %v1297 = vadd.f32 %v1283, %v1295
    %v1298 = vadd.f32 %v1286, %v1296
    %v1299 = vmul.f32 %v1297, 0.7978846
    %v1300 = vmul.f32 %v1298, 0.7978846
    %v1301 = vtanh.pop %v1299
    %v1302 = vtanh.pop %v1300
    %v1303 = vadd.f32 %v1301, 1.0
    %v1304 = vadd.f32 %v1302, 1.0
    %v1305 = vmul.f32 %v1289, %v1303
    %v1306 = vmul.f32 %v1290, %v1304
    %v1307 = vpack.c.bf16 %v1306, %v1305
    %v1308 = vld [vmem:[%s12] sm:$0xf]
    %v1309 = vld [vmem:[%s12 + $0x4] sm:$0xf]
    %v1310 = vld [vmem:[%s12 + $0x8] sm:$0xf]
    %v1311 = vld [vmem:[%s12 + $0xc] sm:$0xf]
    %v1312 = vld [vmem:[%s12 + $0x10] sm:$0xf]
    %v1313 = vld [vmem:[%s12 + $0x14] sm:$0xf]
    %v1314 = vld [vmem:[%s12 + $0x18] sm:$0xf]
    %v1315 = vld [vmem:[%s12 + $0x1c] sm:$0xf]
    %v1316 = vld [vmem:[%s13] sm:$0x1]
    %v1318 = vlaneseq
    %v1319 = vshrl.u32 %v1318, 7
    %v1320 = vsub.s32 0, %v1319
    %v1321 = vrot.slane %v1316, %v1320
    %v1331 = vunpack.c.l.b16 %v1308
    %v1332 = vunpack.c.l.b16 %v1309
    %v1333 = vunpack.c.l.b16 %v1310
    %v1334 = vunpack.c.l.b16 %v1311
    %v1335 = vunpack.c.l.b16 %v1312
    %v1336 = vunpack.c.l.b16 %v1313
    %v1337 = vunpack.c.l.b16 %v1314
    %v1338 = vunpack.c.l.b16 %v1315
    %v1339 = vpack.c.b16 %v1332, %v1331
    %v1340 = vpack.c.b16 %v1334, %v1333
    %v1341 = vpack.c.b16 %v1336, %v1335
    %v1342 = vpack.c.b16 %v1338, %v1337
    %vm1347 = vcmask 523264
    %v1349 = vsel %vm1347, %v1307, 0
    %1351 = vmatprep.subr.bf16.mxu0 0
    %1352 = vmatpush1.bf16.msra.mxu0 %v1339
    %1353 = vmatprep.subr.bf16.mxu0 0
    %1354 = vmatpush1.bf16.msra.mxu0 %v1340
    %1355 = vmatprep.subr.bf16.mxu0 0
    %1356 = vmatpush1.bf16.msra.mxu0 %v1341
    %1357 = vmatprep.subr.bf16.mxu0 0
    %1358 = vmatpush1.bf16.msra.mxu0 %v1342
    %1359 = vmatprep.subr.bf16.mxu0 0
    %1360 = vmatpush1.bf16.msra.mxu0 0
    %1361 = vmatprep.subr.bf16.mxu0 0
    %1362 = vmatpush1.bf16.msra.mxu0 0
    %1363 = vmatprep.subr.bf16.mxu0 0
    %1364 = vmatpush1.bf16.msra.mxu0 0
    %1365 = vmatprep.subr.bf16.mxu0 0
    %1366 = vmatpush1.bf16.msra.mxu0 0
    %1367 = vmatprep.subr.bf16.mxu0 0
    %1368 = vmatpush1.bf16.msra.mxu0 0
    %1369 = vmatprep.subr.bf16.mxu0 0
    %1370 = vmatpush1.bf16.msra.mxu0 0
    %1371 = vmatprep.subr.bf16.mxu0 0
    %1372 = vmatpush1.bf16.msra.mxu0 0
    %1373 = vmatprep.subr.bf16.mxu0 0
    %1374 = vmatpush1.bf16.msra.mxu0 0
    %1375 = vmatprep.subr.bf16.mxu0 0
    %1376 = vmatpush1.bf16.msra.mxu0 0
    %1377 = vmatprep.subr.bf16.mxu0 0
    %1378 = vmatpush1.bf16.msra.mxu0 0
    %1379 = vmatprep.subr.bf16.mxu0 0
    %1380 = vmatpush1.bf16.msra.mxu0 0
    %1381 = vmatprep.subr.bf16.mxu0 0
    %1382 = vmatpush1.bf16.msra.mxu0 0
    %1383 = vmatprep.mubr.bf16.mxu0 0
    %1384 = vmatmul.mubr.bf16.gmra.mrb[0].mxu0 %v1349
    %v1385 = vpop.f32.mrb[0].mxu0
    %v1386 = vadd.f32 %v1321, %v1385
    %v1387 = vpop.f32.mrb[0].mxu0
    %v1388 = vpop.f32.mrb[0].mxu0
    %v1389 = vadd.f32 %v1321, %v1388
    %v1390 = vpop.f32.mrb[0].mxu0
    %1391 = vdwg.mxu0
    %v1392 = vadd.f32 %v1219, %v1386
    %v1393 = vadd.f32 %v1220, %v1389
    %v1394 = vld [vmem:[%s14] sm:$0x1]
    %v1395 = vld [vmem:[%s15] sm:$0x1]
    %v1396 = vsel %vm65, %v1392, 0.0
    %1397 = vadd.xlane.f32.xlu0 %v1396
    %v1398 = vpop.xlane.xlu0 %1397
    %v1399 = vsel %vm65, %v1393, 0.0
    %1400 = vadd.xlane.f32.xlu0 %v1399
    %v1401 = vpop.xlane.xlu0 %1400
    %v1402 = vmul.f32 %v1398, %v72
    %v1403 = vmul.f32 %v1401, %v72
    %v1404 = vsub.f32 %v1392, %v1402
    %v1405 = vsub.f32 %v1393, %v1403
    %v1406 = vmul.f32 %v1404, %v1404
    %v1407 = vmul.f32 %v1405, %v1405
    %v1408 = vsel %vm65, %v1406, 0.0
    %1409 = vadd.xlane.f32.xlu0 %v1408
    %v1410 = vpop.xlane.xlu0 %1409
    %v1411 = vsel %vm65, %v1407, 0.0
    %1412 = vadd.xlane.f32.xlu0 %v1411
    %v1413 = vpop.xlane.xlu0 %1412
    %v1414 = vmul.f32 %v1410, %v72
    %v1415 = vmul.f32 %v1413, %v72
    %v1416 = vadd.f32 %v1414, 1e-12
    %v1417 = vadd.f32 %v1415, 1e-12
    %v1418 = vrsqrt.pop %v1416
    %v1419 = vrsqrt.pop %v1417
    %v1420 = vmul.f32 %v1404, %v1418
    %v1421 = vmul.f32 %v1405, %v1419
    %v1423 = vlaneseq
    %v1424 = vshrl.u32 %v1423, 7
    %v1425 = vsub.s32 0, %v1424
    %v1426 = vrot.slane %v1394, %v1425
    %v1428 = vmul.f32 %v1420, %v1426
    %v1429 = vmul.f32 %v1421, %v1426
    %v1431 = vlaneseq
    %v1432 = vshrl.u32 %v1431, 7
    %v1433 = vsub.s32 0, %v1432
    %v1434 = vrot.slane %v1395, %v1433
    %v1436 = vadd.f32 %v1428, %v1434
    %v1437 = vadd.f32 %v1429, %v1434
    %v1438 = vpack.c.bf16 %v1437, %v1436
    %s1439 = scalar_lea.vmem %s4, 16
    %v1440 = vld [vmem:[%s1439] sm:$0xf]
    %v1441 = vld [vmem:[%s1439 + $0x4] sm:$0xf]
    %v1442 = vld [vmem:[%s1439 + $0x8] sm:$0xf]
    %v1443 = vld [vmem:[%s1439 + $0xc] sm:$0xf]
    %s1444 = scalar_lea.vmem %s5, 1
    %v1445 = vld [vmem:[%s1444] sm:$0x1]
    %v1447 = vlaneseq
    %v1448 = vshrl.u32 %v1447, 7
    %v1449 = vsub.s32 0, %v1448
    %v1450 = vrot.slane %v1445, %v1449
    %v1456 = vunpack.c.l.b16 %v1440
    %v1457 = vunpack.c.l.b16 %v1441
    %v1458 = vunpack.c.l.b16 %v1442
    %v1459 = vunpack.c.l.b16 %v1443
    %v1460 = vpack.c.b16 %v1457, %v1456
    %v1461 = vpack.c.b16 %v1459, %v1458
    %v1465 = vsel %vm65, %v1438, 0
    %1467 = vmatprep.subr.bf16.mxu0 0
    %1468 = vmatpush1.bf16.msra.mxu0 %v1460
    %1469 = vmatprep.subr.bf16.mxu0 0
    %1470 = vmatpush1.bf16.msra.mxu0 %v1461
    %1471 = vmatprep.subr.bf16.mxu0 0
    %1472 = vmatpush1.bf16.msra.mxu0 0
    %1473 = vmatprep.subr.bf16.mxu0 0
    %1474 = vmatpush1.bf16.msra.mxu0 0
    %1475 = vmatprep.subr.bf16.mxu0 0
    %1476 = vmatpush1.bf16.msra.mxu0 0
    %1477 = vmatprep.subr.bf16.mxu0 0
    %1478 = vmatpush1.bf16.msra.mxu0 0
    %1479 = vmatprep.subr.bf16.mxu0 0
    %1480 = vmatpush1.bf16.msra.mxu0 0
    %1481 = vmatprep.subr.bf16.mxu0 0
    %1482 = vmatpush1.bf16.msra.mxu0 0
    %1483 = vmatprep.subr.bf16.mxu0 0
    %1484 = vmatpush1.bf16.msra.mxu0 0
    %1485 = vmatprep.subr.bf16.mxu0 0
    %1486 = vmatpush1.bf16.msra.mxu0 0
    %1487 = vmatprep.subr.bf16.mxu0 0
    %1488 = vmatpush1.bf16.msra.mxu0 0
    %1489 = vmatprep.subr.bf16.mxu0 0
    %1490 = vmatpush1.bf16.msra.mxu0 0
    %1491 = vmatprep.subr.bf16.mxu0 0
    %1492 = vmatpush1.bf16.msra.mxu0 0
    %1493 = vmatprep.subr.bf16.mxu0 0
    %1494 = vmatpush1.bf16.msra.mxu0 0
    %1495 = vmatprep.subr.bf16.mxu0 0
    %1496 = vmatpush1.bf16.msra.mxu0 0
    %1497 = vmatprep.subr.bf16.mxu0 0
    %1498 = vmatpush1.bf16.msra.mxu0 0
    %1499 = vmatprep.mubr.bf16.mxu0 0
    %1500 = vmatmul.mubr.bf16.gmra.mrb[0].mxu0 %v1465
    %v1501 = vpop.f32.mrb[0].mxu0
    %v1502 = vadd.f32 %v1450, %v1501
    %v1503 = vpop.f32.mrb[0].mxu0
    %v1504 = vpop.f32.mrb[0].mxu0
    %v1505 = vadd.f32 %v1450, %v1504
    %v1506 = vpop.f32.mrb[0].mxu0
    %1507 = vdwg.mxu0
    %v1508 = vpack.c.bf16 %v1505, %v1502
    %v1510 = vunpack.c.l.b16 %v1508
    %v1511 = vunpack.c.h.b16 %v1508
    %v1512 = vpack.c.b16 %v1510, %v1510
    %v1513 = vpack.c.b16 %v1511, %v1511
    %1514 = vrot.lane.b32.xlu0 %v1512, 96
    %v1515 = vpop.permute.xlu0 %1514
    %v1517 = vsel %vm199, %v1512, 0
    %v1520 = vsel %vm199, %v1515, 0
    %1522 = vmatprep.subr.bf16.mxu0 0
    %1523 = vmatpush1.bf16.xpose.msra.mxu0 %v1520
    %1524 = vmatprep.subr.bf16.mxu0 0
    %1525 = vmatpush1.bf16.xpose.msra.mxu0 0
    %1526 = vmatprep.subr.bf16.mxu0 0
    %1527 = vmatpush1.bf16.xpose.msra.mxu0 0
    %1528 = vmatprep.subr.bf16.mxu0 0
    %1529 = vmatpush1.bf16.xpose.msra.mxu0 0
    %1530 = vmatprep.subr.bf16.mxu0 0
    %1531 = vmatpush1.bf16.xpose.msra.mxu0 0
    %1532 = vmatprep.subr.bf16.mxu0 0
    %1533 = vmatpush1.bf16.xpose.msra.mxu0 0
    %1534 = vmatprep.subr.bf16.mxu0 0
    %1535 = vmatpush1.bf16.xpose.msra.mxu0 0
    %1536 = vmatprep.subr.bf16.mxu0 0
    %1537 = vmatpush1.bf16.xpose.msra.mxu0 0
    %1538 = vmatprep.subr.bf16.mxu0 0
    %1539 = vmatpush1.bf16.xpose.msra.mxu0 0
    %1540 = vmatprep.subr.bf16.mxu0 0
    %1541 = vmatpush1.bf16.xpose.msra.mxu0 0
    %1542 = vmatprep.subr.bf16.mxu0 0
    %1543 = vmatpush1.bf16.xpose.msra.mxu0 0
    %1544 = vmatprep.subr.bf16.mxu0 0
    %1545 = vmatpush1.bf16.xpose.msra.mxu0 0
    %1546 = vmatprep.subr.bf16.mxu0 0
    %1547 = vmatpush1.bf16.xpose.msra.mxu0 0
    %1548 = vmatprep.subr.bf16.mxu0 0
    %1549 = vmatpush1.bf16.xpose.msra.mxu0 0
    %1550 = vmatprep.subr.bf16.mxu0 0
    %1551 = vmatpush1.bf16.xpose.msra.mxu0 0
    %1552 = vmatprep.subr.bf16.mxu0 0
    %1553 = vmatpush1.bf16.xpose.msra.mxu0 0
    %1554 = vmatprep.mubr.bf16.mxu0 0
    %1555 = vmatmul.mubr.bf16.gmra.mrb[0].mxu0 %v1517
    %v1556 = vpop.f32.mrb[0].mxu0
    %v1557 = vadd.f32 %v116, %v1556
    %v1558 = vpop.f32.mrb[0].mxu0
    %v1559 = vpop.f32.mrb[0].mxu0
    %v1560 = vpop.f32.mrb[0].mxu0
    %1561 = vdwg.mxu0
    %1562 = vrot.lane.b32.xlu0 %v1513, 96
    %v1563 = vpop.permute.xlu0 %1562
    %v1565 = vsel %vm199, %v1513, 0
    %v1568 = vsel %vm199, %v1563, 0
    %1570 = vmatprep.subr.bf16.mxu0 0
    %1571 = vmatpush1.bf16.xpose.msra.mxu0 %v1568
    %1572 = vmatprep.subr.bf16.mxu0 0
    %1573 = vmatpush1.bf16.xpose.msra.mxu0 0
    %1574 = vmatprep.subr.bf16.mxu0 0
    %1575 = vmatpush1.bf16.xpose.msra.mxu0 0
    %1576 = vmatprep.subr.bf16.mxu0 0
    %1577 = vmatpush1.bf16.xpose.msra.mxu0 0
    %1578 = vmatprep.subr.bf16.mxu0 0
    %1579 = vmatpush1.bf16.xpose.msra.mxu0 0
    %1580 = vmatprep.subr.bf16.mxu0 0
    %1581 = vmatpush1.bf16.xpose.msra.mxu0 0
    %1582 = vmatprep.subr.bf16.mxu0 0
    %1583 = vmatpush1.bf16.xpose.msra.mxu0 0
    %1584 = vmatprep.subr.bf16.mxu0 0
    %1585 = vmatpush1.bf16.xpose.msra.mxu0 0
    %1586 = vmatprep.subr.bf16.mxu0 0
    %1587 = vmatpush1.bf16.xpose.msra.mxu0 0
    %1588 = vmatprep.subr.bf16.mxu0 0
    %1589 = vmatpush1.bf16.xpose.msra.mxu0 0
    %1590 = vmatprep.subr.bf16.mxu0 0
    %1591 = vmatpush1.bf16.xpose.msra.mxu0 0
    %1592 = vmatprep.subr.bf16.mxu0 0
    %1593 = vmatpush1.bf16.xpose.msra.mxu0 0
    %1594 = vmatprep.subr.bf16.mxu0 0
    %1595 = vmatpush1.bf16.xpose.msra.mxu0 0
    %1596 = vmatprep.subr.bf16.mxu0 0
    %1597 = vmatpush1.bf16.xpose.msra.mxu0 0
    %1598 = vmatprep.subr.bf16.mxu0 0
    %1599 = vmatpush1.bf16.xpose.msra.mxu0 0
    %1600 = vmatprep.subr.bf16.mxu0 0
    %1601 = vmatpush1.bf16.xpose.msra.mxu0 0
    %1602 = vmatprep.mubr.bf16.mxu0 0
    %1603 = vmatmul.mubr.bf16.gmra.mrb[0].mxu0 %v1565
    %v1604 = vpop.f32.mrb[0].mxu0
    %v1605 = vadd.f32 %v120, %v1604
    %v1606 = vpop.f32.mrb[0].mxu0
    %v1607 = vpop.f32.mrb[0].mxu0
    %v1608 = vpop.f32.mrb[0].mxu0
    %1609 = vdwg.mxu0
    %v1610 = vsel %vm199, %v1557, -inf
    %1611 = vmax.xlane.f32.xlu0 %v1610
    %v1612 = vpop.xlane.xlu0 %1611
    %v1613 = vsel %vm199, %v1605, -inf
    %1614 = vmax.xlane.f32.xlu0 %v1613
    %v1615 = vpop.xlane.xlu0 %1614
    %v1616 = vsub.f32 %v1557, %v1612
    %v1617 = vsub.f32 %v1605, %v1615
    %v1618 = vmul.f32 %v1616, 1.442695
    %v1619 = vpow.pop %v1618
    %v1620 = vmul.f32 %v1617, 1.442695
    %v1621 = vpow.pop %v1620
    %v1622 = vsel %vm199, %v1619, 0.0
    %1623 = vadd.xlane.f32.xlu0 %v1622
    %v1624 = vpop.xlane.xlu0 %1623
    %v1625 = vsel %vm199, %v1621, 0.0
    %1626 = vadd.xlane.f32.xlu0 %v1625
    %v1627 = vpop.xlane.xlu0 %1626
    %v1628 = vrcp.pop %v1624
    %v1629 = vrcp.pop %v1627
    %v1630 = vmul.f32 %v1619, %v1628
    %v1631 = vmul.f32 %v1621, %v1629
    %v1632 = vpack.c.bf16 %v1630, %v1630
    %v1633 = vpack.c.bf16 %v1631, %v1631
    %1634 = vrot.lane.b32.xlu0 %v1512, 64
    %v1635 = vpop.permute.xlu0 %1634
    %v1637 = vsel %vm199, %v1632, 0
    %v1640 = vsel %vm323, %v1635, 0
    %1642 = vmatprep.subr.bf16.mxu0 0
    %1643 = vmatpush1.bf16.msra.mxu0 %v1640
    %1644 = vmatprep.subr.bf16.mxu0 0
    %1645 = vmatpush1.bf16.msra.mxu0 0
    %1646 = vmatprep.subr.bf16.mxu0 0
    %1647 = vmatpush1.bf16.msra.mxu0 0
    %1648 = vmatprep.subr.bf16.mxu0 0
    %1649 = vmatpush1.bf16.msra.mxu0 0
    %1650 = vmatprep.subr.bf16.mxu0 0
    %1651 = vmatpush1.bf16.msra.mxu0 0
    %1652 = vmatprep.subr.bf16.mxu0 0
    %1653 = vmatpush1.bf16.msra.mxu0 0
    %1654 = vmatprep.subr.bf16.mxu0 0
    %1655 = vmatpush1.bf16.msra.mxu0 0
    %1656 = vmatprep.subr.bf16.mxu0 0
    %1657 = vmatpush1.bf16.msra.mxu0 0
    %1658 = vmatprep.subr.bf16.mxu0 0
    %1659 = vmatpush1.bf16.msra.mxu0 0
    %1660 = vmatprep.subr.bf16.mxu0 0
    %1661 = vmatpush1.bf16.msra.mxu0 0
    %1662 = vmatprep.subr.bf16.mxu0 0
    %1663 = vmatpush1.bf16.msra.mxu0 0
    %1664 = vmatprep.subr.bf16.mxu0 0
    %1665 = vmatpush1.bf16.msra.mxu0 0
    %1666 = vmatprep.subr.bf16.mxu0 0
    %1667 = vmatpush1.bf16.msra.mxu0 0
    %1668 = vmatprep.subr.bf16.mxu0 0
    %1669 = vmatpush1.bf16.msra.mxu0 0
    %1670 = vmatprep.subr.bf16.mxu0 0
    %1671 = vmatpush1.bf16.msra.mxu0 0
    %1672 = vmatprep.subr.bf16.mxu0 0
    %1673 = vmatpush1.bf16.msra.mxu0 0
    %1674 = vmatprep.mubr.bf16.mxu0 0
    %1675 = vmatmul.mubr.bf16.gmra.mrb[0].mxu0 %v1637
    %v1676 = vpop.f32.mrb[0].mxu0
    %v1677 = vadd.f32 0.0, %v1676
    %v1678 = vpop.f32.mrb[0].mxu0
    %v1679 = vpop.f32.mrb[0].mxu0
    %v1680 = vpop.f32.mrb[0].mxu0
    %1681 = vdwg.mxu0
    %1682 = vrot.lane.b32.xlu0 %v1513, 64
    %v1683 = vpop.permute.xlu0 %1682
    %v1685 = vsel %vm199, %v1633, 0
    %v1688 = vsel %vm323, %v1683, 0
    %1690 = vmatprep.subr.bf16.mxu0 0
    %1691 = vmatpush1.bf16.msra.mxu0 %v1688
    %1692 = vmatprep.subr.bf16.mxu0 0
    %1693 = vmatpush1.bf16.msra.mxu0 0
    %1694 = vmatprep.subr.bf16.mxu0 0
    %1695 = vmatpush1.bf16.msra.mxu0 0
    %1696 = vmatprep.subr.bf16.mxu0 0
    %1697 = vmatpush1.bf16.msra.mxu0 0
    %1698 = vmatprep.subr.bf16.mxu0 0
    %1699 = vmatpush1.bf16.msra.mxu0 0
    %1700 = vmatprep.subr.bf16.mxu0 0
    %1701 = vmatpush1.bf16.msra.mxu0 0
    %1702 = vmatprep.subr.bf16.mxu0 0
    %1703 = vmatpush1.bf16.msra.mxu0 0
    %1704 = vmatprep.subr.bf16.mxu0 0
    %1705 = vmatpush1.bf16.msra.mxu0 0
    %1706 = vmatprep.subr.bf16.mxu0 0
    %1707 = vmatpush1.bf16.msra.mxu0 0
    %1708 = vmatprep.subr.bf16.mxu0 0
    %1709 = vmatpush1.bf16.msra.mxu0 0
    %1710 = vmatprep.subr.bf16.mxu0 0
    %1711 = vmatpush1.bf16.msra.mxu0 0
    %1712 = vmatprep.subr.bf16.mxu0 0
    %1713 = vmatpush1.bf16.msra.mxu0 0
    %1714 = vmatprep.subr.bf16.mxu0 0
    %1715 = vmatpush1.bf16.msra.mxu0 0
    %1716 = vmatprep.subr.bf16.mxu0 0
    %1717 = vmatpush1.bf16.msra.mxu0 0
    %1718 = vmatprep.subr.bf16.mxu0 0
    %1719 = vmatpush1.bf16.msra.mxu0 0
    %1720 = vmatprep.subr.bf16.mxu0 0
    %1721 = vmatpush1.bf16.msra.mxu0 0
    %1722 = vmatprep.mubr.bf16.mxu0 0
    %1723 = vmatmul.mubr.bf16.gmra.mrb[0].mxu0 %v1685
    %v1724 = vpop.f32.mrb[0].mxu0
    %v1725 = vadd.f32 0.0, %v1724
    %v1726 = vpop.f32.mrb[0].mxu0
    %v1727 = vpop.f32.mrb[0].mxu0
    %v1728 = vpop.f32.mrb[0].mxu0
    %1729 = vdwg.mxu0
    %1730 = vrot.lane.b32.xlu0 %v1512, 120
    %v1731 = vpop.permute.xlu0 %1730
    %1732 = vrot.lane.b32.xlu0 %v1512, 88
    %v1733 = vpop.permute.xlu0 %1732
    %v1735 = vsel %vm199, %v1731, 0
    %v1738 = vsel %vm199, %v1733, 0
    %1740 = vmatprep.subr.bf16.mxu0 0
    %1741 = vmatpush1.bf16.xpose.msra.mxu0 %v1738
    %1742 = vmatprep.subr.bf16.mxu0 0
    %1743 = vmatpush1.bf16.xpose.msra.mxu0 0
    %1744 = vmatprep.subr.bf16.mxu0 0
    %1745 = vmatpush1.bf16.xpose.msra.mxu0 0
    %1746 = vmatprep.subr.bf16.mxu0 0
    %1747 = vmatpush1.bf16.xpose.msra.mxu0 0
    %1748 = vmatprep.subr.bf16.mxu0 0
    %1749 = vmatpush1.bf16.xpose.msra.mxu0 0
    %1750 = vmatprep.subr.bf16.mxu0 0
    %1751 = vmatpush1.bf16.xpose.msra.mxu0 0
    %1752 = vmatprep.subr.bf16.mxu0 0
    %1753 = vmatpush1.bf16.xpose.msra.mxu0 0
    %1754 = vmatprep.subr.bf16.mxu0 0
    %1755 = vmatpush1.bf16.xpose.msra.mxu0 0
    %1756 = vmatprep.subr.bf16.mxu0 0
    %1757 = vmatpush1.bf16.xpose.msra.mxu0 0
    %1758 = vmatprep.subr.bf16.mxu0 0
    %1759 = vmatpush1.bf16.xpose.msra.mxu0 0
    %1760 = vmatprep.subr.bf16.mxu0 0
    %1761 = vmatpush1.bf16.xpose.msra.mxu0 0
    %1762 = vmatprep.subr.bf16.mxu0 0
    %1763 = vmatpush1.bf16.xpose.msra.mxu0 0
    %1764 = vmatprep.subr.bf16.mxu0 0
    %1765 = vmatpush1.bf16.xpose.msra.mxu0 0
    %1766 = vmatprep.subr.bf16.mxu0 0
    %1767 = vmatpush1.bf16.xpose.msra.mxu0 0
    %1768 = vmatprep.subr.bf16.mxu0 0
    %1769 = vmatpush1.bf16.xpose.msra.mxu0 0
    %1770 = vmatprep.subr.bf16.mxu0 0
    %1771 = vmatpush1.bf16.xpose.msra.mxu0 0
    %1772 = vmatprep.mubr.bf16.mxu0 0
    %1773 = vmatmul.mubr.bf16.gmra.mrb[0].mxu0 %v1735
    %v1774 = vpop.f32.mrb[0].mxu0
    %v1775 = vadd.f32 %v116, %v1774
    %v1776 = vpop.f32.mrb[0].mxu0
    %v1777 = vpop.f32.mrb[0].mxu0
    %v1778 = vpop.f32.mrb[0].mxu0
    %1779 = vdwg.mxu0
    %1780 = vrot.lane.b32.xlu0 %v1513, 120
    %v1781 = vpop.permute.xlu0 %1780
    %1782 = vrot.lane.b32.xlu0 %v1513, 88
    %v1783 = vpop.permute.xlu0 %1782
    %v1785 = vsel %vm199, %v1781, 0
    %v1788 = vsel %vm199, %v1783, 0
    %1790 = vmatprep.subr.bf16.mxu0 0
    %1791 = vmatpush1.bf16.xpose.msra.mxu0 %v1788
    %1792 = vmatprep.subr.bf16.mxu0 0
    %1793 = vmatpush1.bf16.xpose.msra.mxu0 0
    %1794 = vmatprep.subr.bf16.mxu0 0
    %1795 = vmatpush1.bf16.xpose.msra.mxu0 0
    %1796 = vmatprep.subr.bf16.mxu0 0
    %1797 = vmatpush1.bf16.xpose.msra.mxu0 0
    %1798 = vmatprep.subr.bf16.mxu0 0
    %1799 = vmatpush1.bf16.xpose.msra.mxu0 0
    %1800 = vmatprep.subr.bf16.mxu0 0
    %1801 = vmatpush1.bf16.xpose.msra.mxu0 0
    %1802 = vmatprep.subr.bf16.mxu0 0
    %1803 = vmatpush1.bf16.xpose.msra.mxu0 0
    %1804 = vmatprep.subr.bf16.mxu0 0
    %1805 = vmatpush1.bf16.xpose.msra.mxu0 0
    %1806 = vmatprep.subr.bf16.mxu0 0
    %1807 = vmatpush1.bf16.xpose.msra.mxu0 0
    %1808 = vmatprep.subr.bf16.mxu0 0
    %1809 = vmatpush1.bf16.xpose.msra.mxu0 0
    %1810 = vmatprep.subr.bf16.mxu0 0
    %1811 = vmatpush1.bf16.xpose.msra.mxu0 0
    %1812 = vmatprep.subr.bf16.mxu0 0
    %1813 = vmatpush1.bf16.xpose.msra.mxu0 0
    %1814 = vmatprep.subr.bf16.mxu0 0
    %1815 = vmatpush1.bf16.xpose.msra.mxu0 0
    %1816 = vmatprep.subr.bf16.mxu0 0
    %1817 = vmatpush1.bf16.xpose.msra.mxu0 0
    %1818 = vmatprep.subr.bf16.mxu0 0
    %1819 = vmatpush1.bf16.xpose.msra.mxu0 0
    %1820 = vmatprep.subr.bf16.mxu0 0
    %1821 = vmatpush1.bf16.xpose.msra.mxu0 0
    %1822 = vmatprep.mubr.bf16.mxu0 0
    %1823 = vmatmul.mubr.bf16.gmra.mrb[0].mxu0 %v1785
    %v1824 = vpop.f32.mrb[0].mxu0
    %v1825 = vadd.f32 %v120, %v1824
    %v1826 = vpop.f32.mrb[0].mxu0
    %v1827 = vpop.f32.mrb[0].mxu0
    %v1828 = vpop.f32.mrb[0].mxu0
    %1829 = vdwg.mxu0
    %v1830 = vsel %vm199, %v1775, -inf
    %1831 = vmax.xlane.f32.xlu0 %v1830
    %v1832 = vpop.xlane.xlu0 %1831
    %v1833 = vsel %vm199, %v1825, -inf
    %1834 = vmax.xlane.f32.xlu0 %v1833
    %v1835 = vpop.xlane.xlu0 %1834
    %v1836 = vsub.f32 %v1775, %v1832
    %v1837 = vsub.f32 %v1825, %v1835
    %v1838 = vmul.f32 %v1836, 1.442695
    %v1839 = vpow.pop %v1838
    %v1840 = vmul.f32 %v1837, 1.442695
    %v1841 = vpow.pop %v1840
    %v1842 = vsel %vm199, %v1839, 0.0
    %1843 = vadd.xlane.f32.xlu0 %v1842
    %v1844 = vpop.xlane.xlu0 %1843
    %v1845 = vsel %vm199, %v1841, 0.0
    %1846 = vadd.xlane.f32.xlu0 %v1845
    %v1847 = vpop.xlane.xlu0 %1846
    %v1848 = vrcp.pop %v1844
    %v1849 = vrcp.pop %v1847
    %v1850 = vmul.f32 %v1839, %v1848
    %v1851 = vmul.f32 %v1841, %v1849
    %v1852 = vpack.c.bf16 %v1850, %v1850
    %v1853 = vpack.c.bf16 %v1851, %v1851
    %1854 = vrot.lane.b32.xlu0 %v1512, 56
    %v1855 = vpop.permute.xlu0 %1854
    %v1857 = vsel %vm199, %v1852, 0
    %v1860 = vsel %vm323, %v1855, 0
    %1862 = vmatprep.subr.bf16.mxu0 0
    %1863 = vmatpush1.bf16.msra.mxu0 %v1860
    %1864 = vmatprep.subr.bf16.mxu0 0
    %1865 = vmatpush1.bf16.msra.mxu0 0
    %1866 = vmatprep.subr.bf16.mxu0 0
    %1867 = vmatpush1.bf16.msra.mxu0 0
    %1868 = vmatprep.subr.bf16.mxu0 0
    %1869 = vmatpush1.bf16.msra.mxu0 0
    %1870 = vmatprep.subr.bf16.mxu0 0
    %1871 = vmatpush1.bf16.msra.mxu0 0
    %1872 = vmatprep.subr.bf16.mxu0 0
    %1873 = vmatpush1.bf16.msra.mxu0 0
    %1874 = vmatprep.subr.bf16.mxu0 0
    %1875 = vmatpush1.bf16.msra.mxu0 0
    %1876 = vmatprep.subr.bf16.mxu0 0
    %1877 = vmatpush1.bf16.msra.mxu0 0
    %1878 = vmatprep.subr.bf16.mxu0 0
    %1879 = vmatpush1.bf16.msra.mxu0 0
    %1880 = vmatprep.subr.bf16.mxu0 0
    %1881 = vmatpush1.bf16.msra.mxu0 0
    %1882 = vmatprep.subr.bf16.mxu0 0
    %1883 = vmatpush1.bf16.msra.mxu0 0
    %1884 = vmatprep.subr.bf16.mxu0 0
    %1885 = vmatpush1.bf16.msra.mxu0 0
    %1886 = vmatprep.subr.bf16.mxu0 0
    %1887 = vmatpush1.bf16.msra.mxu0 0
    %1888 = vmatprep.subr.bf16.mxu0 0
    %1889 = vmatpush1.bf16.msra.mxu0 0
    %1890 = vmatprep.subr.bf16.mxu0 0
    %1891 = vmatpush1.bf16.msra.mxu0 0
    %1892 = vmatprep.subr.bf16.mxu0 0
    %1893 = vmatpush1.bf16.msra.mxu0 0
    %1894 = vmatprep.mubr.bf16.mxu0 0
    %1895 = vmatmul.mubr.bf16.gmra.mrb[0].mxu0 %v1857
    %v1896 = vpop.f32.mrb[0].mxu0
    %v1897 = vadd.f32 0.0, %v1896
    %v1898 = vpop.f32.mrb[0].mxu0
    %v1899 = vpop.f32.mrb[0].mxu0
    %v1900 = vpop.f32.mrb[0].mxu0
    %1901 = vdwg.mxu0
    %1902 = vrot.lane.b32.xlu0 %v1513, 56
    %v1903 = vpop.permute.xlu0 %1902
    %v1905 = vsel %vm199, %v1853, 0
    %v1908 = vsel %vm323, %v1903, 0
    %1910 = vmatprep.subr.bf16.mxu0 0
    %1911 = vmatpush1.bf16.msra.mxu0 %v1908
    %1912 = vmatprep.subr.bf16.mxu0 0
    %1913 = vmatpush1.bf16.msra.mxu0 0
    %1914 = vmatprep.subr.bf16.mxu0 0
    %1915 = vmatpush1.bf16.msra.mxu0 0
    %1916 = vmatprep.subr.bf16.mxu0 0
    %1917 = vmatpush1.bf16.msra.mxu0 0
    %1918 = vmatprep.subr.bf16.mxu0 0
    %1919 = vmatpush1.bf16.msra.mxu0 0
    %1920 = vmatprep.subr.bf16.mxu0 0
    %1921 = vmatpush1.bf16.msra.mxu0 0
    %1922 = vmatprep.subr.bf16.mxu0 0
    %1923 = vmatpush1.bf16.msra.mxu0 0
    %1924 = vmatprep.subr.bf16.mxu0 0
    %1925 = vmatpush1.bf16.msra.mxu0 0
    %1926 = vmatprep.subr.bf16.mxu0 0
    %1927 = vmatpush1.bf16.msra.mxu0 0
    %1928 = vmatprep.subr.bf16.mxu0 0
    %1929 = vmatpush1.bf16.msra.mxu0 0
    %1930 = vmatprep.subr.bf16.mxu0 0
    %1931 = vmatpush1.bf16.msra.mxu0 0
    %1932 = vmatprep.subr.bf16.mxu0 0
    %1933 = vmatpush1.bf16.msra.mxu0 0
    %1934 = vmatprep.subr.bf16.mxu0 0
    %1935 = vmatpush1.bf16.msra.mxu0 0
    %1936 = vmatprep.subr.bf16.mxu0 0
    %1937 = vmatpush1.bf16.msra.mxu0 0
    %1938 = vmatprep.subr.bf16.mxu0 0
    %1939 = vmatpush1.bf16.msra.mxu0 0
    %1940 = vmatprep.subr.bf16.mxu0 0
    %1941 = vmatpush1.bf16.msra.mxu0 0
    %1942 = vmatprep.mubr.bf16.mxu0 0
    %1943 = vmatmul.mubr.bf16.gmra.mrb[0].mxu0 %v1905
    %v1944 = vpop.f32.mrb[0].mxu0
    %v1945 = vadd.f32 0.0, %v1944
    %v1946 = vpop.f32.mrb[0].mxu0
    %v1947 = vpop.f32.mrb[0].mxu0
    %v1948 = vpop.f32.mrb[0].mxu0
    %1949 = vdwg.mxu0
    %1950 = vrot.lane.b32.xlu0 %v1512, 112
    %v1951 = vpop.permute.xlu0 %1950
    %1952 = vrot.lane.b32.xlu0 %v1512, 80
    %v1953 = vpop.permute.xlu0 %1952
    %v1955 = vsel %vm199, %v1951, 0
    %v1958 = vsel %vm199, %v1953, 0
    %1960 = vmatprep.subr.bf16.mxu0 0
    %1961 = vmatpush1.bf16.xpose.msra.mxu0 %v1958
    %1962 = vmatprep.subr.bf16.mxu0 0
    %1963 = vmatpush1.bf16.xpose.msra.mxu0 0
    %1964 = vmatprep.subr.bf16.mxu0 0
    %1965 = vmatpush1.bf16.xpose.msra.mxu0 0
    %1966 = vmatprep.subr.bf16.mxu0 0
    %1967 = vmatpush1.bf16.xpose.msra.mxu0 0
    %1968 = vmatprep.subr.bf16.mxu0 0
    %1969 = vmatpush1.bf16.xpose.msra.mxu0 0
    %1970 = vmatprep.subr.bf16.mxu0 0
    %1971 = vmatpush1.bf16.xpose.msra.mxu0 0
    %1972 = vmatprep.subr.bf16.mxu0 0
    %1973 = vmatpush1.bf16.xpose.msra.mxu0 0
    %1974 = vmatprep.subr.bf16.mxu0 0
    %1975 = vmatpush1.bf16.xpose.msra.mxu0 0
    %1976 = vmatprep.subr.bf16.mxu0 0
    %1977 = vmatpush1.bf16.xpose.msra.mxu0 0
    %1978 = vmatprep.subr.bf16.mxu0 0
    %1979 = vmatpush1.bf16.xpose.msra.mxu0 0
    %1980 = vmatprep.subr.bf16.mxu0 0
    %1981 = vmatpush1.bf16.xpose.msra.mxu0 0
    %1982 = vmatprep.subr.bf16.mxu0 0
    %1983 = vmatpush1.bf16.xpose.msra.mxu0 0
    %1984 = vmatprep.subr.bf16.mxu0 0
    %1985 = vmatpush1.bf16.xpose.msra.mxu0 0
    %1986 = vmatprep.subr.bf16.mxu0 0
    %1987 = vmatpush1.bf16.xpose.msra.mxu0 0
    %1988 = vmatprep.subr.bf16.mxu0 0
    %1989 = vmatpush1.bf16.xpose.msra.mxu0 0
    %1990 = vmatprep.subr.bf16.mxu0 0
    %1991 = vmatpush1.bf16.xpose.msra.mxu0 0
    %1992 = vmatprep.mubr.bf16.mxu0 0
    %1993 = vmatmul.mubr.bf16.gmra.mrb[0].mxu0 %v1955
    %v1994 = vpop.f32.mrb[0].mxu0
    %v1995 = vadd.f32 %v116, %v1994
    %v1996 = vpop.f32.mrb[0].mxu0
    %v1997 = vpop.f32.mrb[0].mxu0
    %v1998 = vpop.f32.mrb[0].mxu0
    %1999 = vdwg.mxu0
    %2000 = vrot.lane.b32.xlu0 %v1513, 112
    %v2001 = vpop.permute.xlu0 %2000
    %2002 = vrot.lane.b32.xlu0 %v1513, 80
    %v2003 = vpop.permute.xlu0 %2002
    %v2005 = vsel %vm199, %v2001, 0
    %v2008 = vsel %vm199, %v2003, 0
    %2010 = vmatprep.subr.bf16.mxu0 0
    %2011 = vmatpush1.bf16.xpose.msra.mxu0 %v2008
    %2012 = vmatprep.subr.bf16.mxu0 0
    %2013 = vmatpush1.bf16.xpose.msra.mxu0 0
    %2014 = vmatprep.subr.bf16.mxu0 0
    %2015 = vmatpush1.bf16.xpose.msra.mxu0 0
    %2016 = vmatprep.subr.bf16.mxu0 0
    %2017 = vmatpush1.bf16.xpose.msra.mxu0 0
    %2018 = vmatprep.subr.bf16.mxu0 0
    %2019 = vmatpush1.bf16.xpose.msra.mxu0 0
    %2020 = vmatprep.subr.bf16.mxu0 0
    %2021 = vmatpush1.bf16.xpose.msra.mxu0 0
    %2022 = vmatprep.subr.bf16.mxu0 0
    %2023 = vmatpush1.bf16.xpose.msra.mxu0 0
    %2024 = vmatprep.subr.bf16.mxu0 0
    %2025 = vmatpush1.bf16.xpose.msra.mxu0 0
    %2026 = vmatprep.subr.bf16.mxu0 0
    %2027 = vmatpush1.bf16.xpose.msra.mxu0 0
    %2028 = vmatprep.subr.bf16.mxu0 0
    %2029 = vmatpush1.bf16.xpose.msra.mxu0 0
    %2030 = vmatprep.subr.bf16.mxu0 0
    %2031 = vmatpush1.bf16.xpose.msra.mxu0 0
    %2032 = vmatprep.subr.bf16.mxu0 0
    %2033 = vmatpush1.bf16.xpose.msra.mxu0 0
    %2034 = vmatprep.subr.bf16.mxu0 0
    %2035 = vmatpush1.bf16.xpose.msra.mxu0 0
    %2036 = vmatprep.subr.bf16.mxu0 0
    %2037 = vmatpush1.bf16.xpose.msra.mxu0 0
    %2038 = vmatprep.subr.bf16.mxu0 0
    %2039 = vmatpush1.bf16.xpose.msra.mxu0 0
    %2040 = vmatprep.subr.bf16.mxu0 0
    %2041 = vmatpush1.bf16.xpose.msra.mxu0 0
    %2042 = vmatprep.mubr.bf16.mxu0 0
    %2043 = vmatmul.mubr.bf16.gmra.mrb[0].mxu0 %v2005
    %v2044 = vpop.f32.mrb[0].mxu0
    %v2045 = vadd.f32 %v120, %v2044
    %v2046 = vpop.f32.mrb[0].mxu0
    %v2047 = vpop.f32.mrb[0].mxu0
    %v2048 = vpop.f32.mrb[0].mxu0
    %2049 = vdwg.mxu0
    %v2050 = vsel %vm199, %v1995, -inf
    %2051 = vmax.xlane.f32.xlu0 %v2050
    %v2052 = vpop.xlane.xlu0 %2051
    %v2053 = vsel %vm199, %v2045, -inf
    %2054 = vmax.xlane.f32.xlu0 %v2053
    %v2055 = vpop.xlane.xlu0 %2054
    %v2056 = vsub.f32 %v1995, %v2052
    %v2057 = vsub.f32 %v2045, %v2055
    %v2058 = vmul.f32 %v2056, 1.442695
    %v2059 = vpow.pop %v2058
    %v2060 = vmul.f32 %v2057, 1.442695
    %v2061 = vpow.pop %v2060
    %v2062 = vsel %vm199, %v2059, 0.0
    %2063 = vadd.xlane.f32.xlu0 %v2062
    %v2064 = vpop.xlane.xlu0 %2063
    %v2065 = vsel %vm199, %v2061, 0.0
    %2066 = vadd.xlane.f32.xlu0 %v2065
    %v2067 = vpop.xlane.xlu0 %2066
    %v2068 = vrcp.pop %v2064
    %v2069 = vrcp.pop %v2067
    %v2070 = vmul.f32 %v2059, %v2068
    %v2071 = vmul.f32 %v2061, %v2069
    %v2072 = vpack.c.bf16 %v2070, %v2070
    %v2073 = vpack.c.bf16 %v2071, %v2071
    %2074 = vrot.lane.b32.xlu0 %v1512, 48
    %v2075 = vpop.permute.xlu0 %2074
    %v2077 = vsel %vm199, %v2072, 0
    %v2080 = vsel %vm323, %v2075, 0
    %2082 = vmatprep.subr.bf16.mxu0 0
    %2083 = vmatpush1.bf16.msra.mxu0 %v2080
    %2084 = vmatprep.subr.bf16.mxu0 0
    %2085 = vmatpush1.bf16.msra.mxu0 0
    %2086 = vmatprep.subr.bf16.mxu0 0
    %2087 = vmatpush1.bf16.msra.mxu0 0
    %2088 = vmatprep.subr.bf16.mxu0 0
    %2089 = vmatpush1.bf16.msra.mxu0 0
    %2090 = vmatprep.subr.bf16.mxu0 0
    %2091 = vmatpush1.bf16.msra.mxu0 0
    %2092 = vmatprep.subr.bf16.mxu0 0
    %2093 = vmatpush1.bf16.msra.mxu0 0
    %2094 = vmatprep.subr.bf16.mxu0 0
    %2095 = vmatpush1.bf16.msra.mxu0 0
    %2096 = vmatprep.subr.bf16.mxu0 0
    %2097 = vmatpush1.bf16.msra.mxu0 0
    %2098 = vmatprep.subr.bf16.mxu0 0
    %2099 = vmatpush1.bf16.msra.mxu0 0
    %2100 = vmatprep.subr.bf16.mxu0 0
    %2101 = vmatpush1.bf16.msra.mxu0 0
    %2102 = vmatprep.subr.bf16.mxu0 0
    %2103 = vmatpush1.bf16.msra.mxu0 0
    %2104 = vmatprep.subr.bf16.mxu0 0
    %2105 = vmatpush1.bf16.msra.mxu0 0
    %2106 = vmatprep.subr.bf16.mxu0 0
    %2107 = vmatpush1.bf16.msra.mxu0 0
    %2108 = vmatprep.subr.bf16.mxu0 0
    %2109 = vmatpush1.bf16.msra.mxu0 0
    %2110 = vmatprep.subr.bf16.mxu0 0
    %2111 = vmatpush1.bf16.msra.mxu0 0
    %2112 = vmatprep.subr.bf16.mxu0 0
    %2113 = vmatpush1.bf16.msra.mxu0 0
    %2114 = vmatprep.mubr.bf16.mxu0 0
    %2115 = vmatmul.mubr.bf16.gmra.mrb[0].mxu0 %v2077
    %v2116 = vpop.f32.mrb[0].mxu0
    %v2117 = vadd.f32 0.0, %v2116
    %v2118 = vpop.f32.mrb[0].mxu0
    %v2119 = vpop.f32.mrb[0].mxu0
    %v2120 = vpop.f32.mrb[0].mxu0
    %2121 = vdwg.mxu0
    %2122 = vrot.lane.b32.xlu0 %v1513, 48
    %v2123 = vpop.permute.xlu0 %2122
    %v2125 = vsel %vm199, %v2073, 0
    %v2128 = vsel %vm323, %v2123, 0
    %2130 = vmatprep.subr.bf16.mxu0 0
    %2131 = vmatpush1.bf16.msra.mxu0 %v2128
    %2132 = vmatprep.subr.bf16.mxu0 0
    %2133 = vmatpush1.bf16.msra.mxu0 0
    %2134 = vmatprep.subr.bf16.mxu0 0
    %2135 = vmatpush1.bf16.msra.mxu0 0
    %2136 = vmatprep.subr.bf16.mxu0 0
    %2137 = vmatpush1.bf16.msra.mxu0 0
    %2138 = vmatprep.subr.bf16.mxu0 0
    %2139 = vmatpush1.bf16.msra.mxu0 0
    %2140 = vmatprep.subr.bf16.mxu0 0
    %2141 = vmatpush1.bf16.msra.mxu0 0
    %2142 = vmatprep.subr.bf16.mxu0 0
    %2143 = vmatpush1.bf16.msra.mxu0 0
    %2144 = vmatprep.subr.bf16.mxu0 0
    %2145 = vmatpush1.bf16.msra.mxu0 0
    %2146 = vmatprep.subr.bf16.mxu0 0
    %2147 = vmatpush1.bf16.msra.mxu0 0
    %2148 = vmatprep.subr.bf16.mxu0 0
    %2149 = vmatpush1.bf16.msra.mxu0 0
    %2150 = vmatprep.subr.bf16.mxu0 0
    %2151 = vmatpush1.bf16.msra.mxu0 0
    %2152 = vmatprep.subr.bf16.mxu0 0
    %2153 = vmatpush1.bf16.msra.mxu0 0
    %2154 = vmatprep.subr.bf16.mxu0 0
    %2155 = vmatpush1.bf16.msra.mxu0 0
    %2156 = vmatprep.subr.bf16.mxu0 0
    %2157 = vmatpush1.bf16.msra.mxu0 0
    %2158 = vmatprep.subr.bf16.mxu0 0
    %2159 = vmatpush1.bf16.msra.mxu0 0
    %2160 = vmatprep.subr.bf16.mxu0 0
    %2161 = vmatpush1.bf16.msra.mxu0 0
    %2162 = vmatprep.mubr.bf16.mxu0 0
    %2163 = vmatmul.mubr.bf16.gmra.mrb[0].mxu0 %v2125
    %v2164 = vpop.f32.mrb[0].mxu0
    %v2165 = vadd.f32 0.0, %v2164
    %v2166 = vpop.f32.mrb[0].mxu0
    %v2167 = vpop.f32.mrb[0].mxu0
    %v2168 = vpop.f32.mrb[0].mxu0
    %2169 = vdwg.mxu0
    %2170 = vrot.lane.b32.xlu0 %v1512, 104
    %v2171 = vpop.permute.xlu0 %2170
    %2172 = vrot.lane.b32.xlu0 %v1512, 72
    %v2173 = vpop.permute.xlu0 %2172
    %v2175 = vsel %vm199, %v2171, 0
    %v2178 = vsel %vm199, %v2173, 0
    %2180 = vmatprep.subr.bf16.mxu0 0
    %2181 = vmatpush1.bf16.xpose.msra.mxu0 %v2178
    %2182 = vmatprep.subr.bf16.mxu0 0
    %2183 = vmatpush1.bf16.xpose.msra.mxu0 0
    %2184 = vmatprep.subr.bf16.mxu0 0
    %2185 = vmatpush1.bf16.xpose.msra.mxu0 0
    %2186 = vmatprep.subr.bf16.mxu0 0
    %2187 = vmatpush1.bf16.xpose.msra.mxu0 0
    %2188 = vmatprep.subr.bf16.mxu0 0
    %2189 = vmatpush1.bf16.xpose.msra.mxu0 0
    %2190 = vmatprep.subr.bf16.mxu0 0
    %2191 = vmatpush1.bf16.xpose.msra.mxu0 0
    %2192 = vmatprep.subr.bf16.mxu0 0
    %2193 = vmatpush1.bf16.xpose.msra.mxu0 0
    %2194 = vmatprep.subr.bf16.mxu0 0
    %2195 = vmatpush1.bf16.xpose.msra.mxu0 0
    %2196 = vmatprep.subr.bf16.mxu0 0
    %2197 = vmatpush1.bf16.xpose.msra.mxu0 0
    %2198 = vmatprep.subr.bf16.mxu0 0
    %2199 = vmatpush1.bf16.xpose.msra.mxu0 0
    %2200 = vmatprep.subr.bf16.mxu0 0
    %2201 = vmatpush1.bf16.xpose.msra.mxu0 0
    %2202 = vmatprep.subr.bf16.mxu0 0
    %2203 = vmatpush1.bf16.xpose.msra.mxu0 0
    %2204 = vmatprep.subr.bf16.mxu0 0
    %2205 = vmatpush1.bf16.xpose.msra.mxu0 0
    %2206 = vmatprep.subr.bf16.mxu0 0
    %2207 = vmatpush1.bf16.xpose.msra.mxu0 0
    %2208 = vmatprep.subr.bf16.mxu0 0
    %2209 = vmatpush1.bf16.xpose.msra.mxu0 0
    %2210 = vmatprep.subr.bf16.mxu0 0
    %2211 = vmatpush1.bf16.xpose.msra.mxu0 0
    %2212 = vmatprep.mubr.bf16.mxu0 0
    %2213 = vmatmul.mubr.bf16.gmra.mrb[0].mxu0 %v2175
    %v2214 = vpop.f32.mrb[0].mxu0
    %v2215 = vadd.f32 %v116, %v2214
    %v2216 = vpop.f32.mrb[0].mxu0
    %v2217 = vpop.f32.mrb[0].mxu0
    %v2218 = vpop.f32.mrb[0].mxu0
    %2219 = vdwg.mxu0
    %2220 = vrot.lane.b32.xlu0 %v1513, 104
    %v2221 = vpop.permute.xlu0 %2220
    %2222 = vrot.lane.b32.xlu0 %v1513, 72
    %v2223 = vpop.permute.xlu0 %2222
    %v2225 = vsel %vm199, %v2221, 0
    %v2228 = vsel %vm199, %v2223, 0
    %2230 = vmatprep.subr.bf16.mxu0 0
    %2231 = vmatpush1.bf16.xpose.msra.mxu0 %v2228
    %2232 = vmatprep.subr.bf16.mxu0 0
    %2233 = vmatpush1.bf16.xpose.msra.mxu0 0
    %2234 = vmatprep.subr.bf16.mxu0 0
    %2235 = vmatpush1.bf16.xpose.msra.mxu0 0
    %2236 = vmatprep.subr.bf16.mxu0 0
    %2237 = vmatpush1.bf16.xpose.msra.mxu0 0
    %2238 = vmatprep.subr.bf16.mxu0 0
    %2239 = vmatpush1.bf16.xpose.msra.mxu0 0
    %2240 = vmatprep.subr.bf16.mxu0 0
    %2241 = vmatpush1.bf16.xpose.msra.mxu0 0
    %2242 = vmatprep.subr.bf16.mxu0 0
    %2243 = vmatpush1.bf16.xpose.msra.mxu0 0
    %2244 = vmatprep.subr.bf16.mxu0 0
    %2245 = vmatpush1.bf16.xpose.msra.mxu0 0
    %2246 = vmatprep.subr.bf16.mxu0 0
    %2247 = vmatpush1.bf16.xpose.msra.mxu0 0
    %2248 = vmatprep.subr.bf16.mxu0 0
    %2249 = vmatpush1.bf16.xpose.msra.mxu0 0
    %2250 = vmatprep.subr.bf16.mxu0 0
    %2251 = vmatpush1.bf16.xpose.msra.mxu0 0
    %2252 = vmatprep.subr.bf16.mxu0 0
    %2253 = vmatpush1.bf16.xpose.msra.mxu0 0
    %2254 = vmatprep.subr.bf16.mxu0 0
    %2255 = vmatpush1.bf16.xpose.msra.mxu0 0
    %2256 = vmatprep.subr.bf16.mxu0 0
    %2257 = vmatpush1.bf16.xpose.msra.mxu0 0
    %2258 = vmatprep.subr.bf16.mxu0 0
    %2259 = vmatpush1.bf16.xpose.msra.mxu0 0
    %2260 = vmatprep.subr.bf16.mxu0 0
    %2261 = vmatpush1.bf16.xpose.msra.mxu0 0
    %2262 = vmatprep.mubr.bf16.mxu0 0
    %2263 = vmatmul.mubr.bf16.gmra.mrb[0].mxu0 %v2225
    %v2264 = vpop.f32.mrb[0].mxu0
    %v2265 = vadd.f32 %v120, %v2264
    %v2266 = vpop.f32.mrb[0].mxu0
    %v2267 = vpop.f32.mrb[0].mxu0
    %v2268 = vpop.f32.mrb[0].mxu0
    %2269 = vdwg.mxu0
    %v2270 = vsel %vm199, %v2215, -inf
    %2271 = vmax.xlane.f32.xlu0 %v2270
    %v2272 = vpop.xlane.xlu0 %2271
    %v2273 = vsel %vm199, %v2265, -inf
    %2274 = vmax.xlane.f32.xlu0 %v2273
    %v2275 = vpop.xlane.xlu0 %2274
    %v2276 = vsub.f32 %v2215, %v2272
    %v2277 = vsub.f32 %v2265, %v2275
    %v2278 = vmul.f32 %v2276, 1.442695
    %v2279 = vpow.pop %v2278
    %v2280 = vmul.f32 %v2277, 1.442695
    %v2281 = vpow.pop %v2280
    %v2282 = vsel %vm199, %v2279, 0.0
    %2283 = vadd.xlane.f32.xlu0 %v2282
    %v2284 = vpop.xlane.xlu0 %2283
    %v2285 = vsel %vm199, %v2281, 0.0
    %2286 = vadd.xlane.f32.xlu0 %v2285
    %v2287 = vpop.xlane.xlu0 %2286
    %v2288 = vrcp.pop %v2284
    %v2289 = vrcp.pop %v2287
    %v2290 = vmul.f32 %v2279, %v2288
    %v2291 = vmul.f32 %v2281, %v2289
    %v2292 = vpack.c.bf16 %v2290, %v2290
    %v2293 = vpack.c.bf16 %v2291, %v2291
    %2294 = vrot.lane.b32.xlu0 %v1512, 40
    %v2295 = vpop.permute.xlu0 %2294
    %v2297 = vsel %vm199, %v2292, 0
    %v2300 = vsel %vm323, %v2295, 0
    %2302 = vmatprep.subr.bf16.mxu0 0
    %2303 = vmatpush1.bf16.msra.mxu0 %v2300
    %2304 = vmatprep.subr.bf16.mxu0 0
    %2305 = vmatpush1.bf16.msra.mxu0 0
    %2306 = vmatprep.subr.bf16.mxu0 0
    %2307 = vmatpush1.bf16.msra.mxu0 0
    %2308 = vmatprep.subr.bf16.mxu0 0
    %2309 = vmatpush1.bf16.msra.mxu0 0
    %2310 = vmatprep.subr.bf16.mxu0 0
    %2311 = vmatpush1.bf16.msra.mxu0 0
    %2312 = vmatprep.subr.bf16.mxu0 0
    %2313 = vmatpush1.bf16.msra.mxu0 0
    %2314 = vmatprep.subr.bf16.mxu0 0
    %2315 = vmatpush1.bf16.msra.mxu0 0
    %2316 = vmatprep.subr.bf16.mxu0 0
    %2317 = vmatpush1.bf16.msra.mxu0 0
    %2318 = vmatprep.subr.bf16.mxu0 0
    %2319 = vmatpush1.bf16.msra.mxu0 0
    %2320 = vmatprep.subr.bf16.mxu0 0
    %2321 = vmatpush1.bf16.msra.mxu0 0
    %2322 = vmatprep.subr.bf16.mxu0 0
    %2323 = vmatpush1.bf16.msra.mxu0 0
    %2324 = vmatprep.subr.bf16.mxu0 0
    %2325 = vmatpush1.bf16.msra.mxu0 0
    %2326 = vmatprep.subr.bf16.mxu0 0
    %2327 = vmatpush1.bf16.msra.mxu0 0
    %2328 = vmatprep.subr.bf16.mxu0 0
    %2329 = vmatpush1.bf16.msra.mxu0 0
    %2330 = vmatprep.subr.bf16.mxu0 0
    %2331 = vmatpush1.bf16.msra.mxu0 0
    %2332 = vmatprep.subr.bf16.mxu0 0
    %2333 = vmatpush1.bf16.msra.mxu0 0
    %2334 = vmatprep.mubr.bf16.mxu0 0
    %2335 = vmatmul.mubr.bf16.gmra.mrb[0].mxu0 %v2297
    %v2336 = vpop.f32.mrb[0].mxu0
    %v2337 = vadd.f32 0.0, %v2336
    %v2338 = vpop.f32.mrb[0].mxu0
    %v2339 = vpop.f32.mrb[0].mxu0
    %v2340 = vpop.f32.mrb[0].mxu0
    %2341 = vdwg.mxu0
    %2342 = vrot.lane.b32.xlu0 %v1513, 40
    %v2343 = vpop.permute.xlu0 %2342
    %v2345 = vsel %vm199, %v2293, 0
    %v2348 = vsel %vm323, %v2343, 0
    %2350 = vmatprep.subr.bf16.mxu0 0
    %2351 = vmatpush1.bf16.msra.mxu0 %v2348
    %2352 = vmatprep.subr.bf16.mxu0 0
    %2353 = vmatpush1.bf16.msra.mxu0 0
    %2354 = vmatprep.subr.bf16.mxu0 0
    %2355 = vmatpush1.bf16.msra.mxu0 0
    %2356 = vmatprep.subr.bf16.mxu0 0
    %2357 = vmatpush1.bf16.msra.mxu0 0
    %2358 = vmatprep.subr.bf16.mxu0 0
    %2359 = vmatpush1.bf16.msra.mxu0 0
    %2360 = vmatprep.subr.bf16.mxu0 0
    %2361 = vmatpush1.bf16.msra.mxu0 0
    %2362 = vmatprep.subr.bf16.mxu0 0
    %2363 = vmatpush1.bf16.msra.mxu0 0
    %2364 = vmatprep.subr.bf16.mxu0 0
    %2365 = vmatpush1.bf16.msra.mxu0 0
    %2366 = vmatprep.subr.bf16.mxu0 0
    %2367 = vmatpush1.bf16.msra.mxu0 0
    %2368 = vmatprep.subr.bf16.mxu0 0
    %2369 = vmatpush1.bf16.msra.mxu0 0
    %2370 = vmatprep.subr.bf16.mxu0 0
    %2371 = vmatpush1.bf16.msra.mxu0 0
    %2372 = vmatprep.subr.bf16.mxu0 0
    %2373 = vmatpush1.bf16.msra.mxu0 0
    %2374 = vmatprep.subr.bf16.mxu0 0
    %2375 = vmatpush1.bf16.msra.mxu0 0
    %2376 = vmatprep.subr.bf16.mxu0 0
    %2377 = vmatpush1.bf16.msra.mxu0 0
    %2378 = vmatprep.subr.bf16.mxu0 0
    %2379 = vmatpush1.bf16.msra.mxu0 0
    %2380 = vmatprep.subr.bf16.mxu0 0
    %2381 = vmatpush1.bf16.msra.mxu0 0
    %2382 = vmatprep.mubr.bf16.mxu0 0
    %2383 = vmatmul.mubr.bf16.gmra.mrb[0].mxu0 %v2345
    %v2384 = vpop.f32.mrb[0].mxu0
    %v2385 = vadd.f32 0.0, %v2384
    %v2386 = vpop.f32.mrb[0].mxu0
    %v2387 = vpop.f32.mrb[0].mxu0
    %v2388 = vpop.f32.mrb[0].mxu0
    %2389 = vdwg.mxu0
    %2392 = vrot.lane.b32.xlu0 %v1897, 8
    %v2393 = vpop.permute.xlu0 %2392
    %2394 = vrot.lane.b32.xlu0 %v1945, 8
    %v2395 = vpop.permute.xlu0 %2394
    %2400 = vrot.lane.b32.xlu0 %v2117, 16
    %v2401 = vpop.permute.xlu0 %2400
    %2402 = vrot.lane.b32.xlu0 %v2165, 16
    %v2403 = vpop.permute.xlu0 %2402
    %2408 = vrot.lane.b32.xlu0 %v2337, 24
    %v2409 = vpop.permute.xlu0 %2408
    %2410 = vrot.lane.b32.xlu0 %v2385, 24
    %v2411 = vpop.permute.xlu0 %2410
    %v2414 = vsel %vm199, %v1677, %v2393
    %v2415 = vsel %vm199, %v1725, %v2395
    %v2416 = vsel %vm1101, %v2414, %v2401
    %v2417 = vsel %vm1101, %v2415, %v2403
    %v2418 = vsel %vm1104, %v2416, %v2409
    %v2419 = vsel %vm1104, %v2417, %v2411
    %v2420 = vpack.c.bf16 %v2419, %v2418
    %s2421 = scalar_lea.vmem %s6, 16
    %v2422 = vld [vmem:[%s2421] sm:$0xf]
    %v2423 = vld [vmem:[%s2421 + $0x4] sm:$0xf]
    %v2424 = vld [vmem:[%s2421 + $0x8] sm:$0xf]
    %v2425 = vld [vmem:[%s2421 + $0xc] sm:$0xf]
    %s2426 = scalar_lea.vmem %s7, 1
    %v2427 = vld [vmem:[%s2426] sm:$0x1]
    %v2429 = vlaneseq
    %v2430 = vshrl.u32 %v2429, 7
    %v2431 = vsub.s32 0, %v2430
    %v2432 = vrot.slane %v2427, %v2431
    %v2438 = vunpack.c.l.b16 %v2422
    %v2439 = vunpack.c.l.b16 %v2423
    %v2440 = vunpack.c.l.b16 %v2424
    %v2441 = vunpack.c.l.b16 %v2425
    %v2442 = vpack.c.b16 %v2439, %v2438
    %v2443 = vpack.c.b16 %v2441, %v2440
    %v2447 = vsel %vm65, %v2420, 0
    %2449 = vmatprep.subr.bf16.mxu0 0
    %2450 = vmatpush1.bf16.msra.mxu0 %v2442
    %2451 = vmatprep.subr.bf16.mxu0 0
    %2452 = vmatpush1.bf16.msra.mxu0 %v2443
    %2453 = vmatprep.subr.bf16.mxu0 0
    %2454 = vmatpush1.bf16.msra.mxu0 0
    %2455 = vmatprep.subr.bf16.mxu0 0
    %2456 = vmatpush1.bf16.msra.mxu0 0
    %2457 = vmatprep.subr.bf16.mxu0 0
    %2458 = vmatpush1.bf16.msra.mxu0 0
    %2459 = vmatprep.subr.bf16.mxu0 0
    %2460 = vmatpush1.bf16.msra.mxu0 0
    %2461 = vmatprep.subr.bf16.mxu0 0
    %2462 = vmatpush1.bf16.msra.mxu0 0
    %2463 = vmatprep.subr.bf16.mxu0 0
    %2464 = vmatpush1.bf16.msra.mxu0 0
    %2465 = vmatprep.subr.bf16.mxu0 0
    %2466 = vmatpush1.bf16.msra.mxu0 0
    %2467 = vmatprep.subr.bf16.mxu0 0
    %2468 = vmatpush1.bf16.msra.mxu0 0
    %2469 = vmatprep.subr.bf16.mxu0 0
    %2470 = vmatpush1.bf16.msra.mxu0 0
    %2471 = vmatprep.subr.bf16.mxu0 0
    %2472 = vmatpush1.bf16.msra.mxu0 0
    %2473 = vmatprep.subr.bf16.mxu0 0
    %2474 = vmatpush1.bf16.msra.mxu0 0
    %2475 = vmatprep.subr.bf16.mxu0 0
    %2476 = vmatpush1.bf16.msra.mxu0 0
    %2477 = vmatprep.subr.bf16.mxu0 0
    %2478 = vmatpush1.bf16.msra.mxu0 0
    %2479 = vmatprep.subr.bf16.mxu0 0
    %2480 = vmatpush1.bf16.msra.mxu0 0
    %2481 = vmatprep.mubr.bf16.mxu0 0
    %2482 = vmatmul.mubr.bf16.gmra.mrb[0].mxu0 %v2447
    %v2483 = vpop.f32.mrb[0].mxu0
    %v2484 = vadd.f32 %v2432, %v2483
    %v2485 = vpop.f32.mrb[0].mxu0
    %v2486 = vpop.f32.mrb[0].mxu0
    %v2487 = vadd.f32 %v2432, %v2486
    %v2488 = vpop.f32.mrb[0].mxu0
    %2489 = vdwg.mxu0
    %v2490 = vadd.f32 %v1436, %v2484
    %v2491 = vadd.f32 %v1437, %v2487
    %s2492 = scalar_lea.vmem %s8, 1
    %v2493 = vld [vmem:[%s2492] sm:$0x1]
    %s2494 = scalar_lea.vmem %s9, 1
    %v2495 = vld [vmem:[%s2494] sm:$0x1]
    %v2496 = vsel %vm65, %v2490, 0.0
    %2497 = vadd.xlane.f32.xlu0 %v2496
    %v2498 = vpop.xlane.xlu0 %2497
    %v2499 = vsel %vm65, %v2491, 0.0
    %2500 = vadd.xlane.f32.xlu0 %v2499
    %v2501 = vpop.xlane.xlu0 %2500
    %v2502 = vmul.f32 %v2498, %v72
    %v2503 = vmul.f32 %v2501, %v72
    %v2504 = vsub.f32 %v2490, %v2502
    %v2505 = vsub.f32 %v2491, %v2503
    %v2506 = vmul.f32 %v2504, %v2504
    %v2507 = vmul.f32 %v2505, %v2505
    %v2508 = vsel %vm65, %v2506, 0.0
    %2509 = vadd.xlane.f32.xlu0 %v2508
    %v2510 = vpop.xlane.xlu0 %2509
    %v2511 = vsel %vm65, %v2507, 0.0
    %2512 = vadd.xlane.f32.xlu0 %v2511
    %v2513 = vpop.xlane.xlu0 %2512
    %v2514 = vmul.f32 %v2510, %v72
    %v2515 = vmul.f32 %v2513, %v72
    %v2516 = vadd.f32 %v2514, 1e-12
    %v2517 = vadd.f32 %v2515, 1e-12
    %v2518 = vrsqrt.pop %v2516
    %v2519 = vrsqrt.pop %v2517
    %v2520 = vmul.f32 %v2504, %v2518
    %v2521 = vmul.f32 %v2505, %v2519
    %v2523 = vlaneseq
    %v2524 = vshrl.u32 %v2523, 7
    %v2525 = vsub.s32 0, %v2524
    %v2526 = vrot.slane %v2493, %v2525
    %v2528 = vmul.f32 %v2520, %v2526
    %v2529 = vmul.f32 %v2521, %v2526
    %v2531 = vlaneseq
    %v2532 = vshrl.u32 %v2531, 7
    %v2533 = vsub.s32 0, %v2532
    %v2534 = vrot.slane %v2495, %v2533
    %v2536 = vadd.f32 %v2528, %v2534
    %v2537 = vadd.f32 %v2529, %v2534
    %v2538 = vpack.c.bf16 %v2537, %v2536
    %s2539 = scalar_lea.vmem %s10, 16
    %v2540 = vld [vmem:[%s2539] sm:$0xf]
    %v2541 = vld [vmem:[%s2539 + $0x4] sm:$0xf]
    %v2542 = vld [vmem:[%s2539 + $0x8] sm:$0xf]
    %v2543 = vld [vmem:[%s2539 + $0xc] sm:$0xf]
    %s2544 = scalar_lea.vmem %s11, 1
    %v2545 = vld [vmem:[%s2544] sm:$0x1]
    %v2547 = vlaneseq
    %v2548 = vshrl.u32 %v2547, 7
    %v2549 = vsub.s32 0, %v2548
    %v2550 = vrot.slane %v2545, %v2549
    %v2556 = vunpack.c.l.b16 %v2540
    %v2557 = vunpack.c.l.b16 %v2541
    %v2558 = vunpack.c.l.b16 %v2542
    %v2559 = vunpack.c.l.b16 %v2543
    %v2560 = vpack.c.b16 %v2557, %v2556
    %v2561 = vpack.c.b16 %v2559, %v2558
    %v2565 = vsel %vm65, %v2538, 0
    %2567 = vmatprep.subr.bf16.mxu0 0
    %2568 = vmatpush1.bf16.msra.mxu0 %v2560
    %2569 = vmatprep.subr.bf16.mxu0 0
    %2570 = vmatpush1.bf16.msra.mxu0 %v2561
    %2571 = vmatprep.subr.bf16.mxu0 0
    %2572 = vmatpush1.bf16.msra.mxu0 0
    %2573 = vmatprep.subr.bf16.mxu0 0
    %2574 = vmatpush1.bf16.msra.mxu0 0
    %2575 = vmatprep.subr.bf16.mxu0 0
    %2576 = vmatpush1.bf16.msra.mxu0 0
    %2577 = vmatprep.subr.bf16.mxu0 0
    %2578 = vmatpush1.bf16.msra.mxu0 0
    %2579 = vmatprep.subr.bf16.mxu0 0
    %2580 = vmatpush1.bf16.msra.mxu0 0
    %2581 = vmatprep.subr.bf16.mxu0 0
    %2582 = vmatpush1.bf16.msra.mxu0 0
    %2583 = vmatprep.subr.bf16.mxu0 0
    %2584 = vmatpush1.bf16.msra.mxu0 0
    %2585 = vmatprep.subr.bf16.mxu0 0
    %2586 = vmatpush1.bf16.msra.mxu0 0
    %2587 = vmatprep.subr.bf16.mxu0 0
    %2588 = vmatpush1.bf16.msra.mxu0 0
    %2589 = vmatprep.subr.bf16.mxu0 0
    %2590 = vmatpush1.bf16.msra.mxu0 0
    %2591 = vmatprep.subr.bf16.mxu0 0
    %2592 = vmatpush1.bf16.msra.mxu0 0
    %2593 = vmatprep.subr.bf16.mxu0 0
    %2594 = vmatpush1.bf16.msra.mxu0 0
    %2595 = vmatprep.subr.bf16.mxu0 0
    %2596 = vmatpush1.bf16.msra.mxu0 0
    %2597 = vmatprep.subr.bf16.mxu0 0
    %2598 = vmatpush1.bf16.msra.mxu0 0
    %2599 = vmatprep.mubr.bf16.mxu0 0
    %2600 = vmatmul.mubr.bf16.gmra.mrb[0].mxu0 %v2565
    %v2601 = vpop.f32.mrb[0].mxu0
    %v2602 = vadd.f32 %v2550, %v2601
    %v2603 = vpop.f32.mrb[0].mxu0
    %v2604 = vpop.f32.mrb[0].mxu0
    %v2605 = vadd.f32 %v2550, %v2604
    %v2606 = vpop.f32.mrb[0].mxu0
    %2607 = vdwg.mxu0
    %v2608 = vmul.f32 %v2602, 0.5
    %v2609 = vmul.f32 %v2605, 0.5
    %v2610 = vmul.f32 %v2602, 0.044715
    %v2611 = vmul.f32 %v2605, 0.044715
    %v2612 = vmul.f32 %v2610, %v2602
    %v2613 = vmul.f32 %v2611, %v2605
    %v2614 = vmul.f32 %v2612, %v2602
    %v2615 = vmul.f32 %v2613, %v2605
    %v2616 = vadd.f32 %v2602, %v2614
    %v2617 = vadd.f32 %v2605, %v2615
    %v2618 = vmul.f32 %v2616, 0.7978846
    %v2619 = vmul.f32 %v2617, 0.7978846
    %v2620 = vtanh.pop %v2618
    %v2621 = vtanh.pop %v2619
    %v2622 = vadd.f32 %v2620, 1.0
    %v2623 = vadd.f32 %v2621, 1.0
    %v2624 = vmul.f32 %v2608, %v2622
    %v2625 = vmul.f32 %v2609, %v2623
    %v2626 = vpack.c.bf16 %v2625, %v2624
    %s2627 = scalar_lea.vmem %s12, 32
    %v2628 = vld [vmem:[%s2627] sm:$0xf]
    %v2629 = vld [vmem:[%s2627 + $0x4] sm:$0xf]
    %v2630 = vld [vmem:[%s2627 + $0x8] sm:$0xf]
    %v2631 = vld [vmem:[%s2627 + $0xc] sm:$0xf]
    %v2632 = vld [vmem:[%s2627 + $0x10] sm:$0xf]
    %v2633 = vld [vmem:[%s2627 + $0x14] sm:$0xf]
    %v2634 = vld [vmem:[%s2627 + $0x18] sm:$0xf]
    %v2635 = vld [vmem:[%s2627 + $0x1c] sm:$0xf]
    %s2636 = scalar_lea.vmem %s13, 1
    %v2637 = vld [vmem:[%s2636] sm:$0x1]
    %v2639 = vlaneseq
    %v2640 = vshrl.u32 %v2639, 7
    %v2641 = vsub.s32 0, %v2640
    %v2642 = vrot.slane %v2637, %v2641
    %v2652 = vunpack.c.l.b16 %v2628
    %v2653 = vunpack.c.l.b16 %v2629
    %v2654 = vunpack.c.l.b16 %v2630
    %v2655 = vunpack.c.l.b16 %v2631
    %v2656 = vunpack.c.l.b16 %v2632
    %v2657 = vunpack.c.l.b16 %v2633
    %v2658 = vunpack.c.l.b16 %v2634
    %v2659 = vunpack.c.l.b16 %v2635
    %v2660 = vpack.c.b16 %v2653, %v2652
    %v2661 = vpack.c.b16 %v2655, %v2654
    %v2662 = vpack.c.b16 %v2657, %v2656
    %v2663 = vpack.c.b16 %v2659, %v2658
    %v2669 = vsel %vm1347, %v2626, 0
    %2671 = vmatprep.subr.bf16.mxu0 0
    %2672 = vmatpush1.bf16.msra.mxu0 %v2660
    %2673 = vmatprep.subr.bf16.mxu0 0
    %2674 = vmatpush1.bf16.msra.mxu0 %v2661
    %2675 = vmatprep.subr.bf16.mxu0 0
    %2676 = vmatpush1.bf16.msra.mxu0 %v2662
    %2677 = vmatprep.subr.bf16.mxu0 0
    %2678 = vmatpush1.bf16.msra.mxu0 %v2663
    %2679 = vmatprep.subr.bf16.mxu0 0
    %2680 = vmatpush1.bf16.msra.mxu0 0
    %2681 = vmatprep.subr.bf16.mxu0 0
    %2682 = vmatpush1.bf16.msra.mxu0 0
    %2683 = vmatprep.subr.bf16.mxu0 0
    %2684 = vmatpush1.bf16.msra.mxu0 0
    %2685 = vmatprep.subr.bf16.mxu0 0
    %2686 = vmatpush1.bf16.msra.mxu0 0
    %2687 = vmatprep.subr.bf16.mxu0 0
    %2688 = vmatpush1.bf16.msra.mxu0 0
    %2689 = vmatprep.subr.bf16.mxu0 0
    %2690 = vmatpush1.bf16.msra.mxu0 0
    %2691 = vmatprep.subr.bf16.mxu0 0
    %2692 = vmatpush1.bf16.msra.mxu0 0
    %2693 = vmatprep.subr.bf16.mxu0 0
    %2694 = vmatpush1.bf16.msra.mxu0 0
    %2695 = vmatprep.subr.bf16.mxu0 0
    %2696 = vmatpush1.bf16.msra.mxu0 0
    %2697 = vmatprep.subr.bf16.mxu0 0
    %2698 = vmatpush1.bf16.msra.mxu0 0
    %2699 = vmatprep.subr.bf16.mxu0 0
    %2700 = vmatpush1.bf16.msra.mxu0 0
    %2701 = vmatprep.subr.bf16.mxu0 0
    %2702 = vmatpush1.bf16.msra.mxu0 0
    %2703 = vmatprep.mubr.bf16.mxu0 0
    %2704 = vmatmul.mubr.bf16.gmra.mrb[0].mxu0 %v2669
    %v2705 = vpop.f32.mrb[0].mxu0
    %v2706 = vadd.f32 %v2642, %v2705
    %v2707 = vpop.f32.mrb[0].mxu0
    %v2708 = vpop.f32.mrb[0].mxu0
    %v2709 = vadd.f32 %v2642, %v2708
    %v2710 = vpop.f32.mrb[0].mxu0
    %2711 = vdwg.mxu0
    %v2712 = vadd.f32 %v2536, %v2706
    %v2713 = vadd.f32 %v2537, %v2709
    %s2714 = scalar_lea.vmem %s14, 1
    %v2715 = vld [vmem:[%s2714] sm:$0x1]
    %s2716 = scalar_lea.vmem %s15, 1
    %v2717 = vld [vmem:[%s2716] sm:$0x1]
    %v2718 = vsel %vm65, %v2712, 0.0
    %2719 = vadd.xlane.f32.xlu0 %v2718
    %v2720 = vpop.xlane.xlu0 %2719
    %v2721 = vsel %vm65, %v2713, 0.0
    %2722 = vadd.xlane.f32.xlu0 %v2721
    %v2723 = vpop.xlane.xlu0 %2722
    %v2724 = vmul.f32 %v2720, %v72
    %v2725 = vmul.f32 %v2723, %v72
    %v2726 = vsub.f32 %v2712, %v2724
    %v2727 = vsub.f32 %v2713, %v2725
    %v2728 = vmul.f32 %v2726, %v2726
    %v2729 = vmul.f32 %v2727, %v2727
    %v2730 = vsel %vm65, %v2728, 0.0
    %2731 = vadd.xlane.f32.xlu0 %v2730
    %v2732 = vpop.xlane.xlu0 %2731
    %v2733 = vsel %vm65, %v2729, 0.0
    %2734 = vadd.xlane.f32.xlu0 %v2733
    %v2735 = vpop.xlane.xlu0 %2734
    %v2736 = vmul.f32 %v2732, %v72
    %v2737 = vmul.f32 %v2735, %v72
    %v2738 = vadd.f32 %v2736, 1e-12
    %v2739 = vadd.f32 %v2737, 1e-12
    %v2740 = vrsqrt.pop %v2738
    %v2741 = vrsqrt.pop %v2739
    %v2742 = vmul.f32 %v2726, %v2740
    %v2743 = vmul.f32 %v2727, %v2741
    %v2745 = vlaneseq
    %v2746 = vshrl.u32 %v2745, 7
    %v2747 = vsub.s32 0, %v2746
    %v2748 = vrot.slane %v2715, %v2747
    %v2750 = vmul.f32 %v2742, %v2748
    %v2751 = vmul.f32 %v2743, %v2748
    %v2753 = vlaneseq
    %v2754 = vshrl.u32 %v2753, 7
    %v2755 = vsub.s32 0, %v2754
    %v2756 = vrot.slane %v2717, %v2755
    %v2758 = vadd.f32 %v2750, %v2756
    %v2759 = vadd.f32 %v2751, %v2756
    %v2760 = vpack.c.bf16 %v2758, %v2758
    %v2761 = vpack.c.bf16 %v2759, %v2759
    %v2762 = vld [vmem:[%s16] sm:$0xf]
    %v2763 = vld [vmem:[%s16 + $0x4] sm:$0xf]
    %v2764 = vld [vmem:[%s16 + $0x8] sm:$0xf]
    %v2765 = vld [vmem:[%s16 + $0xc] sm:$0xf]
    %v2766 = vld [vmem:[%s17] sm:$0x1]
    %v2768 = vlaneseq
    %v2769 = vshrl.u32 %v2768, 7
    %v2770 = vsub.s32 0, %v2769
    %v2771 = vrot.slane %v2766, %v2770
    %v2775 = vunpack.c.l.b16 %v2760
    %v2776 = vunpack.c.l.b16 %v2761
    %v2777 = vrot.slane %v2776, 7
    %vm2778 = vcmask 1041409
    %v2779 = vsel %vm2778, %v2777, %v2775
    %v2780 = vpack.c.b16 %v2779, %v2779
    %v2785 = vunpack.c.l.b16 %v2762
    %v2786 = vunpack.c.l.b16 %v2763
    %v2787 = vunpack.c.l.b16 %v2764
    %v2788 = vunpack.c.l.b16 %v2765
    %v2789 = vpack.c.b16 %v2786, %v2785
    %v2790 = vpack.c.b16 %v2788, %v2787
    %v2794 = vsel %vm65, %v2780, 0
    %2796 = vmatprep.subr.bf16.mxu0 0
    %2797 = vmatpush1.bf16.msra.mxu0 %v2789
    %2798 = vmatprep.subr.bf16.mxu0 0
    %2799 = vmatpush1.bf16.msra.mxu0 %v2790
    %2800 = vmatprep.subr.bf16.mxu0 0
    %2801 = vmatpush1.bf16.msra.mxu0 0
    %2802 = vmatprep.subr.bf16.mxu0 0
    %2803 = vmatpush1.bf16.msra.mxu0 0
    %2804 = vmatprep.subr.bf16.mxu0 0
    %2805 = vmatpush1.bf16.msra.mxu0 0
    %2806 = vmatprep.subr.bf16.mxu0 0
    %2807 = vmatpush1.bf16.msra.mxu0 0
    %2808 = vmatprep.subr.bf16.mxu0 0
    %2809 = vmatpush1.bf16.msra.mxu0 0
    %2810 = vmatprep.subr.bf16.mxu0 0
    %2811 = vmatpush1.bf16.msra.mxu0 0
    %2812 = vmatprep.subr.bf16.mxu0 0
    %2813 = vmatpush1.bf16.msra.mxu0 0
    %2814 = vmatprep.subr.bf16.mxu0 0
    %2815 = vmatpush1.bf16.msra.mxu0 0
    %2816 = vmatprep.subr.bf16.mxu0 0
    %2817 = vmatpush1.bf16.msra.mxu0 0
    %2818 = vmatprep.subr.bf16.mxu0 0
    %2819 = vmatpush1.bf16.msra.mxu0 0
    %2820 = vmatprep.subr.bf16.mxu0 0
    %2821 = vmatpush1.bf16.msra.mxu0 0
    %2822 = vmatprep.subr.bf16.mxu0 0
    %2823 = vmatpush1.bf16.msra.mxu0 0
    %2824 = vmatprep.subr.bf16.mxu0 0
    %2825 = vmatpush1.bf16.msra.mxu0 0
    %2826 = vmatprep.subr.bf16.mxu0 0
    %2827 = vmatpush1.bf16.msra.mxu0 0
    %2828 = vmatprep.mubr.bf16.mxu0 0
    %2829 = vmatmul.mubr.bf16.gmra.mrb[0].mxu0 %v2794
    %v2830 = vpop.f32.mrb[0].mxu0
    %v2831 = vadd.f32 %v2771, %v2830
    %v2832 = vpop.f32.mrb[0].mxu0
    %v2833 = vpop.f32.mrb[0].mxu0
    %v2834 = vpop.f32.mrb[0].mxu0
    %2835 = vdwg.mxu0
    %vm2836 = vcmask 17408
    %2837 = vst.msk [vmem:[#allocation2] sm:$0x3] %vm2836, %v2831
    // Predicated region
    $region74: #{spam_classifier_forward.1} parent=1 // pred_check
      _
    $region75: #{spam_classifier_forward.1} parent=1 // pred_check_branch
      %2839 = sbr.rel (0) target = $region77
    $region76: #{spam_classifier_forward.1} parent=1 // pred_region
      %s2841 = ssub.s32 32, 32
      %2842 = vsyncadd [#allocation3], %s2841
      %s2844 = sshll.u32 [#allocation2], 4
      %s2845 = int_to_ptr.vmem [resolvable:$true] %s2844
      %2847 = dma.vmem_to_hbm [thread:$0]  %s2845, 32, %s18, [#allocation3]
    $region77: #{spam_classifier_forward.1} parent=1 // pred_fallthru
      _
    // Predicated region
    $region78: #{spam_classifier_forward.1} parent=1 // pred_check
      _
    $region79: #{spam_classifier_forward.1} parent=1 // pred_check_branch
      %2849 = sbr.rel (0) target = $region81
    $region80: #{spam_classifier_forward.1} parent=1 // pred_region
      %2850 = dma.done [#allocation3], 32
    $region81: #{spam_classifier_forward.1} parent=1 // pred_fallthru
      _
    %2851 = vsyncpa [#allocation3], 1

</llo_original>
